<compile_context>
chip_gen: v6e
topology: v6e:2x2x1
jax: 0.10.0
libtpu: 0.0.40
codegen_flags: <defaults>
</compile_context>

<pallas_src>
import functools

import jax
import jax.numpy as jnp
from jax.experimental import pallas as pl
from jax.experimental.pallas import tpu as pltpu


def _static_pow(x, p):
    """x ** p for a static Python exponent, avoiding generic pow (EUP exp/log)."""
    p = float(p)
    if p == 1.0:
        return x
    if p == 0.5:
        return jnp.sqrt(x)
    if p.is_integer() and 1.0 <= p <= 16.0:
        n = int(p)
        result = None
        base = x
        while n:
            if n & 1:
                result = base if result is None else result * base
            n >>= 1
            if n:
                base = base * base
        return result
    return jnp.power(x, p)


def _assigner_kernel(pd_s_ref, pd_bT_ref, anc_ref, gt_meta_ref, gt_metaT_ref,
                     packed_ref, bbT_ref, scT_ref,
                     *, topk, num_classes, alpha, beta):
    f32 = jnp.float32
    A, C = pd_s_ref.shape
    M = gt_meta_ref.shape[0]
    HI = jax.lax.Precision.HIGHEST  # exact one-hot gathers on the MXU

    pd_s = pd_s_ref[...]           # (A, C)  predicted class scores (native layout)
    pd_bT = pd_bT_ref[...]         # (4, A)  predicted xyxy boxes (transposed)
    anc = anc_ref[...]             # (2, A)  anchor centers (transposed)
    gt_meta = gt_meta_ref[...]     # (M, 8)  [x1,y1,x2,y2,label,mask,0,0]
    gt_metaT = gt_metaT_ref[...]   # (8, M)  same, transposed (for MXU gather)

    px1, py1 = pd_bT[0:1, :], pd_bT[1:2, :]
    px2, py2 = pd_bT[2:3, :], pd_bT[3:4, :]
    gx1, gy1 = gt_meta[:, 0:1], gt_meta[:, 1:2]
    gx2, gy2 = gt_meta[:, 2:3], gt_meta[:, 3:4]
    gt_lab = gt_meta[:, 4:5]       # (M, 1) GT labels (float)
    mask_gt = gt_meta[:, 5:6]      # (M, 1) valid-GT mask (float 0/1)

    # ---- IoU between every GT (sublane) and every prediction (lane): (M, A) ----
    inter_w = jnp.maximum(jnp.minimum(px2, gx2) - jnp.maximum(px1, gx1), 0.0)
    inter_h = jnp.maximum(jnp.minimum(py2, gy2) - jnp.maximum(py1, gy1), 0.0)
    inter = inter_w * inter_h
    area_p = (px2 - px1) * (py2 - py1)
    area_g = (gx2 - gx1) * (gy2 - gy1)
    overlaps = inter / (area_p + area_g - inter + 1e-7)              # (M, A)

    # ---- anchor-center-inside-GT mask (eps=1e-9, select_candidates_in_gts) ----
    anc_x, anc_y = anc[0:1, :], anc[1:2, :]
    min_delta = jnp.minimum(jnp.minimum(anc_x - gx1, anc_y - gy1),
                            jnp.minimum(gx2 - anc_x, gy2 - anc_y))
    mask_in_gts = (min_delta > 1e-9).astype(f32)                     # (M, A)

    # ---- one-hot of clamped GT labels built in-kernel (tiny (M, C)) ----
    iota_c_row = jax.lax.broadcasted_iota(jnp.int32, (1, C), 1)
    gt_lab_i = (jnp.clip(gt_lab, 0.0, float(num_classes - 1)) + 0.5
                ).astype(jnp.int32)                                  # (M, 1)
    gt_oh = (gt_lab_i == iota_c_row).astype(f32)                     # (M, C)

    # ---- class-score gather on the MXU, contracting C (pd_scores untransposed):
    #      scores[m, a] = pd_scores[a, clamp(label[m])] ----
    bbox_scores = jax.lax.dot_general(
        gt_oh, pd_s, (((1,), (1,)), ((), ())),
        precision=HI, preferred_element_type=f32)                    # (M, A)

    # align metric: score^alpha * iou^beta (sqrt / repeated squaring, no EUP pow)
    align = _static_pow(bbox_scores, alpha) * _static_pow(overlaps, beta)

    # ---- top-k anchors per GT (iterative first-argmax removal) ----
    # torch passes topk_mask = mask_gt; the mask_gt gating is applied below so the
    # loop itself needs no masking.  Ties -> lowest anchor index.
    metrics = align * mask_in_gts
    iota_a = jax.lax.broadcasted_iota(jnp.int32, (1, A), 1)          # (1, A)
    neg_inf = jnp.float32(-jnp.inf)

    def topk_body(_, work):
        rmax = jnp.max(work, axis=1, keepdims=True)                  # (M, 1)
        first_idx = jnp.min(jnp.where(work == rmax, iota_a, A),
                            axis=1, keepdims=True)                   # (M, 1)
        return jnp.where(iota_a == first_idx, neg_inf, work)

    # Single (M, A) f32 carry; selected anchors were overwritten with -inf, so the
    # selection mask is simply (work_final < metrics).  topk is static -> unroll.
    work_final = jax.lax.fori_loop(0, topk, topk_body, metrics, unroll=True)
    mask_topk = (work_final < metrics).astype(f32)

    mask_pos0 = mask_topk * mask_in_gts * mask_gt                    # pre-dedup (M, A)

    # ---- dedup epilogue (select_highest_overlaps), simplified ----
    fg0 = jnp.sum(mask_pos0, axis=0, keepdims=True)                  # (1, A)
    multi = fg0 > 1.0
    iota_m = jax.lax.broadcasted_iota(jnp.int32, (M, 1), 0)          # (M, 1)

    # first argmax of overlaps over the GT axis (torch argmax = first occurrence)
    omax = jnp.max(overlaps, axis=0, keepdims=True)
    oarg = jnp.min(jnp.where(overlaps == omax, iota_m, M), axis=0, keepdims=True)
    # first positive GT per anchor in the pre-dedup mask (argmax of a 0/1 column)
    first_pos = jnp.min(jnp.where(mask_pos0 > 0.5, iota_m, M), axis=0, keepdims=True)
    tgt = jnp.where(multi, oarg,
                    jnp.where(first_pos == M, 0, first_pos))         # (1, A) int32

    bg = fg0 < 0.5                                                   # (1, A) bool
    fg_int = jnp.logical_not(bg).astype(jnp.int32)                   # deduped fg in {0,1}

    sel = (iota_m == tgt)                                            # (M, A) one-hot bool
    sel_f = sel.astype(f32)

    # align metric of the assigned GT, gated by the PRE-dedup mask (spec parity)
    align_assigned = jnp.sum(jnp.where(sel, align * mask_pos0, 0.0),
                             axis=0, keepdims=True)                  # (1, A)

    # ---- gather assigned boxes + label with one MXU matmul: (8,M)@(M,A)->(8,A) ----
    # sel is an exact 0/1 one-hot and precision=HIGHEST keeps the f32 values exact.
    gathered = jnp.dot(gt_metaT, sel_f, precision=HI,
                       preferred_element_type=f32)                   # (8, A)

    lab_raw = gathered[4:5, :]                                       # (1, A)
    lab_out = jnp.where(bg, float(num_classes), lab_raw)
    lab_int = (lab_out + 0.5).astype(jnp.int32)                      # exact small ints

    bbT_ref[...] = jnp.where(bg, 0.0, gathered[0:4, :])              # (4, A)

    # ---- target scores (C, A): fused one-hot select with bg zeroing ----
    lab_clamped = jnp.clip(lab_int, 0, num_classes - 1)              # (1, A)
    iota_c_col = jax.lax.broadcasted_iota(jnp.int32, (C, 1), 0)      # (C, 1)
    scT_ref[...] = jnp.where((iota_c_col == lab_clamped) & jnp.logical_not(bg),
                             align_assigned, 0.0)

    # ---- packed int outputs: rows [label, fg, target_gt_idx, 0...] ----
    packed_ref[0:1, :] = lab_int
    packed_ref[1:2, :] = fg_int
    packed_ref[2:3, :] = tgt
    packed_ref[3:8, :] = jnp.zeros((5, A), jnp.int32)


def task_aligned_assigner(pd_scores, pd_bboxes, anc_points, gt_labels, gt_bboxes,
                          mask_gt, *, topk=10, num_classes=80, alpha=0.5, beta=6.0,
                          eps=1e-9):
    """Padded-batch TaskAlignedAssigner forward.

    pd_scores: (bs, A, C) post-sigmoid, pd_bboxes: (bs, A, 4) xyxy,
    anc_points: (A, 2), gt_labels: (bs, M) int (padded with num_classes),
    gt_bboxes: (bs, M, 4) xyxy (padded zero), mask_gt: (bs, M) bool.

    `eps` is accepted for API parity with the torch module; like self.eps there,
    it does not enter the effective forward path when mask_gt is provided.
    """
    del eps
    bs, A, C = pd_scores.shape
    M = gt_bboxes.shape[1]
    assert C == num_classes

    # ---- host-side glue: pad A to a lane multiple, M to a sublane multiple ----
    A_pad = max(128, ((A + 127) // 128) * 128)
    M_pad = max(8, ((M + 7) // 8) * 8)
    pad_a, pad_m = A_pad - A, M_pad - M

    pd_scores_f = pd_scores.astype(jnp.float32)
    pd_bboxes_f = pd_bboxes.astype(jnp.float32)
    anc_f = anc_points.astype(jnp.float32)
    if pad_a:
        pd_scores_f = jnp.pad(pd_scores_f, ((0, 0), (0, pad_a), (0, 0)))
        pd_bboxes_f = jnp.pad(pd_bboxes_f, ((0, 0), (0, pad_a), (0, 0)))
        # padded anchors sit far outside any GT -> never inside, never foreground
        anc_f = jnp.pad(anc_f, ((0, pad_a), (0, 0)), constant_values=-1e9)

    gt_labels_i = gt_labels.astype(jnp.int32)
    gt_bboxes_f = gt_bboxes.astype(jnp.float32)
    mask_gt_f = mask_gt.astype(jnp.float32)
    if pad_m:
        gt_labels_i = jnp.pad(gt_labels_i, ((0, 0), (0, pad_m)),
                              constant_values=num_classes)
        gt_bboxes_f = jnp.pad(gt_bboxes_f, ((0, 0), (0, pad_m), (0, 0)))
        mask_gt_f = jnp.pad(mask_gt_f, ((0, 0), (0, pad_m)))

    # pd_scores stays untransposed (the big transpose is gone); only the small
    # (bs, A, 4) box tensor and the shared anchor table are transposed in XLA.
    pd_bT = jnp.transpose(pd_bboxes_f, (0, 2, 1))                    # (bs, 4, A_pad)
    ancT = jnp.transpose(anc_f, (1, 0))                              # (2, A_pad)
    # gt_meta columns: [x1, y1, x2, y2, label, mask, 0, 0]
    gt_meta = jnp.concatenate(
        [gt_bboxes_f, gt_labels_i.astype(jnp.float32)[..., None],
         mask_gt_f[..., None], jnp.zeros((bs, M_pad, 2), jnp.float32)],
        axis=-1)                                                     # (bs, M_pad, 8)
    gt_metaT = jnp.transpose(gt_meta, (0, 2, 1))                     # (bs, 8, M_pad)

    topk_eff = min(int(topk), A)

    kernel = functools.partial(_assigner_kernel, topk=topk_eff,
                               num_classes=num_classes, alpha=alpha, beta=beta)

    out_shapes = (
        jax.ShapeDtypeStruct((bs, 8, A_pad), jnp.int32),    # [label, fg, tgt, 0..]
        jax.ShapeDtypeStruct((bs, 4, A_pad), jnp.float32),  # target bboxes (T)
        jax.ShapeDtypeStruct((bs, C, A_pad), jnp.float32),  # target scores (T)
    )

    packed, bbT, scT = pl.pallas_call(
        kernel,
        out_shape=out_shapes,
        grid=(bs,),
        in_specs=[
            pl.BlockSpec((None, A_pad, C), lambda b: (b, 0, 0)),
            pl.BlockSpec((None, 4, A_pad), lambda b: (b, 0, 0)),
            pl.BlockSpec((2, A_pad), lambda b: (0, 0)),
            pl.BlockSpec((None, M_pad, 8), lambda b: (b, 0, 0)),
            pl.BlockSpec((None, 8, M_pad), lambda b: (b, 0, 0)),
        ],
        out_specs=[
            pl.BlockSpec((None, 8, A_pad), lambda b: (b, 0, 0)),
            pl.BlockSpec((None, 4, A_pad), lambda b: (b, 0, 0)),
            pl.BlockSpec((None, C, A_pad), lambda b: (b, 0, 0)),
        ],
        compiler_params=pltpu.CompilerParams(
            dimension_semantics=("parallel",),        # batch items independent
            vmem_limit_bytes=48 * 1024 * 1024,        # fits v7x 64 MiB with headroom
        ),
    )(pd_scores_f, pd_bT, ancT, gt_meta, gt_metaT)

    # strip anchor padding and restore the PyTorch output layout
    target_labels = packed[:, 0, :A]                          # (bs, A) int32
    fg_mask = packed[:, 1, :A] > 0                            # (bs, A) bool
    target_gt_idx = packed[:, 2, :A]                          # (bs, A) int32
    target_bboxes = jnp.transpose(bbT[:, :, :A], (0, 2, 1))   # (bs, A, 4)
    target_scores = jnp.transpose(scT[:, :, :A], (0, 2, 1))   # (bs, A, C)
    return target_labels, target_bboxes, target_scores, fg_mask, target_gt_idx


if __name__ == "__main__":
    # small shapes; A=224 and M=6 deliberately exercise the lane/sublane padding
    bs, H, W, C, M, topk = 2, 16, 14, 16, 6, 10
    A = H * W

    key = jax.random.PRNGKey(0)
    k1, k2, k3, k4, k5, k6 = jax.random.split(key, 6)

    # anchor points (feature-map-scale grid centers)
    gy, gx = jnp.meshgrid(jnp.arange(H), jnp.arange(W), indexing="ij")
    anc_points = jnp.stack([gx.ravel() + 0.5, gy.ravel() + 0.5],
                           axis=-1).astype(jnp.float32)

    # predicted boxes around anchors + sigmoid scores
    ctr = jnp.broadcast_to(anc_points, (bs, A, 2)) + \
        jax.random.uniform(k1, (bs, A, 2), minval=-0.5, maxval=0.5)
    wh = jax.random.uniform(k2, (bs, A, 2), minval=1.0, maxval=4.0)
    pd_bboxes = jnp.concatenate([ctr - wh / 2, ctr + wh / 2], axis=-1).astype(jnp.float32)
    pd_scores = jax.nn.sigmoid(jax.random.normal(k3, (bs, A, C))).astype(jnp.float32)

    # padded ground truth (bg_idx = C used for label padding)
    gt_ctr = jax.random.uniform(k4, (bs, M, 2), minval=3.0, maxval=12.0)
    gt_wh = jax.random.uniform(k5, (bs, M, 2), minval=2.0, maxval=8.0)
    gt_bboxes = jnp.clip(jnp.concatenate([gt_ctr - gt_wh / 2, gt_ctr + gt_wh / 2], -1),
                         0.0, 16.0)
    gt_labels = jax.random.randint(k6, (bs, M), 0, C)
    counts = jnp.array([5, 3])
    valid = jnp.arange(M)[None, :] < counts[:, None]
    gt_labels = jnp.where(valid, gt_labels, C).astype(jnp.int32)
    gt_bboxes = jnp.where(valid[..., None], gt_bboxes, 0.0).astype(jnp.float32)
    mask_gt = valid

    outs = task_aligned_assigner(pd_scores, pd_bboxes, anc_points, gt_labels,
                                 gt_bboxes, mask_gt, topk=topk, num_classes=C)
    jax.block_until_ready(outs)

    t_lab, t_bb, t_sc, fg_mask, t_idx = outs
    assert t_lab.shape == (bs, A) and t_bb.shape == (bs, A, 4)
    assert t_sc.shape == (bs, A, C) and fg_mask.shape == (bs, A) and t_idx.shape == (bs, A)
    print("KERNEL_OK")
</pallas_src>

<mosaic_0001>
module attributes {stable_mosaic.version = 11 : i64} {
  func.func @_assigner_kernel(%arg0: i32, %arg1: memref<1x256x16xf32, #tpu.memory_space<vmem>>, %arg2: memref<1x4x256xf32, #tpu.memory_space<vmem>>, %arg3: memref<2x256xf32, #tpu.memory_space<vmem>>, %arg4: memref<1x8x8xf32, #tpu.memory_space<vmem>>, %arg5: memref<1x8x8xf32, #tpu.memory_space<vmem>>, %arg6: memref<1x8x256xi32, #tpu.memory_space<vmem>>, %arg7: memref<1x4x256xf32, #tpu.memory_space<vmem>>, %arg8: memref<1x16x256xf32, #tpu.memory_space<vmem>>) attributes {dimension_semantics = [#tpu.dimension_semantics<parallel>], iteration_bounds = array<i64: 2>, scalar_prefetch = 0 : i64, scratch_operands = 0 : i64, tpu.core_type = #tpu.core_type<tc>, window_params = [{transform_indices = @transform_0, window_bounds = array<i64: 1, 256, 16>}, {transform_indices = @transform_1, window_bounds = array<i64: 1, 4, 256>}, {pipeline_mode = #tpu.pipeline_mode<synchronous>, transform_indices = @transform_2, window_bounds = array<i64: 2, 256>}, {transform_indices = @transform_3, window_bounds = array<i64: 1, 8, 8>}, {transform_indices = @transform_4, window_bounds = array<i64: 1, 8, 8>}, {transform_indices = @transform_5, window_bounds = array<i64: 1, 8, 256>}, {transform_indices = @transform_6, window_bounds = array<i64: 1, 4, 256>}, {transform_indices = @transform_7, window_bounds = array<i64: 1, 16, 256>}]} {
    %c0 = arith.constant 0 : index
    %c0_0 = arith.constant 0 : index
    %c0_1 = arith.constant 0 : index
    %0 = vector.load %arg1[%c0, %c0_0, %c0_1] : memref<1x256x16xf32, #tpu.memory_space<vmem>>, vector<1x256x16xf32>
    %1 = vector.shape_cast %0 : vector<1x256x16xf32> to vector<256x16xf32>
    %c0_2 = arith.constant 0 : index
    %c0_3 = arith.constant 0 : index
    %c0_4 = arith.constant 0 : index
    %2 = vector.load %arg2[%c0_2, %c0_3, %c0_4] : memref<1x4x256xf32, #tpu.memory_space<vmem>>, vector<1x4x256xf32>
    %3 = vector.shape_cast %2 : vector<1x4x256xf32> to vector<4x256xf32>
    %c0_5 = arith.constant 0 : index
    %c0_6 = arith.constant 0 : index
    %4 = vector.load %arg3[%c0_5, %c0_6] : memref<2x256xf32, #tpu.memory_space<vmem>>, vector<2x256xf32>
    %c0_7 = arith.constant 0 : index
    %c0_8 = arith.constant 0 : index
    %c0_9 = arith.constant 0 : index
    %5 = vector.load %arg4[%c0_7, %c0_8, %c0_9] : memref<1x8x8xf32, #tpu.memory_space<vmem>>, vector<1x8x8xf32>
    %6 = vector.shape_cast %5 : vector<1x8x8xf32> to vector<8x8xf32>
    %c0_10 = arith.constant 0 : index
    %c0_11 = arith.constant 0 : index
    %c0_12 = arith.constant 0 : index
    %7 = vector.load %arg5[%c0_10, %c0_11, %c0_12] : memref<1x8x8xf32, #tpu.memory_space<vmem>>, vector<1x8x8xf32>
    %8 = vector.shape_cast %7 : vector<1x8x8xf32> to vector<8x8xf32>
    %9 = vector.extract_strided_slice %3 {offsets = [0, 0], sizes = [1, 256], strides = [1, 1]} : vector<4x256xf32> to vector<1x256xf32>
    %10 = vector.extract_strided_slice %3 {offsets = [1, 0], sizes = [1, 256], strides = [1, 1]} : vector<4x256xf32> to vector<1x256xf32>
    %11 = vector.extract_strided_slice %3 {offsets = [2, 0], sizes = [1, 256], strides = [1, 1]} : vector<4x256xf32> to vector<1x256xf32>
    %12 = vector.extract_strided_slice %3 {offsets = [3, 0], sizes = [1, 256], strides = [1, 1]} : vector<4x256xf32> to vector<1x256xf32>
    %13 = vector.extract_strided_slice %6 {offsets = [0, 0], sizes = [8, 1], strides = [1, 1]} : vector<8x8xf32> to vector<8x1xf32>
    %14 = vector.extract_strided_slice %6 {offsets = [0, 1], sizes = [8, 1], strides = [1, 1]} : vector<8x8xf32> to vector<8x1xf32>
    %15 = vector.extract_strided_slice %6 {offsets = [0, 2], sizes = [8, 1], strides = [1, 1]} : vector<8x8xf32> to vector<8x1xf32>
    %16 = vector.extract_strided_slice %6 {offsets = [0, 3], sizes = [8, 1], strides = [1, 1]} : vector<8x8xf32> to vector<8x1xf32>
    %17 = vector.extract_strided_slice %6 {offsets = [0, 4], sizes = [8, 1], strides = [1, 1]} : vector<8x8xf32> to vector<8x1xf32>
    %18 = vector.extract_strided_slice %6 {offsets = [0, 5], sizes = [8, 1], strides = [1, 1]} : vector<8x8xf32> to vector<8x1xf32>
    %19 = vector.broadcast %11 : vector<1x256xf32> to vector<8x256xf32>
    %20 = vector.broadcast %15 : vector<8x1xf32> to vector<8x256xf32>
    %21 = arith.minimumf %19, %20 : vector<8x256xf32>
    %22 = vector.broadcast %9 : vector<1x256xf32> to vector<8x256xf32>
    %23 = vector.broadcast %13 : vector<8x1xf32> to vector<8x256xf32>
    %24 = arith.maximumf %22, %23 : vector<8x256xf32>
    %25 = arith.subf %21, %24 : vector<8x256xf32>
    %cst = arith.constant 0.000000e+00 : f32
    %26 = vector.broadcast %cst : f32 to vector<8x256xf32>
    %27 = arith.maximumf %25, %26 : vector<8x256xf32>
    %28 = vector.broadcast %12 : vector<1x256xf32> to vector<8x256xf32>
    %29 = vector.broadcast %16 : vector<8x1xf32> to vector<8x256xf32>
    %30 = arith.minimumf %28, %29 : vector<8x256xf32>
    %31 = vector.broadcast %10 : vector<1x256xf32> to vector<8x256xf32>
    %32 = vector.broadcast %14 : vector<8x1xf32> to vector<8x256xf32>
    %33 = arith.maximumf %31, %32 : vector<8x256xf32>
    %34 = arith.subf %30, %33 : vector<8x256xf32>
    %cst_13 = arith.constant 0.000000e+00 : f32
    %35 = vector.broadcast %cst_13 : f32 to vector<8x256xf32>
    %36 = arith.maximumf %34, %35 : vector<8x256xf32>
    %37 = arith.mulf %27, %36 : vector<8x256xf32>
    %38 = arith.subf %11, %9 : vector<1x256xf32>
    %39 = arith.subf %12, %10 : vector<1x256xf32>
    %40 = arith.mulf %38, %39 : vector<1x256xf32>
    %41 = arith.subf %15, %13 : vector<8x1xf32>
    %42 = arith.subf %16, %14 : vector<8x1xf32>
    %43 = arith.mulf %41, %42 : vector<8x1xf32>
    %44 = vector.broadcast %40 : vector<1x256xf32> to vector<8x256xf32>
    %45 = vector.broadcast %43 : vector<8x1xf32> to vector<8x256xf32>
    %46 = arith.addf %44, %45 : vector<8x256xf32>
    %47 = arith.subf %46, %37 : vector<8x256xf32>
    %cst_14 = arith.constant 1.000000e-07 : f32
    %48 = vector.broadcast %cst_14 : f32 to vector<8x256xf32>
    %49 = arith.addf %47, %48 : vector<8x256xf32>
    %50 = arith.divf %37, %49 : vector<8x256xf32>
    %51 = vector.extract_strided_slice %4 {offsets = [0, 0], sizes = [1, 256], strides = [1, 1]} : vector<2x256xf32> to vector<1x256xf32>
    %52 = vector.extract_strided_slice %4 {offsets = [1, 0], sizes = [1, 256], strides = [1, 1]} : vector<2x256xf32> to vector<1x256xf32>
    %53 = vector.broadcast %51 : vector<1x256xf32> to vector<8x256xf32>
    %54 = vector.broadcast %13 : vector<8x1xf32> to vector<8x256xf32>
    %55 = arith.subf %53, %54 : vector<8x256xf32>
    %56 = vector.broadcast %52 : vector<1x256xf32> to vector<8x256xf32>
    %57 = vector.broadcast %14 : vector<8x1xf32> to vector<8x256xf32>
    %58 = arith.subf %56, %57 : vector<8x256xf32>
    %59 = arith.minimumf %55, %58 : vector<8x256xf32>
    %60 = vector.broadcast %15 : vector<8x1xf32> to vector<8x256xf32>
    %61 = vector.broadcast %51 : vector<1x256xf32> to vector<8x256xf32>
    %62 = arith.subf %60, %61 : vector<8x256xf32>
    %63 = vector.broadcast %16 : vector<8x1xf32> to vector<8x256xf32>
    %64 = vector.broadcast %52 : vector<1x256xf32> to vector<8x256xf32>
    %65 = arith.subf %63, %64 : vector<8x256xf32>
    %66 = arith.minimumf %62, %65 : vector<8x256xf32>
    %67 = arith.minimumf %59, %66 : vector<8x256xf32>
    %cst_15 = arith.constant 9.99999971E-10 : f32
    %68 = vector.broadcast %cst_15 : f32 to vector<8x256xf32>
    %69 = arith.cmpf ogt, %67, %68 : vector<8x256xf32>
    %70 = arith.extui %69 : vector<8x256xi1> to vector<8x256xi32>
    %71 = arith.sitofp %70 : vector<8x256xi32> to vector<8x256xf32>
    %72 = tpu.iota {dimensions = array<i32: 1>} : vector<1x16xi32>
    %cst_16 = arith.constant 0.000000e+00 : f32
    %cst_17 = arith.constant 1.500000e+01 : f32
    %73 = vector.broadcast %cst_16 : f32 to vector<8x1xf32>
    %74 = arith.maximumf %73, %17 : vector<8x1xf32>
    %75 = vector.broadcast %cst_17 : f32 to vector<8x1xf32>
    %76 = arith.minimumf %75, %74 : vector<8x1xf32>
    %cst_18 = arith.constant 5.000000e-01 : f32
    %77 = vector.broadcast %cst_18 : f32 to vector<8x1xf32>
    %78 = arith.addf %76, %77 : vector<8x1xf32>
    %79 = arith.fptosi %78 : vector<8x1xf32> to vector<8x1xi32>
    %80 = vector.broadcast %79 : vector<8x1xi32> to vector<8x16xi32>
    %81 = vector.broadcast %72 : vector<1x16xi32> to vector<8x16xi32>
    %82 = arith.cmpi eq, %80, %81 : vector<8x16xi32>
    %83 = arith.extui %82 : vector<8x16xi1> to vector<8x16xi32>
    %84 = arith.sitofp %83 : vector<8x16xi32> to vector<8x16xf32>
    %cst_19 = arith.constant dense<0.000000e+00> : vector<8x256xf32>
    %85 = tpu.matmul %84, %1, %cst_19 {dimension_numbers = #tpu.dot_dimension_numbers<[1], [1], [0], [0], [0, 0, 1, 0], [], []>, precision = #tpu.contract_precision<fp32>} : vector<8x16xf32>, vector<256x16xf32>, vector<8x256xf32> -> vector<8x256xf32>
    %86 = math.sqrt %85 : vector<8x256xf32>
    %87 = arith.mulf %50, %50 : vector<8x256xf32>
    %88 = arith.mulf %87, %87 : vector<8x256xf32>
    %89 = arith.mulf %87, %88 : vector<8x256xf32>
    %90 = arith.mulf %86, %89 : vector<8x256xf32>
    %91 = arith.mulf %90, %71 : vector<8x256xf32>
    %92 = tpu.iota {dimensions = array<i32: 1>} : vector<1x256xi32>
    %cst_20 = arith.constant 0xFF800000 : f32
    %c0_i32 = arith.constant 0 : i32
    %cst_21 = arith.constant dense<0xFF800000> : vector<8xf32>
    %93 = vector.multi_reduction <maximumf>, %91, %cst_21 [1] : vector<8x256xf32> to vector<8xf32>
    %94 = vector.shape_cast %93 : vector<8xf32> to vector<8x1xf32>
    %95 = vector.broadcast %94 : vector<8x1xf32> to vector<8x256xf32>
    %96 = arith.cmpf oeq, %91, %95 : vector<8x256xf32>
    %c256_i32 = arith.constant 256 : i32
    %97 = vector.shape_cast %92 : vector<1x256xi32> to vector<1x256xi32>
    %98 = vector.broadcast %97 : vector<1x256xi32> to vector<8x256xi32>
    %99 = vector.broadcast %c256_i32 : i32 to vector<8x256xi32>
    %100 = arith.select %96, %98, %99 : vector<8x256xi1>, vector<8x256xi32>
    %cst_22 = arith.constant dense<2147483647> : vector<8xi32>
    %101 = vector.multi_reduction <minsi>, %100, %cst_22 [1] : vector<8x256xi32> to vector<8xi32>
    %102 = vector.shape_cast %101 : vector<8xi32> to vector<8x1xi32>
    %103 = vector.broadcast %92 : vector<1x256xi32> to vector<8x256xi32>
    %104 = vector.broadcast %102 : vector<8x1xi32> to vector<8x256xi32>
    %105 = arith.cmpi eq, %103, %104 : vector<8x256xi32>
    %106 = vector.broadcast %cst_20 : f32 to vector<8x256xf32>
    %107 = arith.select %105, %106, %91 : vector<8x256xi1>, vector<8x256xf32>
    %c1_i32 = arith.constant 1 : i32
    %cst_23 = arith.constant dense<0xFF800000> : vector<8xf32>
    %108 = vector.multi_reduction <maximumf>, %107, %cst_23 [1] : vector<8x256xf32> to vector<8xf32>
    %109 = vector.shape_cast %108 : vector<8xf32> to vector<8x1xf32>
    %110 = vector.broadcast %109 : vector<8x1xf32> to vector<8x256xf32>
    %111 = arith.cmpf oeq, %107, %110 : vector<8x256xf32>
    %c256_i32_24 = arith.constant 256 : i32
    %112 = vector.shape_cast %92 : vector<1x256xi32> to vector<1x256xi32>
    %113 = vector.broadcast %112 : vector<1x256xi32> to vector<8x256xi32>
    %114 = vector.broadcast %c256_i32_24 : i32 to vector<8x256xi32>
    %115 = arith.select %111, %113, %114 : vector<8x256xi1>, vector<8x256xi32>
    %cst_25 = arith.constant dense<2147483647> : vector<8xi32>
    %116 = vector.multi_reduction <minsi>, %115, %cst_25 [1] : vector<8x256xi32> to vector<8xi32>
    %117 = vector.shape_cast %116 : vector<8xi32> to vector<8x1xi32>
    %118 = vector.broadcast %92 : vector<1x256xi32> to vector<8x256xi32>
    %119 = vector.broadcast %117 : vector<8x1xi32> to vector<8x256xi32>
    %120 = arith.cmpi eq, %118, %119 : vector<8x256xi32>
    %121 = vector.broadcast %cst_20 : f32 to vector<8x256xf32>
    %122 = arith.select %120, %121, %107 : vector<8x256xi1>, vector<8x256xf32>
    %c2_i32 = arith.constant 2 : i32
    %cst_26 = arith.constant dense<0xFF800000> : vector<8xf32>
    %123 = vector.multi_reduction <maximumf>, %122, %cst_26 [1] : vector<8x256xf32> to vector<8xf32>
    %124 = vector.shape_cast %123 : vector<8xf32> to vector<8x1xf32>
    %125 = vector.broadcast %124 : vector<8x1xf32> to vector<8x256xf32>
    %126 = arith.cmpf oeq, %122, %125 : vector<8x256xf32>
    %c256_i32_27 = arith.constant 256 : i32
    %127 = vector.shape_cast %92 : vector<1x256xi32> to vector<1x256xi32>
    %128 = vector.broadcast %127 : vector<1x256xi32> to vector<8x256xi32>
    %129 = vector.broadcast %c256_i32_27 : i32 to vector<8x256xi32>
    %130 = arith.select %126, %128, %129 : vector<8x256xi1>, vector<8x256xi32>
    %cst_28 = arith.constant dense<2147483647> : vector<8xi32>
    %131 = vector.multi_reduction <minsi>, %130, %cst_28 [1] : vector<8x256xi32> to vector<8xi32>
    %132 = vector.shape_cast %131 : vector<8xi32> to vector<8x1xi32>
    %133 = vector.broadcast %92 : vector<1x256xi32> to vector<8x256xi32>
    %134 = vector.broadcast %132 : vector<8x1xi32> to vector<8x256xi32>
    %135 = arith.cmpi eq, %133, %134 : vector<8x256xi32>
    %136 = vector.broadcast %cst_20 : f32 to vector<8x256xf32>
    %137 = arith.select %135, %136, %122 : vector<8x256xi1>, vector<8x256xf32>
    %c3_i32 = arith.constant 3 : i32
    %cst_29 = arith.constant dense<0xFF800000> : vector<8xf32>
    %138 = vector.multi_reduction <maximumf>, %137, %cst_29 [1] : vector<8x256xf32> to vector<8xf32>
    %139 = vector.shape_cast %138 : vector<8xf32> to vector<8x1xf32>
    %140 = vector.broadcast %139 : vector<8x1xf32> to vector<8x256xf32>
    %141 = arith.cmpf oeq, %137, %140 : vector<8x256xf32>
    %c256_i32_30 = arith.constant 256 : i32
    %142 = vector.shape_cast %92 : vector<1x256xi32> to vector<1x256xi32>
    %143 = vector.broadcast %142 : vector<1x256xi32> to vector<8x256xi32>
    %144 = vector.broadcast %c256_i32_30 : i32 to vector<8x256xi32>
    %145 = arith.select %141, %143, %144 : vector<8x256xi1>, vector<8x256xi32>
    %cst_31 = arith.constant dense<2147483647> : vector<8xi32>
    %146 = vector.multi_reduction <minsi>, %145, %cst_31 [1] : vector<8x256xi32> to vector<8xi32>
    %147 = vector.shape_cast %146 : vector<8xi32> to vector<8x1xi32>
    %148 = vector.broadcast %92 : vector<1x256xi32> to vector<8x256xi32>
    %149 = vector.broadcast %147 : vector<8x1xi32> to vector<8x256xi32>
    %150 = arith.cmpi eq, %148, %149 : vector<8x256xi32>
    %151 = vector.broadcast %cst_20 : f32 to vector<8x256xf32>
    %152 = arith.select %150, %151, %137 : vector<8x256xi1>, vector<8x256xf32>
    %c4_i32 = arith.constant 4 : i32
    %cst_32 = arith.constant dense<0xFF800000> : vector<8xf32>
    %153 = vector.multi_reduction <maximumf>, %152, %cst_32 [1] : vector<8x256xf32> to vector<8xf32>
    %154 = vector.shape_cast %153 : vector<8xf32> to vector<8x1xf32>
    %155 = vector.broadcast %154 : vector<8x1xf32> to vector<8x256xf32>
    %156 = arith.cmpf oeq, %152, %155 : vector<8x256xf32>
    %c256_i32_33 = arith.constant 256 : i32
    %157 = vector.shape_cast %92 : vector<1x256xi32> to vector<1x256xi32>
    %158 = vector.broadcast %157 : vector<1x256xi32> to vector<8x256xi32>
    %159 = vector.broadcast %c256_i32_33 : i32 to vector<8x256xi32>
    %160 = arith.select %156, %158, %159 : vector<8x256xi1>, vector<8x256xi32>
    %cst_34 = arith.constant dense<2147483647> : vector<8xi32>
    %161 = vector.multi_reduction <minsi>, %160, %cst_34 [1] : vector<8x256xi32> to vector<8xi32>
    %162 = vector.shape_cast %161 : vector<8xi32> to vector<8x1xi32>
    %163 = vector.broadcast %92 : vector<1x256xi32> to vector<8x256xi32>
    %164 = vector.broadcast %162 : vector<8x1xi32> to vector<8x256xi32>
    %165 = arith.cmpi eq, %163, %164 : vector<8x256xi32>
    %166 = vector.broadcast %cst_20 : f32 to vector<8x256xf32>
    %167 = arith.select %165, %166, %152 : vector<8x256xi1>, vector<8x256xf32>
    %c5_i32 = arith.constant 5 : i32
    %cst_35 = arith.constant dense<0xFF800000> : vector<8xf32>
    %168 = vector.multi_reduction <maximumf>, %167, %cst_35 [1] : vector<8x256xf32> to vector<8xf32>
    %169 = vector.shape_cast %168 : vector<8xf32> to vector<8x1xf32>
    %170 = vector.broadcast %169 : vector<8x1xf32> to vector<8x256xf32>
    %171 = arith.cmpf oeq, %167, %170 : vector<8x256xf32>
    %c256_i32_36 = arith.constant 256 : i32
    %172 = vector.shape_cast %92 : vector<1x256xi32> to vector<1x256xi32>
    %173 = vector.broadcast %172 : vector<1x256xi32> to vector<8x256xi32>
    %174 = vector.broadcast %c256_i32_36 : i32 to vector<8x256xi32>
    %175 = arith.select %171, %173, %174 : vector<8x256xi1>, vector<8x256xi32>
    %cst_37 = arith.constant dense<2147483647> : vector<8xi32>
    %176 = vector.multi_reduction <minsi>, %175, %cst_37 [1] : vector<8x256xi32> to vector<8xi32>
    %177 = vector.shape_cast %176 : vector<8xi32> to vector<8x1xi32>
    %178 = vector.broadcast %92 : vector<1x256xi32> to vector<8x256xi32>
    %179 = vector.broadcast %177 : vector<8x1xi32> to vector<8x256xi32>
    %180 = arith.cmpi eq, %178, %179 : vector<8x256xi32>
    %181 = vector.broadcast %cst_20 : f32 to vector<8x256xf32>
    %182 = arith.select %180, %181, %167 : vector<8x256xi1>, vector<8x256xf32>
    %c6_i32 = arith.constant 6 : i32
    %cst_38 = arith.constant dense<0xFF800000> : vector<8xf32>
    %183 = vector.multi_reduction <maximumf>, %182, %cst_38 [1] : vector<8x256xf32> to vector<8xf32>
    %184 = vector.shape_cast %183 : vector<8xf32> to vector<8x1xf32>
    %185 = vector.broadcast %184 : vector<8x1xf32> to vector<8x256xf32>
    %186 = arith.cmpf oeq, %182, %185 : vector<8x256xf32>
    %c256_i32_39 = arith.constant 256 : i32
    %187 = vector.shape_cast %92 : vector<1x256xi32> to vector<1x256xi32>
    %188 = vector.broadcast %187 : vector<1x256xi32> to vector<8x256xi32>
    %189 = vector.broadcast %c256_i32_39 : i32 to vector<8x256xi32>
    %190 = arith.select %186, %188, %189 : vector<8x256xi1>, vector<8x256xi32>
    %cst_40 = arith.constant dense<2147483647> : vector<8xi32>
    %191 = vector.multi_reduction <minsi>, %190, %cst_40 [1] : vector<8x256xi32> to vector<8xi32>
    %192 = vector.shape_cast %191 : vector<8xi32> to vector<8x1xi32>
    %193 = vector.broadcast %92 : vector<1x256xi32> to vector<8x256xi32>
    %194 = vector.broadcast %192 : vector<8x1xi32> to vector<8x256xi32>
    %195 = arith.cmpi eq, %193, %194 : vector<8x256xi32>
    %196 = vector.broadcast %cst_20 : f32 to vector<8x256xf32>
    %197 = arith.select %195, %196, %182 : vector<8x256xi1>, vector<8x256xf32>
    %c7_i32 = arith.constant 7 : i32
    %cst_41 = arith.constant dense<0xFF800000> : vector<8xf32>
    %198 = vector.multi_reduction <maximumf>, %197, %cst_41 [1] : vector<8x256xf32> to vector<8xf32>
    %199 = vector.shape_cast %198 : vector<8xf32> to vector<8x1xf32>
    %200 = vector.broadcast %199 : vector<8x1xf32> to vector<8x256xf32>
    %201 = arith.cmpf oeq, %197, %200 : vector<8x256xf32>
    %c256_i32_42 = arith.constant 256 : i32
    %202 = vector.shape_cast %92 : vector<1x256xi32> to vector<1x256xi32>
    %203 = vector.broadcast %202 : vector<1x256xi32> to vector<8x256xi32>
    %204 = vector.broadcast %c256_i32_42 : i32 to vector<8x256xi32>
    %205 = arith.select %201, %203, %204 : vector<8x256xi1>, vector<8x256xi32>
    %cst_43 = arith.constant dense<2147483647> : vector<8xi32>
    %206 = vector.multi_reduction <minsi>, %205, %cst_43 [1] : vector<8x256xi32> to vector<8xi32>
    %207 = vector.shape_cast %206 : vector<8xi32> to vector<8x1xi32>
    %208 = vector.broadcast %92 : vector<1x256xi32> to vector<8x256xi32>
    %209 = vector.broadcast %207 : vector<8x1xi32> to vector<8x256xi32>
    %210 = arith.cmpi eq, %208, %209 : vector<8x256xi32>
    %211 = vector.broadcast %cst_20 : f32 to vector<8x256xf32>
    %212 = arith.select %210, %211, %197 : vector<8x256xi1>, vector<8x256xf32>
    %c8_i32 = arith.constant 8 : i32
    %cst_44 = arith.constant dense<0xFF800000> : vector<8xf32>
    %213 = vector.multi_reduction <maximumf>, %212, %cst_44 [1] : vector<8x256xf32> to vector<8xf32>
    %214 = vector.shape_cast %213 : vector<8xf32> to vector<8x1xf32>
    %215 = vector.broadcast %214 : vector<8x1xf32> to vector<8x256xf32>
    %216 = arith.cmpf oeq, %212, %215 : vector<8x256xf32>
    %c256_i32_45 = arith.constant 256 : i32
    %217 = vector.shape_cast %92 : vector<1x256xi32> to vector<1x256xi32>
    %218 = vector.broadcast %217 : vector<1x256xi32> to vector<8x256xi32>
    %219 = vector.broadcast %c256_i32_45 : i32 to vector<8x256xi32>
    %220 = arith.select %216, %218, %219 : vector<8x256xi1>, vector<8x256xi32>
    %cst_46 = arith.constant dense<2147483647> : vector<8xi32>
    %221 = vector.multi_reduction <minsi>, %220, %cst_46 [1] : vector<8x256xi32> to vector<8xi32>
    %222 = vector.shape_cast %221 : vector<8xi32> to vector<8x1xi32>
    %223 = vector.broadcast %92 : vector<1x256xi32> to vector<8x256xi32>
    %224 = vector.broadcast %222 : vector<8x1xi32> to vector<8x256xi32>
    %225 = arith.cmpi eq, %223, %224 : vector<8x256xi32>
    %226 = vector.broadcast %cst_20 : f32 to vector<8x256xf32>
    %227 = arith.select %225, %226, %212 : vector<8x256xi1>, vector<8x256xf32>
    %c9_i32 = arith.constant 9 : i32
    %cst_47 = arith.constant dense<0xFF800000> : vector<8xf32>
    %228 = vector.multi_reduction <maximumf>, %227, %cst_47 [1] : vector<8x256xf32> to vector<8xf32>
    %229 = vector.shape_cast %228 : vector<8xf32> to vector<8x1xf32>
    %230 = vector.broadcast %229 : vector<8x1xf32> to vector<8x256xf32>
    %231 = arith.cmpf oeq, %227, %230 : vector<8x256xf32>
    %c256_i32_48 = arith.constant 256 : i32
    %232 = vector.shape_cast %92 : vector<1x256xi32> to vector<1x256xi32>
    %233 = vector.broadcast %232 : vector<1x256xi32> to vector<8x256xi32>
    %234 = vector.broadcast %c256_i32_48 : i32 to vector<8x256xi32>
    %235 = arith.select %231, %233, %234 : vector<8x256xi1>, vector<8x256xi32>
    %cst_49 = arith.constant dense<2147483647> : vector<8xi32>
    %236 = vector.multi_reduction <minsi>, %235, %cst_49 [1] : vector<8x256xi32> to vector<8xi32>
    %237 = vector.shape_cast %236 : vector<8xi32> to vector<8x1xi32>
    %238 = vector.broadcast %92 : vector<1x256xi32> to vector<8x256xi32>
    %239 = vector.broadcast %237 : vector<8x1xi32> to vector<8x256xi32>
    %240 = arith.cmpi eq, %238, %239 : vector<8x256xi32>
    %241 = vector.broadcast %cst_20 : f32 to vector<8x256xf32>
    %242 = arith.select %240, %241, %227 : vector<8x256xi1>, vector<8x256xf32>
    %243 = arith.cmpf olt, %242, %91 : vector<8x256xf32>
    %244 = arith.extui %243 : vector<8x256xi1> to vector<8x256xi32>
    %245 = arith.sitofp %244 : vector<8x256xi32> to vector<8x256xf32>
    %246 = arith.mulf %245, %71 : vector<8x256xf32>
    %247 = vector.broadcast %18 : vector<8x1xf32> to vector<8x256xf32>
    %248 = arith.mulf %246, %247 : vector<8x256xf32>
    %cst_50 = arith.constant dense<0.000000e+00> : vector<256xf32>
    %249 = vector.multi_reduction <add>, %248, %cst_50 [0] : vector<8x256xf32> to vector<256xf32>
    %250 = vector.shape_cast %249 : vector<256xf32> to vector<1x256xf32>
    %cst_51 = arith.constant 1.000000e+00 : f32
    %251 = vector.broadcast %cst_51 : f32 to vector<1x256xf32>
    %252 = arith.cmpf ogt, %250, %251 : vector<1x256xf32>
    %253 = tpu.iota {dimensions = array<i32: 0>} : vector<8x1xi32>
    %cst_52 = arith.constant dense<0xFF800000> : vector<256xf32>
    %254 = vector.multi_reduction <maximumf>, %50, %cst_52 [0] : vector<8x256xf32> to vector<256xf32>
    %255 = vector.shape_cast %254 : vector<256xf32> to vector<1x256xf32>
    %256 = vector.broadcast %255 : vector<1x256xf32> to vector<8x256xf32>
    %257 = arith.cmpf oeq, %50, %256 : vector<8x256xf32>
    %c8_i32_53 = arith.constant 8 : i32
    %258 = vector.shape_cast %253 : vector<8x1xi32> to vector<8x1xi32>
    %259 = vector.broadcast %258 : vector<8x1xi32> to vector<8x256xi32>
    %260 = vector.broadcast %c8_i32_53 : i32 to vector<8x256xi32>
    %261 = arith.select %257, %259, %260 : vector<8x256xi1>, vector<8x256xi32>
    %cst_54 = arith.constant dense<2147483647> : vector<256xi32>
    %262 = vector.multi_reduction <minsi>, %261, %cst_54 [0] : vector<8x256xi32> to vector<256xi32>
    %263 = vector.shape_cast %262 : vector<256xi32> to vector<1x256xi32>
    %cst_55 = arith.constant 5.000000e-01 : f32
    %264 = vector.broadcast %cst_55 : f32 to vector<8x256xf32>
    %265 = arith.cmpf ogt, %248, %264 : vector<8x256xf32>
    %c8_i32_56 = arith.constant 8 : i32
    %266 = vector.shape_cast %253 : vector<8x1xi32> to vector<8x1xi32>
    %267 = vector.broadcast %266 : vector<8x1xi32> to vector<8x256xi32>
    %268 = vector.broadcast %c8_i32_56 : i32 to vector<8x256xi32>
    %269 = arith.select %265, %267, %268 : vector<8x256xi1>, vector<8x256xi32>
    %cst_57 = arith.constant dense<2147483647> : vector<256xi32>
    %270 = vector.multi_reduction <minsi>, %269, %cst_57 [0] : vector<8x256xi32> to vector<256xi32>
    %271 = vector.shape_cast %270 : vector<256xi32> to vector<1x256xi32>
    %c8_i32_58 = arith.constant 8 : i32
    %272 = vector.broadcast %c8_i32_58 : i32 to vector<1x256xi32>
    %273 = arith.cmpi eq, %271, %272 : vector<1x256xi32>
    %c0_i32_59 = arith.constant 0 : i32
    %274 = vector.broadcast %c0_i32_59 : i32 to vector<1x256xi32>
    %275 = arith.select %273, %274, %271 : vector<1x256xi1>, vector<1x256xi32>
    %276 = arith.select %252, %263, %275 : vector<1x256xi1>, vector<1x256xi32>
    %cst_60 = arith.constant 5.000000e-01 : f32
    %277 = vector.broadcast %cst_60 : f32 to vector<1x256xf32>
    %278 = arith.cmpf olt, %250, %277 : vector<1x256xf32>
    %cst_61 = arith.constant dense<true> : vector<1x256xi1>
    %279 = arith.xori %278, %cst_61 : vector<1x256xi1>
    %280 = arith.extui %279 : vector<1x256xi1> to vector<1x256xi32>
    %281 = vector.broadcast %253 : vector<8x1xi32> to vector<8x256xi32>
    %282 = vector.broadcast %276 : vector<1x256xi32> to vector<8x256xi32>
    %283 = arith.cmpi eq, %281, %282 : vector<8x256xi32>
    %284 = arith.extui %283 : vector<8x256xi1> to vector<8x256xi32>
    %285 = arith.sitofp %284 : vector<8x256xi32> to vector<8x256xf32>
    %286 = arith.mulf %90, %248 : vector<8x256xf32>
    %cst_62 = arith.constant 0.000000e+00 : f32
    %287 = vector.broadcast %cst_62 : f32 to vector<8x256xf32>
    %288 = arith.select %283, %286, %287 : vector<8x256xi1>, vector<8x256xf32>
    %cst_63 = arith.constant dense<0.000000e+00> : vector<256xf32>
    %289 = vector.multi_reduction <add>, %288, %cst_63 [0] : vector<8x256xf32> to vector<256xf32>
    %290 = vector.shape_cast %289 : vector<256xf32> to vector<1x256xf32>
    %cst_64 = arith.constant dense<0.000000e+00> : vector<8x256xf32>
    %291 = tpu.matmul %8, %285, %cst_64 {dimension_numbers = #tpu.dot_dimension_numbers<[1], [0], [0], [1], [0, 0, 1, 1], [], []>, precision = #tpu.contract_precision<fp32>} : vector<8x8xf32>, vector<8x256xf32>, vector<8x256xf32> -> vector<8x256xf32>
    %292 = vector.extract_strided_slice %291 {offsets = [4, 0], sizes = [1, 256], strides = [1, 1]} : vector<8x256xf32> to vector<1x256xf32>
    %cst_65 = arith.constant 1.600000e+01 : f32
    %293 = vector.broadcast %cst_65 : f32 to vector<1x256xf32>
    %294 = arith.select %278, %293, %292 : vector<1x256xi1>, vector<1x256xf32>
    %cst_66 = arith.constant 5.000000e-01 : f32
    %295 = vector.broadcast %cst_66 : f32 to vector<1x256xf32>
    %296 = arith.addf %294, %295 : vector<1x256xf32>
    %297 = arith.fptosi %296 : vector<1x256xf32> to vector<1x256xi32>
    %298 = vector.extract_strided_slice %291 {offsets = [0, 0], sizes = [4, 256], strides = [1, 1]} : vector<8x256xf32> to vector<4x256xf32>
    %cst_67 = arith.constant 0.000000e+00 : f32
    %299 = vector.shape_cast %278 : vector<1x256xi1> to vector<1x256xi1>
    %300 = vector.broadcast %299 : vector<1x256xi1> to vector<4x256xi1>
    %301 = vector.broadcast %cst_67 : f32 to vector<4x256xf32>
    %302 = arith.select %300, %301, %298 : vector<4x256xi1>, vector<4x256xf32>
    %c0_68 = arith.constant 0 : index
    %c0_69 = arith.constant 0 : index
    %c0_70 = arith.constant 0 : index
    %303 = vector.load %arg7[%c0_68, %c0_69, %c0_70] : memref<1x4x256xf32, #tpu.memory_space<vmem>>, vector<1x4x256xf32>
    %304 = vector.shape_cast %303 : vector<1x4x256xf32> to vector<4x256xf32>
    %305 = vector.shape_cast %302 : vector<4x256xf32> to vector<1x4x256xf32>
    tpu.vector_store %arg7[%c0_68, %c0_69, %c0_70], %305 {strides = array<i32>} : memref<1x4x256xf32, #tpu.memory_space<vmem>>, vector<1x4x256xf32>,
    %c0_i32_71 = arith.constant 0 : i32
    %c15_i32 = arith.constant 15 : i32
    %306 = vector.broadcast %c0_i32_71 : i32 to vector<1x256xi32>
    %307 = arith.maxsi %306, %297 : vector<1x256xi32>
    %308 = vector.broadcast %c15_i32 : i32 to vector<1x256xi32>
    %309 = arith.minsi %308, %307 : vector<1x256xi32>
    %310 = tpu.iota {dimensions = array<i32: 0>} : vector<16x1xi32>
    %311 = vector.broadcast %310 : vector<16x1xi32> to vector<16x256xi32>
    %312 = vector.broadcast %309 : vector<1x256xi32> to vector<16x256xi32>
    %313 = arith.cmpi eq, %311, %312 : vector<16x256xi32>
    %cst_72 = arith.constant dense<true> : vector<1x256xi1>
    %314 = arith.xori %278, %cst_72 : vector<1x256xi1>
    %315 = vector.broadcast %314 : vector<1x256xi1> to vector<16x256xi1>
    %316 = arith.andi %313, %315 : vector<16x256xi1>
    %cst_73 = arith.constant 0.000000e+00 : f32
    %317 = vector.shape_cast %290 : vector<1x256xf32> to vector<1x256xf32>
    %318 = vector.broadcast %317 : vector<1x256xf32> to vector<16x256xf32>
    %319 = vector.broadcast %cst_73 : f32 to vector<16x256xf32>
    %320 = arith.select %316, %318, %319 : vector<16x256xi1>, vector<16x256xf32>
    %c0_74 = arith.constant 0 : index
    %c0_75 = arith.constant 0 : index
    %c0_76 = arith.constant 0 : index
    %321 = vector.load %arg8[%c0_74, %c0_75, %c0_76] : memref<1x16x256xf32, #tpu.memory_space<vmem>>, vector<1x16x256xf32>
    %322 = vector.shape_cast %321 : vector<1x16x256xf32> to vector<16x256xf32>
    %323 = vector.shape_cast %320 : vector<16x256xf32> to vector<1x16x256xf32>
    tpu.vector_store %arg8[%c0_74, %c0_75, %c0_76], %323 {strides = array<i32>} : memref<1x16x256xf32, #tpu.memory_space<vmem>>, vector<1x16x256xf32>,
    %c0_77 = arith.constant 0 : index
    %c0_78 = arith.constant 0 : index
    %c0_79 = arith.constant 0 : index
    %324 = vector.load %arg6[%c0_77, %c0_78, %c0_79] : memref<1x8x256xi32, #tpu.memory_space<vmem>>, vector<1x1x256xi32>
    %325 = vector.shape_cast %324 : vector<1x1x256xi32> to vector<1x256xi32>
    %326 = vector.shape_cast %297 : vector<1x256xi32> to vector<1x1x256xi32>
    tpu.vector_store %arg6[%c0_77, %c0_78, %c0_79], %326 {strides = array<i32>} : memref<1x8x256xi32, #tpu.memory_space<vmem>>, vector<1x1x256xi32>,
    %c0_80 = arith.constant 0 : index
    %c1 = arith.constant 1 : index
    %c0_81 = arith.constant 0 : index
    %327 = vector.load %arg6[%c0_80, %c1, %c0_81] : memref<1x8x256xi32, #tpu.memory_space<vmem>>, vector<1x1x256xi32>
    %328 = vector.shape_cast %327 : vector<1x1x256xi32> to vector<1x256xi32>
    %329 = vector.shape_cast %280 : vector<1x256xi32> to vector<1x1x256xi32>
    tpu.vector_store %arg6[%c0_80, %c1, %c0_81], %329 {strides = array<i32>} : memref<1x8x256xi32, #tpu.memory_space<vmem>>, vector<1x1x256xi32>,
    %c0_82 = arith.constant 0 : index
    %c2 = arith.constant 2 : index
    %c0_83 = arith.constant 0 : index
    %330 = vector.load %arg6[%c0_82, %c2, %c0_83] : memref<1x8x256xi32, #tpu.memory_space<vmem>>, vector<1x1x256xi32>
    %331 = vector.shape_cast %330 : vector<1x1x256xi32> to vector<1x256xi32>
    %332 = vector.shape_cast %276 : vector<1x256xi32> to vector<1x1x256xi32>
    tpu.vector_store %arg6[%c0_82, %c2, %c0_83], %332 {strides = array<i32>} : memref<1x8x256xi32, #tpu.memory_space<vmem>>, vector<1x1x256xi32>,
    %c0_i32_84 = arith.constant 0 : i32
    %333 = vector.broadcast %c0_i32_84 : i32 to vector<5x256xi32>
    %c0_85 = arith.constant 0 : index
    %c3 = arith.constant 3 : index
    %c0_86 = arith.constant 0 : index
    %334 = vector.load %arg6[%c0_85, %c3, %c0_86] : memref<1x8x256xi32, #tpu.memory_space<vmem>>, vector<1x5x256xi32>
    %335 = vector.shape_cast %334 : vector<1x5x256xi32> to vector<5x256xi32>
    %336 = vector.shape_cast %333 : vector<5x256xi32> to vector<1x5x256xi32>
    tpu.vector_store %arg6[%c0_85, %c3, %c0_86], %336 {strides = array<i32>} : memref<1x8x256xi32, #tpu.memory_space<vmem>>, vector<1x5x256xi32>,
    return
  }
  func.func @transform_0(%arg0: i32) -> (i32, i32, i32) {
    %c0_i32 = arith.constant 0 : i32
    %c0_i32_0 = arith.constant 0 : i32
    %c0_i32_1 = arith.constant 0 : i32
    return %arg0, %c0_i32, %c0_i32_0 : i32, i32, i32
  }
  func.func @transform_1(%arg0: i32) -> (i32, i32, i32) {
    %c0_i32 = arith.constant 0 : i32
    %c0_i32_0 = arith.constant 0 : i32
    %c0_i32_1 = arith.constant 0 : i32
    return %arg0, %c0_i32, %c0_i32_0 : i32, i32, i32
  }
  func.func @transform_2(%arg0: i32) -> (i32, i32) {
    %c0_i32 = arith.constant 0 : i32
    %c0_i32_0 = arith.constant 0 : i32
    %c0_i32_1 = arith.constant 0 : i32
    return %c0_i32, %c0_i32_0 : i32, i32
  }
  func.func @transform_3(%arg0: i32) -> (i32, i32, i32) {
    %c0_i32 = arith.constant 0 : i32
    %c0_i32_0 = arith.constant 0 : i32
    %c0_i32_1 = arith.constant 0 : i32
    return %arg0, %c0_i32, %c0_i32_0 : i32, i32, i32
  }
  func.func @transform_4(%arg0: i32) -> (i32, i32, i32) {
    %c0_i32 = arith.constant 0 : i32
    %c0_i32_0 = arith.constant 0 : i32
    %c0_i32_1 = arith.constant 0 : i32
    return %arg0, %c0_i32, %c0_i32_0 : i32, i32, i32
  }
  func.func @transform_5(%arg0: i32) -> (i32, i32, i32) {
    %c0_i32 = arith.constant 0 : i32
    %c0_i32_0 = arith.constant 0 : i32
    %c0_i32_1 = arith.constant 0 : i32
    return %arg0, %c0_i32, %c0_i32_0 : i32, i32, i32
  }
  func.func @transform_6(%arg0: i32) -> (i32, i32, i32) {
    %c0_i32 = arith.constant 0 : i32
    %c0_i32_0 = arith.constant 0 : i32
    %c0_i32_1 = arith.constant 0 : i32
    return %arg0, %c0_i32, %c0_i32_0 : i32, i32, i32
  }
  func.func @transform_7(%arg0: i32) -> (i32, i32, i32) {
    %c0_i32 = arith.constant 0 : i32
    %c0_i32_0 = arith.constant 0 : i32
    %c0_i32_1 = arith.constant 0 : i32
    return %arg0, %c0_i32, %c0_i32_0 : i32, i32, i32
  }
}

</mosaic_0001>

<llo_original>
// kernel: tpu_custom_call.1
$region0: #{tpu_custom_call.1}
  #allocation0 [shape = 'u32[]', space=smem, size = 0x4, offset = 0x4, fixed_abs, tag = 'smem constant byte address 0x4 - core index']
  #allocation1 [shape = 'u32[144,128]{1,0:T(1,128)}', space=vmem, size = 0x12000, scoped, tag = 'internal scratch']
  %s0 = inlined_call_operand.vmem [shape: f32[2,256,16], index: 0, kind: input, shape index: {}]
  %s1 = inlined_call_operand.vmem [shape: f32[2,4,256], index: 1, kind: input, shape index: {}]
  %s2 = inlined_call_operand.vmem [shape: f32[2,256], index: 2, kind: input, shape index: {}]
  %s3 = inlined_call_operand.vmem [shape: f32[2,8,8], index: 3, kind: input, shape index: {}]
  %s4 = inlined_call_operand.vmem [shape: f32[2,8,8], index: 4, kind: input, shape index: {}]
  %s5 = inlined_call_operand.hbm [shape: s32[2,8,256], index: 5, kind: output, shape index: {0}]
  %s6 = inlined_call_operand.hbm [shape: f32[2,4,256], index: 6, kind: output, shape index: {1}]
  %s7 = inlined_call_operand.hbm [shape: f32[2,16,256], index: 7, kind: output, shape index: {2}]
  %8 = xla_tuple %s5, %s6, %s7
  %s9 = sld [smem:[#allocation0]]
  $region69: #{tpu_custom_call.1} parent=0
    _
  %s11 = ssub.s32 1, %s9
  %s12 = scalar_select 0, %s11, %s9
  $region1: #{tpu_custom_call.1} parent=0
    #allocation2 [shape = 'u8[16384]{0}', space=vmem, size = 0x4000, scoped, tag = 'output window, operand 0']
    #allocation3 [shape = 's32[2]{0}', space=sflag, size = 0x8, scoped, tag = 'scoped memory for tpu_custom_call.1']
    #allocation4 [shape = 'u8[8192]{0}', space=vmem, size = 0x2000, scoped, tag = 'output window, operand 1']
    #allocation5 [shape = 's32[2]{0}', space=sflag, size = 0x8, scoped, tag = 'scoped memory for tpu_custom_call.1']
    #allocation6 [shape = 'u8[32768]{0}', space=vmem, size = 0x8000, scoped, tag = 'output window, operand 2']
    %13 = vsyncpa [#allocation3], 0
    %s14 = scalar_lea.sflag [#allocation3], 1
    %15 = vsyncpa %s14, 0
    %16 = vsyncpa [#allocation5], 0
    %s17 = scalar_lea.sflag [#allocation5], 1
    %18 = vsyncpa %s17, 0
    loop: start=0, step=1, limit=4
    $region2: #{tpu_custom_call.1} parent=1 // loop_pre_header
      _
    $region3: #{tpu_custom_call.1} parent=1 // loop_header
      %s20 = sphi 0, %s24
      %p21 = scmp.ge.s32.totalorder %s20, 4
      %s30 = sphi 0, %s32
      %s33 = sphi 0, %s30
      %s34 = sphi 0, %s33
      %s50 = sphi 0, %s34
      %s56 = sphi 0, %s58
      %s59 = sphi 0, %s56
      %s60 = sphi 0, %s59
      %s76 = sphi 0, %s60
      %s80 = sphi 0, %s80
      %s82 = sphi 0, %s80
      %s83 = sphi 0, %s82
      %s97 = sphi 0, %s83
      %s103 = sphi 0, %s105
      %s106 = sphi 0, %s103
      %s107 = sphi 0, %s106
      %s123 = sphi 0, %s107
      %s129 = sphi 0, %s131
      %s132 = sphi 0, %s129
      %s133 = sphi 0, %s132
      %s149 = sphi 0, %s133
      %s155 = sphi 0, %s157
      %s158 = sphi 0, %s155
      %s159 = sphi 0, %s158
      %s175 = sphi 0, %s159
      %s181 = sphi 0, %s183
      %s184 = sphi 0, %s181
      %s185 = sphi 0, %s184
      %s201 = sphi 0, %s185
      %s207 = sphi 0, %s209
      %s210 = sphi 0, %s207
      %s211 = sphi 0, %s210
      %s227 = sphi 0, %s211
    $region4: #{tpu_custom_call.1} parent=1 // loop_header_branch
      %23 = sbr.rel (%p21) target = $region8
    $region5: #{tpu_custom_call.1} parent=1 // loop_body
      %s25 = ssub.s32 %s20, 1
      %s26 = ssub.s32 %s20, 2
      %s27 = sadd.s32 %s20, 1
      %s28 = ssub.s32 %s20, %s27
      %p29 = scmp.eq.s32.totalorder %s28, 0
      %s31 = sadd.s32 %s30, 1
      %s32 = scalar_select %p29, %s30, %s31
      %p35 = pneg %p29
      %p36 = scmp.eq.s32.totalorder %s20, 1
      %p37 = por %p35, %p36
      %p38 = scmp.ne.s32.totalorder %s30, %s33
      %p39 = scmp.eq.s32.totalorder %s20, 0
      %p40 = por %p38, %p39
      %p41 = scmp.ne.s32.totalorder %s30, %s33
      %p42 = scmp.eq.s32.totalorder %s25, 1
      %p43 = por %p41, %p42
      %p44 = scmp.ne.s32.totalorder %s33, %s34
      %p45 = scmp.eq.s32.totalorder %s25, 0
      %p46 = por %p44, %p45
      %p47 = scmp.ne.s32.totalorder %s33, %s34
      %p48 = scmp.eq.s32.totalorder %s26, 1
      %p49 = por %p47, %p48
      %p51 = scmp.ne.s32.totalorder %s34, %s50
      %p52 = scmp.eq.s32.totalorder %s26, 0
      %p53 = por %p51, %p52
      %s54 = ssub.s32 %s20, %s27
      %p55 = scmp.eq.s32.totalorder %s54, 0
      %s57 = sadd.s32 %s56, 1
      %s58 = scalar_select %p55, %s56, %s57
      %p61 = pneg %p55
      %p62 = scmp.eq.s32.totalorder %s20, 1
      %p63 = por %p61, %p62
      %p64 = scmp.ne.s32.totalorder %s56, %s59
      %p65 = scmp.eq.s32.totalorder %s20, 0
      %p66 = por %p64, %p65
      %p67 = scmp.ne.s32.totalorder %s56, %s59
      %p68 = scmp.eq.s32.totalorder %s25, 1
      %p69 = por %p67, %p68
      %p70 = scmp.ne.s32.totalorder %s59, %s60
      %p71 = scmp.eq.s32.totalorder %s25, 0
      %p72 = por %p70, %p71
      %p73 = scmp.ne.s32.totalorder %s59, %s60
      %p74 = scmp.eq.s32.totalorder %s26, 1
      %p75 = por %p73, %p74
      %p77 = scmp.ne.s32.totalorder %s60, %s76
      %p78 = scmp.eq.s32.totalorder %s26, 0
      %p79 = por %p77, %p78
      %s81 = sadd.s32 %s80, 1
      %p84 = scmp.eq.s32.totalorder %s20, 1
      %p85 = scmp.ne.s32.totalorder %s80, %s82
      %p86 = scmp.eq.s32.totalorder %s20, 0
      %p87 = por %p85, %p86
      %p88 = scmp.ne.s32.totalorder %s80, %s82
      %p89 = scmp.eq.s32.totalorder %s25, 1
      %p90 = por %p88, %p89
      %p91 = scmp.ne.s32.totalorder %s82, %s83
      %p92 = scmp.eq.s32.totalorder %s25, 0
      %p93 = por %p91, %p92
      %p94 = scmp.ne.s32.totalorder %s82, %s83
      %p95 = scmp.eq.s32.totalorder %s26, 1
      %p96 = por %p94, %p95
      %p98 = scmp.ne.s32.totalorder %s83, %s97
      %p99 = scmp.eq.s32.totalorder %s26, 0
      %p100 = por %p98, %p99
      %s101 = ssub.s32 %s20, %s27
      %p102 = scmp.eq.s32.totalorder %s101, 0
      %s104 = sadd.s32 %s103, 1
      %s105 = scalar_select %p102, %s103, %s104
      %p108 = pneg %p102
      %p109 = scmp.eq.s32.totalorder %s20, 1
      %p110 = por %p108, %p109
      %p111 = scmp.ne.s32.totalorder %s103, %s106
      %p112 = scmp.eq.s32.totalorder %s20, 0
      %p113 = por %p111, %p112
      %p114 = scmp.ne.s32.totalorder %s103, %s106
      %p115 = scmp.eq.s32.totalorder %s25, 1
      %p116 = por %p114, %p115
      %p117 = scmp.ne.s32.totalorder %s106, %s107
      %p118 = scmp.eq.s32.totalorder %s25, 0
      %p119 = por %p117, %p118
      %p120 = scmp.ne.s32.totalorder %s106, %s107
      %p121 = scmp.eq.s32.totalorder %s26, 1
      %p122 = por %p120, %p121
      %p124 = scmp.ne.s32.totalorder %s107, %s123
      %p125 = scmp.eq.s32.totalorder %s26, 0
      %p126 = por %p124, %p125
      %s127 = ssub.s32 %s20, %s27
      %p128 = scmp.eq.s32.totalorder %s127, 0
      %s130 = sadd.s32 %s129, 1
      %s131 = scalar_select %p128, %s129, %s130
      %p134 = pneg %p128
      %p135 = scmp.eq.s32.totalorder %s20, 1
      %p136 = por %p134, %p135
      %p137 = scmp.ne.s32.totalorder %s129, %s132
      %p138 = scmp.eq.s32.totalorder %s20, 0
      %p139 = por %p137, %p138
      %p140 = scmp.ne.s32.totalorder %s129, %s132
      %p141 = scmp.eq.s32.totalorder %s25, 1
      %p142 = por %p140, %p141
      %p143 = scmp.ne.s32.totalorder %s132, %s133
      %p144 = scmp.eq.s32.totalorder %s25, 0
      %p145 = por %p143, %p144
      %p146 = scmp.ne.s32.totalorder %s132, %s133
      %p147 = scmp.eq.s32.totalorder %s26, 1
      %p148 = por %p146, %p147
      %p150 = scmp.ne.s32.totalorder %s133, %s149
      %p151 = scmp.eq.s32.totalorder %s26, 0
      %p152 = por %p150, %p151
      %s153 = ssub.s32 %s20, %s27
      %p154 = scmp.eq.s32.totalorder %s153, 0
      %s156 = sadd.s32 %s155, 1
      %s157 = scalar_select %p154, %s155, %s156
      %p160 = pneg %p154
      %p161 = scmp.eq.s32.totalorder %s20, 1
      %p162 = por %p160, %p161
      %p163 = scmp.ne.s32.totalorder %s155, %s158
      %p164 = scmp.eq.s32.totalorder %s20, 0
      %p165 = por %p163, %p164
      %p166 = scmp.ne.s32.totalorder %s155, %s158
      %p167 = scmp.eq.s32.totalorder %s25, 1
      %p168 = por %p166, %p167
      %p169 = scmp.ne.s32.totalorder %s158, %s159
      %p170 = scmp.eq.s32.totalorder %s25, 0
      %p171 = por %p169, %p170
      %p172 = scmp.ne.s32.totalorder %s158, %s159
      %p173 = scmp.eq.s32.totalorder %s26, 1
      %p174 = por %p172, %p173
      %p176 = scmp.ne.s32.totalorder %s159, %s175
      %p177 = scmp.eq.s32.totalorder %s26, 0
      %p178 = por %p176, %p177
      %s179 = ssub.s32 %s20, %s27
      %p180 = scmp.eq.s32.totalorder %s179, 0
      %s182 = sadd.s32 %s181, 1
      %s183 = scalar_select %p180, %s181, %s182
      %p186 = pneg %p180
      %p187 = scmp.eq.s32.totalorder %s20, 1
      %p188 = por %p186, %p187
      %p189 = scmp.ne.s32.totalorder %s181, %s184
      %p190 = scmp.eq.s32.totalorder %s20, 0
      %p191 = por %p189, %p190
      %p192 = scmp.ne.s32.totalorder %s181, %s184
      %p193 = scmp.eq.s32.totalorder %s25, 1
      %p194 = por %p192, %p193
      %p195 = scmp.ne.s32.totalorder %s184, %s185
      %p196 = scmp.eq.s32.totalorder %s25, 0
      %p197 = por %p195, %p196
      %p198 = scmp.ne.s32.totalorder %s184, %s185
      %p199 = scmp.eq.s32.totalorder %s26, 1
      %p200 = por %p198, %p199
      %p202 = scmp.ne.s32.totalorder %s185, %s201
      %p203 = scmp.eq.s32.totalorder %s26, 0
      %p204 = por %p202, %p203
      %s205 = ssub.s32 %s20, %s27
      %p206 = scmp.eq.s32.totalorder %s205, 0
      %s208 = sadd.s32 %s207, 1
      %s209 = scalar_select %p206, %s207, %s208
      %p212 = pneg %p206
      %p213 = scmp.eq.s32.totalorder %s20, 1
      %p214 = por %p212, %p213
      %p215 = scmp.ne.s32.totalorder %s207, %s210
      %p216 = scmp.eq.s32.totalorder %s20, 0
      %p217 = por %p215, %p216
      %p218 = scmp.ne.s32.totalorder %s207, %s210
      %p219 = scmp.eq.s32.totalorder %s25, 1
      %p220 = por %p218, %p219
      %p221 = scmp.ne.s32.totalorder %s210, %s211
      %p222 = scmp.eq.s32.totalorder %s25, 0
      %p223 = por %p221, %p222
      %p224 = scmp.ne.s32.totalorder %s210, %s211
      %p225 = scmp.eq.s32.totalorder %s26, 1
      %p226 = por %p224, %p225
      %p228 = scmp.ne.s32.totalorder %s211, %s227
      %p229 = scmp.eq.s32.totalorder %s26, 0
      %p230 = por %p228, %p229
      %p231 = scmp.le.s32.totalorder 1, %s20
      %p232 = scmp.lt.s32.totalorder %s20, 3
      %p233 = pnand %p231, %p232
      %p234 = pneg %p233
      // Predicated region
      $region9: #{tpu_custom_call.1} parent=5 // pred_check
        _
      $region10: #{tpu_custom_call.1} parent=5 // pred_check_branch
        %236 = sbr.rel (%p233) target = $region12
      $region11: #{tpu_custom_call.1} parent=5 // pred_region
        %s237 = ssub.s32 %s20, 1
        // Predicated region
        $region13: #{tpu_custom_call.1} parent=11 // pred_check
          %p238 = pneg %p93
        $region14: #{tpu_custom_call.1} parent=11 // pred_check_branch
          %240 = sbr.rel (%p238) target = $region16
        $region15: #{tpu_custom_call.1} parent=11 // pred_region
          _
        $region16: #{tpu_custom_call.1} parent=11 // pred_fallthru
          _
      $region12: #{tpu_custom_call.1} parent=5 // pred_fallthru
        _
      %p241 = scmp.lt.s32.totalorder %s20, 2
      // Predicated region
      $region17: #{tpu_custom_call.1} parent=5 // pred_check
        %p242 = pneg %p241
      $region18: #{tpu_custom_call.1} parent=5 // pred_check_branch
        %244 = sbr.rel (%p242) target = $region20
      $region19: #{tpu_custom_call.1} parent=5 // pred_region
        // Predicated region
        $region21: #{tpu_custom_call.1} parent=19 // pred_check
          %p245 = pneg %p40
        $region22: #{tpu_custom_call.1} parent=19 // pred_check_branch
          %247 = sbr.rel (%p245) target = $region24
        $region23: #{tpu_custom_call.1} parent=19 // pred_region
          %p248 = scmp.lt.s32.totalorder %s20, 1
          %s249 = scalar_select %p248, %s20, 1
          %s250 = smul.addr %s249, 32
          %s251 = smul.addr %s250, 8
          %s252 = scalar_lea.vmem %s0, %s251
        $region24: #{tpu_custom_call.1} parent=19 // pred_fallthru
          _
        // Predicated region
        $region25: #{tpu_custom_call.1} parent=19 // pred_check
          %p253 = pneg %p66
        $region26: #{tpu_custom_call.1} parent=19 // pred_check_branch
          %255 = sbr.rel (%p253) target = $region28
        $region27: #{tpu_custom_call.1} parent=19 // pred_region
          %p256 = scmp.lt.s32.totalorder %s20, 1
          %s257 = scalar_select %p256, %s20, 1
          %s258 = smul.addr %s257, 2
          %s259 = smul.addr %s258, 4
          %s260 = scalar_lea.vmem %s1, %s259
        $region28: #{tpu_custom_call.1} parent=19 // pred_fallthru
          _
        // Predicated region
        $region29: #{tpu_custom_call.1} parent=19 // pred_check
          %p261 = pneg %p113
        $region30: #{tpu_custom_call.1} parent=19 // pred_check_branch
          %263 = sbr.rel (%p261) target = $region32
        $region31: #{tpu_custom_call.1} parent=19 // pred_region
          %p264 = scmp.lt.s32.totalorder %s20, 1
          %s265 = scalar_select %p264, %s20, 1
          %s266 = smul.addr %s265, 8
          %s267 = scalar_lea.vmem %s3, %s266
        $region32: #{tpu_custom_call.1} parent=19 // pred_fallthru
          _
        // Predicated region
        $region33: #{tpu_custom_call.1} parent=19 // pred_check
          %p268 = pneg %p139
        $region34: #{tpu_custom_call.1} parent=19 // pred_check_branch
          %270 = sbr.rel (%p268) target = $region36
        $region35: #{tpu_custom_call.1} parent=19 // pred_region
          %p271 = scmp.lt.s32.totalorder %s20, 1
          %s272 = scalar_select %p271, %s20, 1
          %s273 = smul.addr %s272, 8
          %s274 = scalar_lea.vmem %s4, %s273
        $region36: #{tpu_custom_call.1} parent=19 // pred_fallthru
          _
      $region20: #{tpu_custom_call.1} parent=5 // pred_fallthru
        _
      %p275 = scmp.le.s32.totalorder 1, %s20
      %p276 = scmp.lt.s32.totalorder %s20, 3
      %p277 = pnand %p275, %p276
      %p278 = pneg %p277
      // Predicated region
      $region37: #{tpu_custom_call.1} parent=5 // pred_check
        _
      $region38: #{tpu_custom_call.1} parent=5 // pred_check_branch
        %280 = sbr.rel (%p277) target = $region40
      $region39: #{tpu_custom_call.1} parent=5 // pred_region
        %s281 = ssub.s32 %s20, 1
        %p282 = scmp.lt.s32.totalorder %s25, 1
        %s283 = scalar_select %p282, %s25, 1
        %s284 = smul.addr %s283, 32
        %s285 = smul.addr %s284, 8
        %s286 = scalar_lea.vmem %s0, %s285
        %p287 = pneg %p46
        %p288 = pneg %p43
        %p289 = scmp.lt.s32.totalorder %s25, 1
        %s290 = scalar_select %p289, %s25, 1
        %s291 = smul.addr %s290, 2
        %s292 = smul.addr %s291, 4
        %s293 = scalar_lea.vmem %s1, %s292
        %p294 = pneg %p72
        %p295 = pneg %p69
        %p296 = pneg %p93
        %p297 = pneg %p90
        %p298 = scmp.lt.s32.totalorder %s25, 1
        %s299 = scalar_select %p298, %s25, 1
        %s300 = smul.addr %s299, 8
        %s301 = scalar_lea.vmem %s3, %s300
        %p302 = pneg %p119
        %p303 = pneg %p116
        %p304 = scmp.lt.s32.totalorder %s25, 1
        %s305 = scalar_select %p304, %s25, 1
        %s306 = smul.addr %s305, 8
        %s307 = scalar_lea.vmem %s4, %s306
        %p308 = pneg %p145
        %p309 = pneg %p142
        %p310 = pneg %p171
        %p311 = pneg %p168
        %s312 = sand.u32 %s158, 1
        %s313 = scalar_lea.sflag [#allocation3], %s312
        %s314 = sand.u32 %s158, 1
        %s315 = smul.addr %s314, 16
        %s316 = scalar_lea.vmem [#allocation2], %s315
        %p317 = pneg %p197
        %p318 = pneg %p194
        %s319 = sand.u32 %s25, 1
        %s320 = scalar_lea.sflag [#allocation5], %s319
        %s321 = sand.u32 %s184, 1
        %s322 = smul.addr %s321, 8
        %s323 = scalar_lea.vmem [#allocation4], %s322
        %p324 = pneg %p223
        %p325 = pneg %p220
        %s326 = sand.u32 %s25, 1
        %s327 = scalar_lea.sflag [#allocation5], %s326
        %s328 = sand.u32 %s210, 1
        %s329 = smul.addr %s328, 32
        %s330 = scalar_lea.vmem [#allocation6], %s329
        %p331 = scmp.lt.s32.totalorder %s25, 1
        %s332 = scalar_select %p331, %s25, 1
        %s333 = smul.addr %s332, 32
        %s334 = smul.addr %s333, 8
        %s335 = scalar_lea.vmem %s0, %s334
        %p336 = scmp.lt.s32.totalorder %s25, 1
        %s337 = scalar_select %p336, %s25, 1
        %s338 = smul.addr %s337, 2
        %s339 = smul.addr %s338, 4
        %s340 = scalar_lea.vmem %s1, %s339
        %p341 = scmp.lt.s32.totalorder %s25, 1
        %s342 = scalar_select %p341, %s25, 1
        %s343 = smul.addr %s342, 8
        %s344 = scalar_lea.vmem %s3, %s343
        %p345 = scmp.lt.s32.totalorder %s25, 1
        %s346 = scalar_select %p345, %s25, 1
        %s347 = smul.addr %s346, 8
        %s348 = scalar_lea.vmem %s4, %s347
        %v349 = vld [vmem:[%s335] sm:$0xff]
        %v350 = vld [vmem:[%s335 + $0x8] sm:$0xff]
        %v351 = vld [vmem:[%s335 + $0x10] sm:$0xff]
        %v352 = vld [vmem:[%s335 + $0x18] sm:$0xff]
        %v353 = vld [vmem:[%s335 + $0x20] sm:$0xff]
        %v354 = vld [vmem:[%s335 + $0x28] sm:$0xff]
        %v355 = vld [vmem:[%s335 + $0x30] sm:$0xff]
        %v356 = vld [vmem:[%s335 + $0x38] sm:$0xff]
        %v357 = vld [vmem:[%s335 + $0x40] sm:$0xff]
        %v358 = vld [vmem:[%s335 + $0x48] sm:$0xff]
        %v359 = vld [vmem:[%s335 + $0x50] sm:$0xff]
        %v360 = vld [vmem:[%s335 + $0x58] sm:$0xff]
        %v361 = vld [vmem:[%s335 + $0x60] sm:$0xff]
        %v362 = vld [vmem:[%s335 + $0x68] sm:$0xff]
        %v363 = vld [vmem:[%s335 + $0x70] sm:$0xff]
        %v364 = vld [vmem:[%s335 + $0x78] sm:$0xff]
        %v365 = vld [vmem:[%s335 + $0x80] sm:$0xff]
        %v366 = vld [vmem:[%s335 + $0x88] sm:$0xff]
        %v367 = vld [vmem:[%s335 + $0x90] sm:$0xff]
        %v368 = vld [vmem:[%s335 + $0x98] sm:$0xff]
        %v369 = vld [vmem:[%s335 + $0xa0] sm:$0xff]
        %v370 = vld [vmem:[%s335 + $0xa8] sm:$0xff]
        %v371 = vld [vmem:[%s335 + $0xb0] sm:$0xff]
        %v372 = vld [vmem:[%s335 + $0xb8] sm:$0xff]
        %v373 = vld [vmem:[%s335 + $0xc0] sm:$0xff]
        %v374 = vld [vmem:[%s335 + $0xc8] sm:$0xff]
        %v375 = vld [vmem:[%s335 + $0xd0] sm:$0xff]
        %v376 = vld [vmem:[%s335 + $0xd8] sm:$0xff]
        %v377 = vld [vmem:[%s335 + $0xe0] sm:$0xff]
        %v378 = vld [vmem:[%s335 + $0xe8] sm:$0xff]
        %v379 = vld [vmem:[%s335 + $0xf0] sm:$0xff]
        %v380 = vld [vmem:[%s335 + $0xf8] sm:$0xff]
        %v381 = vld [vmem:[%s340] sm:$0xff]
        %v382 = vld [vmem:[%s2] sm:$0xf]
        %v383 = vld [vmem:[%s344] sm:$0xff]
        %v384 = vld [vmem:[%s348] sm:$0xff]
        %v386 = vlaneseq
        %v387 = vshrl.u32 %v386, 7
        %v388 = vsub.s32 2, %v387
        %v389 = vrot.slane %v381, %v388
        %v390 = vlaneseq
        %v391 = vshrl.u32 %v390, 7
        %v392 = vsub.s32 6, %v391
        %v393 = vrot.slane %v381, %v392
        %v396 = vlaneseq
        %v397 = vshrl.u32 %v396, 7
        %v398 = vsub.s32 2, %v397
        %v399 = vrot.slane %v389, %v398
        %v400 = vlaneseq
        %v401 = vshrl.u32 %v400, 7
        %v402 = vsub.s32 2, %v401
        %v403 = vrot.slane %v393, %v402
        %405 = vset.pattern.permute.xlu0 2
        %406 = vperm.xlu0 %405, %v383
        %v407 = vpop.permute.xlu0 %406
        %v409 = vmin.f32 %v399, %v407
        %v410 = vmin.f32 %v403, %v407
        %v411 = vlaneseq
        %v412 = vshrl.u32 %v411, 7
        %v413 = vsub.s32 0, %v412
        %v414 = vrot.slane %v381, %v413
        %v415 = vlaneseq
        %v416 = vshrl.u32 %v415, 7
        %v417 = vsub.s32 4, %v416
        %v418 = vrot.slane %v381, %v417
        %v421 = vlaneseq
        %v422 = vshrl.u32 %v421, 7
        %v423 = vsub.s32 0, %v422
        %v424 = vrot.slane %v414, %v423
        %v425 = vlaneseq
        %v426 = vshrl.u32 %v425, 7
        %v427 = vsub.s32 0, %v426
        %v428 = vrot.slane %v418, %v427
        %429 = vset.pattern.permute.xlu0 0
        %430 = vperm.xlu0 %429, %v383
        %v431 = vpop.permute.xlu0 %430
        %v433 = vmax.f32 %v424, %v431
        %v434 = vmax.f32 %v428, %v431
        %v435 = vsub.f32 %v409, %v433
        %v436 = vsub.f32 %v410, %v434
        %v437 = vmax.f32 %v435, 0.0
        %v438 = vmax.f32 %v436, 0.0
        %v439 = vlaneseq
        %v440 = vshrl.u32 %v439, 7
        %v441 = vsub.s32 3, %v440
        %v442 = vrot.slane %v381, %v441
        %v443 = vlaneseq
        %v444 = vshrl.u32 %v443, 7
        %v445 = vsub.s32 7, %v444
        %v446 = vrot.slane %v381, %v445
        %v449 = vlaneseq
        %v450 = vshrl.u32 %v449, 7
        %v451 = vsub.s32 3, %v450
        %v452 = vrot.slane %v442, %v451
        %v453 = vlaneseq
        %v454 = vshrl.u32 %v453, 7
        %v455 = vsub.s32 3, %v454
        %v456 = vrot.slane %v446, %v455
        %457 = vset.pattern.permute.xlu0 3
        %458 = vperm.xlu0 %457, %v383
        %v459 = vpop.permute.xlu0 %458
        %v461 = vmin.f32 %v452, %v459
        %v462 = vmin.f32 %v456, %v459
        %v463 = vlaneseq
        %v464 = vshrl.u32 %v463, 7
        %v465 = vsub.s32 1, %v464
        %v466 = vrot.slane %v381, %v465
        %v467 = vlaneseq
        %v468 = vshrl.u32 %v467, 7
        %v469 = vsub.s32 5, %v468
        %v470 = vrot.slane %v381, %v469
        %v473 = vlaneseq
        %v474 = vshrl.u32 %v473, 7
        %v475 = vsub.s32 1, %v474
        %v476 = vrot.slane %v466, %v475
        %v477 = vlaneseq
        %v478 = vshrl.u32 %v477, 7
        %v479 = vsub.s32 1, %v478
        %v480 = vrot.slane %v470, %v479
        %481 = vset.pattern.permute.xlu0 1
        %482 = vperm.xlu0 %481, %v383
        %v483 = vpop.permute.xlu0 %482
        %v485 = vmax.f32 %v476, %v483
        %v486 = vmax.f32 %v480, %v483
        %v487 = vsub.f32 %v461, %v485
        %v488 = vsub.f32 %v462, %v486
        %v489 = vmax.f32 %v487, 0.0
        %v490 = vmax.f32 %v488, 0.0
        %v491 = vmul.f32 %v437, %v489
        %v492 = vmul.f32 %v438, %v490
        %v493 = vrot.slane %v381, 6
        %v495 = vsub.f32 %v381, %v493
        %v497 = vrot.slane %v495, 5
        %v498 = vrot.slane %v497, 4
        %v500 = vmul.f32 %v495, %v498
        %501 = vrot.lane.b32.xlu0 %v383, 2
        %v502 = vpop.permute.xlu0 %501
        %v504 = vsub.f32 %v383, %v502
        %506 = vrot.lane.b32.xlu0 %v504, 127
        %v507 = vpop.permute.xlu0 %506
        %v509 = vmul.f32 %v504, %v507
        %v511 = vlaneseq
        %v512 = vshrl.u32 %v511, 7
        %v513 = vsub.s32 2, %v512
        %v514 = vrot.slane %v500, %v513
        %v515 = vlaneseq
        %v516 = vshrl.u32 %v515, 7
        %v517 = vsub.s32 6, %v516
        %v518 = vrot.slane %v500, %v517
        %v521 = vlaneseq
        %v522 = vshrl.u32 %v521, 7
        %v523 = vsub.s32 2, %v522
        %v524 = vrot.slane %v514, %v523
        %v525 = vlaneseq
        %v526 = vshrl.u32 %v525, 7
        %v527 = vsub.s32 2, %v526
        %v528 = vrot.slane %v518, %v527
        %530 = vset.pattern.permute.xlu0 2
        %531 = vperm.xlu0 %530, %v509
        %v532 = vpop.permute.xlu0 %531
        %v534 = vadd.f32 %v524, %v532
        %v535 = vadd.f32 %v528, %v532
        %v536 = vsub.f32 %v534, %v491
        %v537 = vsub.f32 %v535, %v492
        %v538 = vadd.f32 %v536, 1e-07
        %v539 = vadd.f32 %v537, 1e-07
        %v540 = vrcp.pop %v538
        %v541 = vmul.f32 %v491, %v540
        %v542 = vrcp.pop %v539
        %v543 = vmul.f32 %v492, %v542
        %v545 = vlaneseq
        %v546 = vshrl.u32 %v545, 7
        %v547 = vsub.s32 0, %v546
        %v548 = vrot.slane %v382, %v547
        %v549 = vlaneseq
        %v550 = vshrl.u32 %v549, 7
        %v551 = vsub.s32 2, %v550
        %v552 = vrot.slane %v382, %v551
        %v555 = vlaneseq
        %v556 = vshrl.u32 %v555, 7
        %v557 = vsub.s32 0, %v556
        %v558 = vrot.slane %v548, %v557
        %v559 = vlaneseq
        %v560 = vshrl.u32 %v559, 7
        %v561 = vsub.s32 0, %v560
        %v562 = vrot.slane %v552, %v561
        %v563 = vsub.f32 %v558, %v431
        %v564 = vsub.f32 %v562, %v431
        %v565 = vlaneseq
        %v566 = vshrl.u32 %v565, 7
        %v567 = vsub.s32 1, %v566
        %v568 = vrot.slane %v382, %v567
        %v569 = vlaneseq
        %v570 = vshrl.u32 %v569, 7
        %v571 = vsub.s32 3, %v570
        %v572 = vrot.slane %v382, %v571
        %v575 = vlaneseq
        %v576 = vshrl.u32 %v575, 7
        %v577 = vsub.s32 1, %v576
        %v578 = vrot.slane %v568, %v577
        %v579 = vlaneseq
        %v580 = vshrl.u32 %v579, 7
        %v581 = vsub.s32 1, %v580
        %v582 = vrot.slane %v572, %v581
        %v583 = vsub.f32 %v578, %v483
        %v584 = vsub.f32 %v582, %v483
        %v585 = vmin.f32 %v563, %v583
        %v586 = vmin.f32 %v564, %v584
        %v587 = vsub.f32 %v407, %v558
        %v588 = vsub.f32 %v407, %v562
        %v589 = vsub.f32 %v459, %v578
        %v590 = vsub.f32 %v459, %v582
        %v591 = vmin.f32 %v587, %v589
        %v592 = vmin.f32 %v588, %v590
        %v593 = vmin.f32 %v585, %v591
        %v594 = vmin.f32 %v586, %v592
        %vm595 = vcmp.gt.f32.partialorder %v593, 1e-09
        %vm596 = vcmp.gt.f32.partialorder %v594, 1e-09
        %v597 = vsel %vm595, 1, 0
        %v598 = vsel %vm596, 1, 0
        %v599 = vcvt.s32.f32 %v597
        %v600 = vcvt.s32.f32 %v598
        %v601 = vlaneseq
        %v602 = vand.u32 %v601, 127
        %v603 = vmax.f32 %v383, 0.0
        %v604 = vmin.f32 %v603, 15.0
        %v605 = vadd.f32 %v604, 0.5
        %v606 = vcvt.f32.s32.to.zero.pseudo %v605
        %607 = vset.pattern.permute.xlu0 4
        %608 = vperm.xlu0 %607, %v606
        %v609 = vpop.permute.xlu0 %608
        %vm610 = vcmp.eq.s32.totalorder %v609, %v602
        %v611 = vsel %vm610, 1, 0
        %v612 = vcvt.s32.f32 %v611
        %vm613 = vcmask 130048
        %v615 = vsel %vm613, %v612, 0
        %v618 = vsel %vm613, %v349, 0
        %v621 = vsel %vm613, %v350, 0
        %v624 = vsel %vm613, %v351, 0
        %v627 = vsel %vm613, %v352, 0
        %v630 = vsel %vm613, %v353, 0
        %v633 = vsel %vm613, %v354, 0
        %v636 = vsel %vm613, %v355, 0
        %v639 = vsel %vm613, %v356, 0
        %v642 = vsel %vm613, %v357, 0
        %v645 = vsel %vm613, %v358, 0
        %v648 = vsel %vm613, %v359, 0
        %v651 = vsel %vm613, %v360, 0
        %v654 = vsel %vm613, %v361, 0
        %v657 = vsel %vm613, %v362, 0
        %v660 = vsel %vm613, %v363, 0
        %v663 = vsel %vm613, %v364, 0
        %v666 = vsel %vm613, %v365, 0
        %v669 = vsel %vm613, %v366, 0
        %v672 = vsel %vm613, %v367, 0
        %v675 = vsel %vm613, %v368, 0
        %v678 = vsel %vm613, %v369, 0
        %v681 = vsel %vm613, %v370, 0
        %v684 = vsel %vm613, %v371, 0
        %v687 = vsel %vm613, %v372, 0
        %v690 = vsel %vm613, %v373, 0
        %v693 = vsel %vm613, %v374, 0
        %v696 = vsel %vm613, %v375, 0
        %v699 = vsel %vm613, %v376, 0
        %v702 = vsel %vm613, %v377, 0
        %v705 = vsel %vm613, %v378, 0
        %v708 = vsel %vm613, %v379, 0
        %v711 = vsel %vm613, %v380, 0
        %713 = vmatprep.subr.mxu0 0.0
        %v714 = vand.u32 %v663, 4294901760
        %715 = vmatpush1.xpose.msra.mxu0 %v714
        %716 = vmatprep.subr.mxu0 0.0
        %v717 = vand.u32 %v660, 4294901760
        %718 = vmatpush1.xpose.msra.mxu0 %v717
        %719 = vmatprep.subr.mxu0 0.0
        %v720 = vand.u32 %v657, 4294901760
        %721 = vmatpush1.xpose.msra.mxu0 %v720
        %722 = vmatprep.subr.mxu0 0.0
        %v723 = vand.u32 %v654, 4294901760
        %724 = vmatpush1.xpose.msra.mxu0 %v723
        %725 = vmatprep.subr.mxu0 0.0
        %v726 = vand.u32 %v651, 4294901760
        %727 = vmatpush1.xpose.msra.mxu0 %v726
        %728 = vmatprep.subr.mxu0 0.0
        %v729 = vand.u32 %v648, 4294901760
        %730 = vmatpush1.xpose.msra.mxu0 %v729
        %731 = vmatprep.subr.mxu0 0.0
        %v732 = vand.u32 %v645, 4294901760
        %733 = vmatpush1.xpose.msra.mxu0 %v732
        %734 = vmatprep.subr.mxu0 0.0
        %v735 = vand.u32 %v642, 4294901760
        %736 = vmatpush1.xpose.msra.mxu0 %v735
        %737 = vmatprep.subr.mxu0 0.0
        %v738 = vand.u32 %v639, 4294901760
        %739 = vmatpush1.xpose.msra.mxu0 %v738
        %740 = vmatprep.subr.mxu0 0.0
        %v741 = vand.u32 %v636, 4294901760
        %742 = vmatpush1.xpose.msra.mxu0 %v741
        %743 = vmatprep.subr.mxu0 0.0
        %v744 = vand.u32 %v633, 4294901760
        %745 = vmatpush1.xpose.msra.mxu0 %v744
        %746 = vmatprep.subr.mxu0 0.0
        %v747 = vand.u32 %v630, 4294901760
        %748 = vmatpush1.xpose.msra.mxu0 %v747
        %749 = vmatprep.subr.mxu0 0.0
        %v750 = vand.u32 %v627, 4294901760
        %751 = vmatpush1.xpose.msra.mxu0 %v750
        %752 = vmatprep.subr.mxu0 0.0
        %v753 = vand.u32 %v624, 4294901760
        %754 = vmatpush1.xpose.msra.mxu0 %v753
        %755 = vmatprep.subr.mxu0 0.0
        %v756 = vand.u32 %v621, 4294901760
        %757 = vmatpush1.xpose.msra.mxu0 %v756
        %758 = vmatprep.subr.mxu0 0.0
        %v759 = vand.u32 %v618, 4294901760
        %760 = vmatpush1.xpose.msra.mxu0 %v759
        %761 = vmatprep.subr.mxu0 0.0
        %v762 = vand.u32 %v711, 4294901760
        %763 = vmatpush2.xpose.msra.mxu0 %v762
        %764 = vmatprep.subr.mxu0 0.0
        %v765 = vand.u32 %v708, 4294901760
        %766 = vmatpush2.xpose.msra.mxu0 %v765
        %767 = vmatprep.subr.mxu0 0.0
        %v768 = vand.u32 %v705, 4294901760
        %769 = vmatpush2.xpose.msra.mxu0 %v768
        %770 = vmatprep.subr.mxu0 0.0
        %v771 = vand.u32 %v702, 4294901760
        %772 = vmatpush2.xpose.msra.mxu0 %v771
        %773 = vmatprep.subr.mxu0 0.0
        %v774 = vand.u32 %v699, 4294901760
        %775 = vmatpush2.xpose.msra.mxu0 %v774
        %776 = vmatprep.subr.mxu0 0.0
        %v777 = vand.u32 %v696, 4294901760
        %778 = vmatpush2.xpose.msra.mxu0 %v777
        %779 = vmatprep.subr.mxu0 0.0
        %v780 = vand.u32 %v693, 4294901760
        %781 = vmatpush2.xpose.msra.mxu0 %v780
        %782 = vmatprep.subr.mxu0 0.0
        %v783 = vand.u32 %v690, 4294901760
        %784 = vmatpush2.xpose.msra.mxu0 %v783
        %785 = vmatprep.subr.mxu0 0.0
        %v786 = vand.u32 %v687, 4294901760
        %787 = vmatpush2.xpose.msra.mxu0 %v786
        %788 = vmatprep.subr.mxu0 0.0
        %v789 = vand.u32 %v684, 4294901760
        %790 = vmatpush2.xpose.msra.mxu0 %v789
        %791 = vmatprep.subr.mxu0 0.0
        %v792 = vand.u32 %v681, 4294901760
        %793 = vmatpush2.xpose.msra.mxu0 %v792
        %794 = vmatprep.subr.mxu0 0.0
        %v795 = vand.u32 %v678, 4294901760
        %796 = vmatpush2.xpose.msra.mxu0 %v795
        %797 = vmatprep.subr.mxu0 0.0
        %v798 = vand.u32 %v675, 4294901760
        %799 = vmatpush2.xpose.msra.mxu0 %v798
        %800 = vmatprep.subr.mxu0 0.0
        %v801 = vand.u32 %v672, 4294901760
        %802 = vmatpush2.xpose.msra.mxu0 %v801
        %803 = vmatprep.subr.mxu0 0.0
        %v804 = vand.u32 %v669, 4294901760
        %805 = vmatpush2.xpose.msra.mxu0 %v804
        %806 = vmatprep.subr.mxu0 0.0
        %v807 = vand.u32 %v666, 4294901760
        %808 = vmatpush2.xpose.msra.mxu0 %v807
        %809 = vmatprep.mubr.f32.mxu0 0.0
        %v810 = vand.u32 %v615, 4294901760
        %v811 = vsub.f32 %v615, %v810
        %v812 = vand.u32 %v811, 4294901760
        %v813 = vsub.f32 %v811, %v812
        %v814 = vand.u32 %v813, 4294901760
        %815 = vmatmul.mubr.f32.gmra.mxu0 %v814
        %v816 = vpop.f32.mrf.mxu0
        %v817 = vadd.f32 0.0, %v816
        %v818 = vpop.f32.mrf.mxu0
        %v819 = vadd.f32 0.0, %v818
        %820 = vdwg.mxu0
        %821 = vmatprep.subr.mxu0 0.0
        %v822 = vand.u32 %v663, 4294901760
        %v823 = vsub.f32 %v663, %v822
        %v824 = vand.u32 %v823, 4294901760
        %v825 = vsub.f32 %v823, %v824
        %v826 = vand.u32 %v825, 4294901760
        %827 = vmatpush1.xpose.msra.mxu0 %v826
        %828 = vmatprep.subr.mxu0 0.0
        %v829 = vand.u32 %v660, 4294901760
        %v830 = vsub.f32 %v660, %v829
        %v831 = vand.u32 %v830, 4294901760
        %v832 = vsub.f32 %v830, %v831
        %v833 = vand.u32 %v832, 4294901760
        %834 = vmatpush1.xpose.msra.mxu0 %v833
        %835 = vmatprep.subr.mxu0 0.0
        %v836 = vand.u32 %v657, 4294901760
        %v837 = vsub.f32 %v657, %v836
        %v838 = vand.u32 %v837, 4294901760
        %v839 = vsub.f32 %v837, %v838
        %v840 = vand.u32 %v839, 4294901760
        %841 = vmatpush1.xpose.msra.mxu0 %v840
        %842 = vmatprep.subr.mxu0 0.0
        %v843 = vand.u32 %v654, 4294901760
        %v844 = vsub.f32 %v654, %v843
        %v845 = vand.u32 %v844, 4294901760
        %v846 = vsub.f32 %v844, %v845
        %v847 = vand.u32 %v846, 4294901760
        %848 = vmatpush1.xpose.msra.mxu0 %v847
        %849 = vmatprep.subr.mxu0 0.0
        %v850 = vand.u32 %v651, 4294901760
        %v851 = vsub.f32 %v651, %v850
        %v852 = vand.u32 %v851, 4294901760
        %v853 = vsub.f32 %v851, %v852
        %v854 = vand.u32 %v853, 4294901760
        %855 = vmatpush1.xpose.msra.mxu0 %v854
        %856 = vmatprep.subr.mxu0 0.0
        %v857 = vand.u32 %v648, 4294901760
        %v858 = vsub.f32 %v648, %v857
        %v859 = vand.u32 %v858, 4294901760
        %v860 = vsub.f32 %v858, %v859
        %v861 = vand.u32 %v860, 4294901760
        %862 = vmatpush1.xpose.msra.mxu0 %v861
        %863 = vmatprep.subr.mxu0 0.0
        %v864 = vand.u32 %v645, 4294901760
        %v865 = vsub.f32 %v645, %v864
        %v866 = vand.u32 %v865, 4294901760
        %v867 = vsub.f32 %v865, %v866
        %v868 = vand.u32 %v867, 4294901760
        %869 = vmatpush1.xpose.msra.mxu0 %v868
        %870 = vmatprep.subr.mxu0 0.0
        %v871 = vand.u32 %v642, 4294901760
        %v872 = vsub.f32 %v642, %v871
        %v873 = vand.u32 %v872, 4294901760
        %v874 = vsub.f32 %v872, %v873
        %v875 = vand.u32 %v874, 4294901760
        %876 = vmatpush1.xpose.msra.mxu0 %v875
        %877 = vmatprep.subr.mxu0 0.0
        %v878 = vand.u32 %v639, 4294901760
        %v879 = vsub.f32 %v639, %v878
        %v880 = vand.u32 %v879, 4294901760
        %v881 = vsub.f32 %v879, %v880
        %v882 = vand.u32 %v881, 4294901760
        %883 = vmatpush1.xpose.msra.mxu0 %v882
        %884 = vmatprep.subr.mxu0 0.0
        %v885 = vand.u32 %v636, 4294901760
        %v886 = vsub.f32 %v636, %v885
        %v887 = vand.u32 %v886, 4294901760
        %v888 = vsub.f32 %v886, %v887
        %v889 = vand.u32 %v888, 4294901760
        %890 = vmatpush1.xpose.msra.mxu0 %v889
        %891 = vmatprep.subr.mxu0 0.0
        %v892 = vand.u32 %v633, 4294901760
        %v893 = vsub.f32 %v633, %v892
        %v894 = vand.u32 %v893, 4294901760
        %v895 = vsub.f32 %v893, %v894
        %v896 = vand.u32 %v895, 4294901760
        %897 = vmatpush1.xpose.msra.mxu0 %v896
        %898 = vmatprep.subr.mxu0 0.0
        %v899 = vand.u32 %v630, 4294901760
        %v900 = vsub.f32 %v630, %v899
        %v901 = vand.u32 %v900, 4294901760
        %v902 = vsub.f32 %v900, %v901
        %v903 = vand.u32 %v902, 4294901760
        %904 = vmatpush1.xpose.msra.mxu0 %v903
        %905 = vmatprep.subr.mxu0 0.0
        %v906 = vand.u32 %v627, 4294901760
        %v907 = vsub.f32 %v627, %v906
        %v908 = vand.u32 %v907, 4294901760
        %v909 = vsub.f32 %v907, %v908
        %v910 = vand.u32 %v909, 4294901760
        %911 = vmatpush1.xpose.msra.mxu0 %v910
        %912 = vmatprep.subr.mxu0 0.0
        %v913 = vand.u32 %v624, 4294901760
        %v914 = vsub.f32 %v624, %v913
        %v915 = vand.u32 %v914, 4294901760
        %v916 = vsub.f32 %v914, %v915
        %v917 = vand.u32 %v916, 4294901760
        %918 = vmatpush1.xpose.msra.mxu0 %v917
        %919 = vmatprep.subr.mxu0 0.0
        %v920 = vand.u32 %v621, 4294901760
        %v921 = vsub.f32 %v621, %v920
        %v922 = vand.u32 %v921, 4294901760
        %v923 = vsub.f32 %v921, %v922
        %v924 = vand.u32 %v923, 4294901760
        %925 = vmatpush1.xpose.msra.mxu0 %v924
        %926 = vmatprep.subr.mxu0 0.0
        %v927 = vand.u32 %v618, 4294901760
        %v928 = vsub.f32 %v618, %v927
        %v929 = vand.u32 %v928, 4294901760
        %v930 = vsub.f32 %v928, %v929
        %v931 = vand.u32 %v930, 4294901760
        %932 = vmatpush1.xpose.msra.mxu0 %v931
        %933 = vmatprep.subr.mxu0 0.0
        %v934 = vand.u32 %v711, 4294901760
        %v935 = vsub.f32 %v711, %v934
        %v936 = vand.u32 %v935, 4294901760
        %v937 = vsub.f32 %v935, %v936
        %v938 = vand.u32 %v937, 4294901760
        %939 = vmatpush2.xpose.msra.mxu0 %v938
        %940 = vmatprep.subr.mxu0 0.0
        %v941 = vand.u32 %v708, 4294901760
        %v942 = vsub.f32 %v708, %v941
        %v943 = vand.u32 %v942, 4294901760
        %v944 = vsub.f32 %v942, %v943
        %v945 = vand.u32 %v944, 4294901760
        %946 = vmatpush2.xpose.msra.mxu0 %v945
        %947 = vmatprep.subr.mxu0 0.0
        %v948 = vand.u32 %v705, 4294901760
        %v949 = vsub.f32 %v705, %v948
        %v950 = vand.u32 %v949, 4294901760
        %v951 = vsub.f32 %v949, %v950
        %v952 = vand.u32 %v951, 4294901760
        %953 = vmatpush2.xpose.msra.mxu0 %v952
        %954 = vmatprep.subr.mxu0 0.0
        %v955 = vand.u32 %v702, 4294901760
        %v956 = vsub.f32 %v702, %v955
        %v957 = vand.u32 %v956, 4294901760
        %v958 = vsub.f32 %v956, %v957
        %v959 = vand.u32 %v958, 4294901760
        %960 = vmatpush2.xpose.msra.mxu0 %v959
        %961 = vmatprep.subr.mxu0 0.0
        %v962 = vand.u32 %v699, 4294901760
        %v963 = vsub.f32 %v699, %v962
        %v964 = vand.u32 %v963, 4294901760
        %v965 = vsub.f32 %v963, %v964
        %v966 = vand.u32 %v965, 4294901760
        %967 = vmatpush2.xpose.msra.mxu0 %v966
        %968 = vmatprep.subr.mxu0 0.0
        %v969 = vand.u32 %v696, 4294901760
        %v970 = vsub.f32 %v696, %v969
        %v971 = vand.u32 %v970, 4294901760
        %v972 = vsub.f32 %v970, %v971
        %v973 = vand.u32 %v972, 4294901760
        %974 = vmatpush2.xpose.msra.mxu0 %v973
        %975 = vmatprep.subr.mxu0 0.0
        %v976 = vand.u32 %v693, 4294901760
        %v977 = vsub.f32 %v693, %v976
        %v978 = vand.u32 %v977, 4294901760
        %v979 = vsub.f32 %v977, %v978
        %v980 = vand.u32 %v979, 4294901760
        %981 = vmatpush2.xpose.msra.mxu0 %v980
        %982 = vmatprep.subr.mxu0 0.0
        %v983 = vand.u32 %v690, 4294901760
        %v984 = vsub.f32 %v690, %v983
        %v985 = vand.u32 %v984, 4294901760
        %v986 = vsub.f32 %v984, %v985
        %v987 = vand.u32 %v986, 4294901760
        %988 = vmatpush2.xpose.msra.mxu0 %v987
        %989 = vmatprep.subr.mxu0 0.0
        %v990 = vand.u32 %v687, 4294901760
        %v991 = vsub.f32 %v687, %v990
        %v992 = vand.u32 %v991, 4294901760
        %v993 = vsub.f32 %v991, %v992
        %v994 = vand.u32 %v993, 4294901760
        %995 = vmatpush2.xpose.msra.mxu0 %v994
        %996 = vmatprep.subr.mxu0 0.0
        %v997 = vand.u32 %v684, 4294901760
        %v998 = vsub.f32 %v684, %v997
        %v999 = vand.u32 %v998, 4294901760
        %v1000 = vsub.f32 %v998, %v999
        %v1001 = vand.u32 %v1000, 4294901760
        %1002 = vmatpush2.xpose.msra.mxu0 %v1001
        %1003 = vmatprep.subr.mxu0 0.0
        %v1004 = vand.u32 %v681, 4294901760
        %v1005 = vsub.f32 %v681, %v1004
        %v1006 = vand.u32 %v1005, 4294901760
        %v1007 = vsub.f32 %v1005, %v1006
        %v1008 = vand.u32 %v1007, 4294901760
        %1009 = vmatpush2.xpose.msra.mxu0 %v1008
        %1010 = vmatprep.subr.mxu0 0.0
        %v1011 = vand.u32 %v678, 4294901760
        %v1012 = vsub.f32 %v678, %v1011
        %v1013 = vand.u32 %v1012, 4294901760
        %v1014 = vsub.f32 %v1012, %v1013
        %v1015 = vand.u32 %v1014, 4294901760
        %1016 = vmatpush2.xpose.msra.mxu0 %v1015
        %1017 = vmatprep.subr.mxu0 0.0
        %v1018 = vand.u32 %v675, 4294901760
        %v1019 = vsub.f32 %v675, %v1018
        %v1020 = vand.u32 %v1019, 4294901760
        %v1021 = vsub.f32 %v1019, %v1020
        %v1022 = vand.u32 %v1021, 4294901760
        %1023 = vmatpush2.xpose.msra.mxu0 %v1022
        %1024 = vmatprep.subr.mxu0 0.0
        %v1025 = vand.u32 %v672, 4294901760
        %v1026 = vsub.f32 %v672, %v1025
        %v1027 = vand.u32 %v1026, 4294901760
        %v1028 = vsub.f32 %v1026, %v1027
        %v1029 = vand.u32 %v1028, 4294901760
        %1030 = vmatpush2.xpose.msra.mxu0 %v1029
        %1031 = vmatprep.subr.mxu0 0.0
        %v1032 = vand.u32 %v669, 4294901760
        %v1033 = vsub.f32 %v669, %v1032
        %v1034 = vand.u32 %v1033, 4294901760
        %v1035 = vsub.f32 %v1033, %v1034
        %v1036 = vand.u32 %v1035, 4294901760
        %1037 = vmatpush2.xpose.msra.mxu0 %v1036
        %1038 = vmatprep.subr.mxu0 0.0
        %v1039 = vand.u32 %v666, 4294901760
        %v1040 = vsub.f32 %v666, %v1039
        %v1041 = vand.u32 %v1040, 4294901760
        %v1042 = vsub.f32 %v1040, %v1041
        %v1043 = vand.u32 %v1042, 4294901760
        %1044 = vmatpush2.xpose.msra.mxu0 %v1043
        %1045 = vmatprep.mubr.f32.mxu0 0.0
        %v1046 = vand.u32 %v615, 4294901760
        %1047 = vmatmul.mubr.f32.gmra.mxu0 %v1046
        %v1048 = vpop.f32.mrf.mxu0
        %v1049 = vadd.f32 %v817, %v1048
        %v1050 = vpop.f32.mrf.mxu0
        %v1051 = vadd.f32 %v819, %v1050
        %1052 = vdwg.mxu0
        %1053 = vmatprep.subr.mxu0 0.0
        %v1054 = vand.u32 %v663, 4294901760
        %v1055 = vsub.f32 %v663, %v1054
        %1056 = vmatpush1.xpose.msra.mxu0 %v1055
        %1057 = vmatprep.subr.mxu0 0.0
        %v1058 = vand.u32 %v660, 4294901760
        %v1059 = vsub.f32 %v660, %v1058
        %1060 = vmatpush1.xpose.msra.mxu0 %v1059
        %1061 = vmatprep.subr.mxu0 0.0
        %v1062 = vand.u32 %v657, 4294901760
        %v1063 = vsub.f32 %v657, %v1062
        %1064 = vmatpush1.xpose.msra.mxu0 %v1063
        %1065 = vmatprep.subr.mxu0 0.0
        %v1066 = vand.u32 %v654, 4294901760
        %v1067 = vsub.f32 %v654, %v1066
        %1068 = vmatpush1.xpose.msra.mxu0 %v1067
        %1069 = vmatprep.subr.mxu0 0.0
        %v1070 = vand.u32 %v651, 4294901760
        %v1071 = vsub.f32 %v651, %v1070
        %1072 = vmatpush1.xpose.msra.mxu0 %v1071
        %1073 = vmatprep.subr.mxu0 0.0
        %v1074 = vand.u32 %v648, 4294901760
        %v1075 = vsub.f32 %v648, %v1074
        %1076 = vmatpush1.xpose.msra.mxu0 %v1075
        %1077 = vmatprep.subr.mxu0 0.0
        %v1078 = vand.u32 %v645, 4294901760
        %v1079 = vsub.f32 %v645, %v1078
        %1080 = vmatpush1.xpose.msra.mxu0 %v1079
        %1081 = vmatprep.subr.mxu0 0.0
        %v1082 = vand.u32 %v642, 4294901760
        %v1083 = vsub.f32 %v642, %v1082
        %1084 = vmatpush1.xpose.msra.mxu0 %v1083
        %1085 = vmatprep.subr.mxu0 0.0
        %v1086 = vand.u32 %v639, 4294901760
        %v1087 = vsub.f32 %v639, %v1086
        %1088 = vmatpush1.xpose.msra.mxu0 %v1087
        %1089 = vmatprep.subr.mxu0 0.0
        %v1090 = vand.u32 %v636, 4294901760
        %v1091 = vsub.f32 %v636, %v1090
        %1092 = vmatpush1.xpose.msra.mxu0 %v1091
        %1093 = vmatprep.subr.mxu0 0.0
        %v1094 = vand.u32 %v633, 4294901760
        %v1095 = vsub.f32 %v633, %v1094
        %1096 = vmatpush1.xpose.msra.mxu0 %v1095
        %1097 = vmatprep.subr.mxu0 0.0
        %v1098 = vand.u32 %v630, 4294901760
        %v1099 = vsub.f32 %v630, %v1098
        %1100 = vmatpush1.xpose.msra.mxu0 %v1099
        %1101 = vmatprep.subr.mxu0 0.0
        %v1102 = vand.u32 %v627, 4294901760
        %v1103 = vsub.f32 %v627, %v1102
        %1104 = vmatpush1.xpose.msra.mxu0 %v1103
        %1105 = vmatprep.subr.mxu0 0.0
        %v1106 = vand.u32 %v624, 4294901760
        %v1107 = vsub.f32 %v624, %v1106
        %1108 = vmatpush1.xpose.msra.mxu0 %v1107
        %1109 = vmatprep.subr.mxu0 0.0
        %v1110 = vand.u32 %v621, 4294901760
        %v1111 = vsub.f32 %v621, %v1110
        %1112 = vmatpush1.xpose.msra.mxu0 %v1111
        %1113 = vmatprep.subr.mxu0 0.0
        %v1114 = vand.u32 %v618, 4294901760
        %v1115 = vsub.f32 %v618, %v1114
        %1116 = vmatpush1.xpose.msra.mxu0 %v1115
        %1117 = vmatprep.subr.mxu0 0.0
        %v1118 = vand.u32 %v711, 4294901760
        %v1119 = vsub.f32 %v711, %v1118
        %1120 = vmatpush2.xpose.msra.mxu0 %v1119
        %1121 = vmatprep.subr.mxu0 0.0
        %v1122 = vand.u32 %v708, 4294901760
        %v1123 = vsub.f32 %v708, %v1122
        %1124 = vmatpush2.xpose.msra.mxu0 %v1123
        %1125 = vmatprep.subr.mxu0 0.0
        %v1126 = vand.u32 %v705, 4294901760
        %v1127 = vsub.f32 %v705, %v1126
        %1128 = vmatpush2.xpose.msra.mxu0 %v1127
        %1129 = vmatprep.subr.mxu0 0.0
        %v1130 = vand.u32 %v702, 4294901760
        %v1131 = vsub.f32 %v702, %v1130
        %1132 = vmatpush2.xpose.msra.mxu0 %v1131
        %1133 = vmatprep.subr.mxu0 0.0
        %v1134 = vand.u32 %v699, 4294901760
        %v1135 = vsub.f32 %v699, %v1134
        %1136 = vmatpush2.xpose.msra.mxu0 %v1135
        %1137 = vmatprep.subr.mxu0 0.0
        %v1138 = vand.u32 %v696, 4294901760
        %v1139 = vsub.f32 %v696, %v1138
        %1140 = vmatpush2.xpose.msra.mxu0 %v1139
        %1141 = vmatprep.subr.mxu0 0.0
        %v1142 = vand.u32 %v693, 4294901760
        %v1143 = vsub.f32 %v693, %v1142
        %1144 = vmatpush2.xpose.msra.mxu0 %v1143
        %1145 = vmatprep.subr.mxu0 0.0
        %v1146 = vand.u32 %v690, 4294901760
        %v1147 = vsub.f32 %v690, %v1146
        %1148 = vmatpush2.xpose.msra.mxu0 %v1147
        %1149 = vmatprep.subr.mxu0 0.0
        %v1150 = vand.u32 %v687, 4294901760
        %v1151 = vsub.f32 %v687, %v1150
        %1152 = vmatpush2.xpose.msra.mxu0 %v1151
        %1153 = vmatprep.subr.mxu0 0.0
        %v1154 = vand.u32 %v684, 4294901760
        %v1155 = vsub.f32 %v684, %v1154
        %1156 = vmatpush2.xpose.msra.mxu0 %v1155
        %1157 = vmatprep.subr.mxu0 0.0
        %v1158 = vand.u32 %v681, 4294901760
        %v1159 = vsub.f32 %v681, %v1158
        %1160 = vmatpush2.xpose.msra.mxu0 %v1159
        %1161 = vmatprep.subr.mxu0 0.0
        %v1162 = vand.u32 %v678, 4294901760
        %v1163 = vsub.f32 %v678, %v1162
        %1164 = vmatpush2.xpose.msra.mxu0 %v1163
        %1165 = vmatprep.subr.mxu0 0.0
        %v1166 = vand.u32 %v675, 4294901760
        %v1167 = vsub.f32 %v675, %v1166
        %1168 = vmatpush2.xpose.msra.mxu0 %v1167
        %1169 = vmatprep.subr.mxu0 0.0
        %v1170 = vand.u32 %v672, 4294901760
        %v1171 = vsub.f32 %v672, %v1170
        %1172 = vmatpush2.xpose.msra.mxu0 %v1171
        %1173 = vmatprep.subr.mxu0 0.0
        %v1174 = vand.u32 %v669, 4294901760
        %v1175 = vsub.f32 %v669, %v1174
        %1176 = vmatpush2.xpose.msra.mxu0 %v1175
        %1177 = vmatprep.subr.mxu0 0.0
        %v1178 = vand.u32 %v666, 4294901760
        %v1179 = vsub.f32 %v666, %v1178
        %1180 = vmatpush2.xpose.msra.mxu0 %v1179
        %1181 = vmatprep.mubr.f32.mxu0 0.0
        %v1182 = vand.u32 %v615, 4294901760
        %v1183 = vsub.f32 %v615, %v1182
        %1184 = vmatmul.mubr.f32.gmra.mxu0 %v1183
        %v1185 = vpop.f32.mrf.mxu0
        %v1186 = vadd.f32 %v1049, %v1185
        %v1187 = vpop.f32.mrf.mxu0
        %v1188 = vadd.f32 %v1051, %v1187
        %1189 = vdwg.mxu0
        %1190 = vmatprep.subr.mxu0 0.0
        %v1191 = vand.u32 %v663, 4294901760
        %1192 = vmatpush1.xpose.msra.mxu0 %v1191
        %1193 = vmatprep.subr.mxu0 0.0
        %v1194 = vand.u32 %v660, 4294901760
        %1195 = vmatpush1.xpose.msra.mxu0 %v1194
        %1196 = vmatprep.subr.mxu0 0.0
        %v1197 = vand.u32 %v657, 4294901760
        %1198 = vmatpush1.xpose.msra.mxu0 %v1197
        %1199 = vmatprep.subr.mxu0 0.0
        %v1200 = vand.u32 %v654, 4294901760
        %1201 = vmatpush1.xpose.msra.mxu0 %v1200
        %1202 = vmatprep.subr.mxu0 0.0
        %v1203 = vand.u32 %v651, 4294901760
        %1204 = vmatpush1.xpose.msra.mxu0 %v1203
        %1205 = vmatprep.subr.mxu0 0.0
        %v1206 = vand.u32 %v648, 4294901760
        %1207 = vmatpush1.xpose.msra.mxu0 %v1206
        %1208 = vmatprep.subr.mxu0 0.0
        %v1209 = vand.u32 %v645, 4294901760
        %1210 = vmatpush1.xpose.msra.mxu0 %v1209
        %1211 = vmatprep.subr.mxu0 0.0
        %v1212 = vand.u32 %v642, 4294901760
        %1213 = vmatpush1.xpose.msra.mxu0 %v1212
        %1214 = vmatprep.subr.mxu0 0.0
        %v1215 = vand.u32 %v639, 4294901760
        %1216 = vmatpush1.xpose.msra.mxu0 %v1215
        %1217 = vmatprep.subr.mxu0 0.0
        %v1218 = vand.u32 %v636, 4294901760
        %1219 = vmatpush1.xpose.msra.mxu0 %v1218
        %1220 = vmatprep.subr.mxu0 0.0
        %v1221 = vand.u32 %v633, 4294901760
        %1222 = vmatpush1.xpose.msra.mxu0 %v1221
        %1223 = vmatprep.subr.mxu0 0.0
        %v1224 = vand.u32 %v630, 4294901760
        %1225 = vmatpush1.xpose.msra.mxu0 %v1224
        %1226 = vmatprep.subr.mxu0 0.0
        %v1227 = vand.u32 %v627, 4294901760
        %1228 = vmatpush1.xpose.msra.mxu0 %v1227
        %1229 = vmatprep.subr.mxu0 0.0
        %v1230 = vand.u32 %v624, 4294901760
        %1231 = vmatpush1.xpose.msra.mxu0 %v1230
        %1232 = vmatprep.subr.mxu0 0.0
        %v1233 = vand.u32 %v621, 4294901760
        %1234 = vmatpush1.xpose.msra.mxu0 %v1233
        %1235 = vmatprep.subr.mxu0 0.0
        %v1236 = vand.u32 %v618, 4294901760
        %1237 = vmatpush1.xpose.msra.mxu0 %v1236
        %1238 = vmatprep.subr.mxu0 0.0
        %v1239 = vand.u32 %v711, 4294901760
        %1240 = vmatpush2.xpose.msra.mxu0 %v1239
        %1241 = vmatprep.subr.mxu0 0.0
        %v1242 = vand.u32 %v708, 4294901760
        %1243 = vmatpush2.xpose.msra.mxu0 %v1242
        %1244 = vmatprep.subr.mxu0 0.0
        %v1245 = vand.u32 %v705, 4294901760
        %1246 = vmatpush2.xpose.msra.mxu0 %v1245
        %1247 = vmatprep.subr.mxu0 0.0
        %v1248 = vand.u32 %v702, 4294901760
        %1249 = vmatpush2.xpose.msra.mxu0 %v1248
        %1250 = vmatprep.subr.mxu0 0.0
        %v1251 = vand.u32 %v699, 4294901760
        %1252 = vmatpush2.xpose.msra.mxu0 %v1251
        %1253 = vmatprep.subr.mxu0 0.0
        %v1254 = vand.u32 %v696, 4294901760
        %1255 = vmatpush2.xpose.msra.mxu0 %v1254
        %1256 = vmatprep.subr.mxu0 0.0
        %v1257 = vand.u32 %v693, 4294901760
        %1258 = vmatpush2.xpose.msra.mxu0 %v1257
        %1259 = vmatprep.subr.mxu0 0.0
        %v1260 = vand.u32 %v690, 4294901760
        %1261 = vmatpush2.xpose.msra.mxu0 %v1260
        %1262 = vmatprep.subr.mxu0 0.0
        %v1263 = vand.u32 %v687, 4294901760
        %1264 = vmatpush2.xpose.msra.mxu0 %v1263
        %1265 = vmatprep.subr.mxu0 0.0
        %v1266 = vand.u32 %v684, 4294901760
        %1267 = vmatpush2.xpose.msra.mxu0 %v1266
        %1268 = vmatprep.subr.mxu0 0.0
        %v1269 = vand.u32 %v681, 4294901760
        %1270 = vmatpush2.xpose.msra.mxu0 %v1269
        %1271 = vmatprep.subr.mxu0 0.0
        %v1272 = vand.u32 %v678, 4294901760
        %1273 = vmatpush2.xpose.msra.mxu0 %v1272
        %1274 = vmatprep.subr.mxu0 0.0
        %v1275 = vand.u32 %v675, 4294901760
        %1276 = vmatpush2.xpose.msra.mxu0 %v1275
        %1277 = vmatprep.subr.mxu0 0.0
        %v1278 = vand.u32 %v672, 4294901760
        %1279 = vmatpush2.xpose.msra.mxu0 %v1278
        %1280 = vmatprep.subr.mxu0 0.0
        %v1281 = vand.u32 %v669, 4294901760
        %1282 = vmatpush2.xpose.msra.mxu0 %v1281
        %1283 = vmatprep.subr.mxu0 0.0
        %v1284 = vand.u32 %v666, 4294901760
        %1285 = vmatpush2.xpose.msra.mxu0 %v1284
        %1286 = vmatprep.mubr.f32.mxu0 0.0
        %v1287 = vand.u32 %v615, 4294901760
        %v1288 = vsub.f32 %v615, %v1287
        %v1289 = vand.u32 %v1288, 4294901760
        %1290 = vmatmul.mubr.f32.gmra.mxu0 %v1289
        %v1291 = vpop.f32.mrf.mxu0
        %v1292 = vadd.f32 %v1186, %v1291
        %v1293 = vpop.f32.mrf.mxu0
        %v1294 = vadd.f32 %v1188, %v1293
        %1295 = vdwg.mxu0
        %1296 = vmatprep.subr.mxu0 0.0
        %v1297 = vand.u32 %v663, 4294901760
        %v1298 = vsub.f32 %v663, %v1297
        %v1299 = vand.u32 %v1298, 4294901760
        %1300 = vmatpush1.xpose.msra.mxu0 %v1299
        %1301 = vmatprep.subr.mxu0 0.0
        %v1302 = vand.u32 %v660, 4294901760
        %v1303 = vsub.f32 %v660, %v1302
        %v1304 = vand.u32 %v1303, 4294901760
        %1305 = vmatpush1.xpose.msra.mxu0 %v1304
        %1306 = vmatprep.subr.mxu0 0.0
        %v1307 = vand.u32 %v657, 4294901760
        %v1308 = vsub.f32 %v657, %v1307
        %v1309 = vand.u32 %v1308, 4294901760
        %1310 = vmatpush1.xpose.msra.mxu0 %v1309
        %1311 = vmatprep.subr.mxu0 0.0
        %v1312 = vand.u32 %v654, 4294901760
        %v1313 = vsub.f32 %v654, %v1312
        %v1314 = vand.u32 %v1313, 4294901760
        %1315 = vmatpush1.xpose.msra.mxu0 %v1314
        %1316 = vmatprep.subr.mxu0 0.0
        %v1317 = vand.u32 %v651, 4294901760
        %v1318 = vsub.f32 %v651, %v1317
        %v1319 = vand.u32 %v1318, 4294901760
        %1320 = vmatpush1.xpose.msra.mxu0 %v1319
        %1321 = vmatprep.subr.mxu0 0.0
        %v1322 = vand.u32 %v648, 4294901760
        %v1323 = vsub.f32 %v648, %v1322
        %v1324 = vand.u32 %v1323, 4294901760
        %1325 = vmatpush1.xpose.msra.mxu0 %v1324
        %1326 = vmatprep.subr.mxu0 0.0
        %v1327 = vand.u32 %v645, 4294901760
        %v1328 = vsub.f32 %v645, %v1327
        %v1329 = vand.u32 %v1328, 4294901760
        %1330 = vmatpush1.xpose.msra.mxu0 %v1329
        %1331 = vmatprep.subr.mxu0 0.0
        %v1332 = vand.u32 %v642, 4294901760
        %v1333 = vsub.f32 %v642, %v1332
        %v1334 = vand.u32 %v1333, 4294901760
        %1335 = vmatpush1.xpose.msra.mxu0 %v1334
        %1336 = vmatprep.subr.mxu0 0.0
        %v1337 = vand.u32 %v639, 4294901760
        %v1338 = vsub.f32 %v639, %v1337
        %v1339 = vand.u32 %v1338, 4294901760
        %1340 = vmatpush1.xpose.msra.mxu0 %v1339
        %1341 = vmatprep.subr.mxu0 0.0
        %v1342 = vand.u32 %v636, 4294901760
        %v1343 = vsub.f32 %v636, %v1342
        %v1344 = vand.u32 %v1343, 4294901760
        %1345 = vmatpush1.xpose.msra.mxu0 %v1344
        %1346 = vmatprep.subr.mxu0 0.0
        %v1347 = vand.u32 %v633, 4294901760
        %v1348 = vsub.f32 %v633, %v1347
        %v1349 = vand.u32 %v1348, 4294901760
        %1350 = vmatpush1.xpose.msra.mxu0 %v1349
        %1351 = vmatprep.subr.mxu0 0.0
        %v1352 = vand.u32 %v630, 4294901760
        %v1353 = vsub.f32 %v630, %v1352
        %v1354 = vand.u32 %v1353, 4294901760
        %1355 = vmatpush1.xpose.msra.mxu0 %v1354
        %1356 = vmatprep.subr.mxu0 0.0
        %v1357 = vand.u32 %v627, 4294901760
        %v1358 = vsub.f32 %v627, %v1357
        %v1359 = vand.u32 %v1358, 4294901760
        %1360 = vmatpush1.xpose.msra.mxu0 %v1359
        %1361 = vmatprep.subr.mxu0 0.0
        %v1362 = vand.u32 %v624, 4294901760
        %v1363 = vsub.f32 %v624, %v1362
        %v1364 = vand.u32 %v1363, 4294901760
        %1365 = vmatpush1.xpose.msra.mxu0 %v1364
        %1366 = vmatprep.subr.mxu0 0.0
        %v1367 = vand.u32 %v621, 4294901760
        %v1368 = vsub.f32 %v621, %v1367
        %v1369 = vand.u32 %v1368, 4294901760
        %1370 = vmatpush1.xpose.msra.mxu0 %v1369
        %1371 = vmatprep.subr.mxu0 0.0
        %v1372 = vand.u32 %v618, 4294901760
        %v1373 = vsub.f32 %v618, %v1372
        %v1374 = vand.u32 %v1373, 4294901760
        %1375 = vmatpush1.xpose.msra.mxu0 %v1374
        %1376 = vmatprep.subr.mxu0 0.0
        %v1377 = vand.u32 %v711, 4294901760
        %v1378 = vsub.f32 %v711, %v1377
        %v1379 = vand.u32 %v1378, 4294901760
        %1380 = vmatpush2.xpose.msra.mxu0 %v1379
        %1381 = vmatprep.subr.mxu0 0.0
        %v1382 = vand.u32 %v708, 4294901760
        %v1383 = vsub.f32 %v708, %v1382
        %v1384 = vand.u32 %v1383, 4294901760
        %1385 = vmatpush2.xpose.msra.mxu0 %v1384
        %1386 = vmatprep.subr.mxu0 0.0
        %v1387 = vand.u32 %v705, 4294901760
        %v1388 = vsub.f32 %v705, %v1387
        %v1389 = vand.u32 %v1388, 4294901760
        %1390 = vmatpush2.xpose.msra.mxu0 %v1389
        %1391 = vmatprep.subr.mxu0 0.0
        %v1392 = vand.u32 %v702, 4294901760
        %v1393 = vsub.f32 %v702, %v1392
        %v1394 = vand.u32 %v1393, 4294901760
        %1395 = vmatpush2.xpose.msra.mxu0 %v1394
        %1396 = vmatprep.subr.mxu0 0.0
        %v1397 = vand.u32 %v699, 4294901760
        %v1398 = vsub.f32 %v699, %v1397
        %v1399 = vand.u32 %v1398, 4294901760
        %1400 = vmatpush2.xpose.msra.mxu0 %v1399
        %1401 = vmatprep.subr.mxu0 0.0
        %v1402 = vand.u32 %v696, 4294901760
        %v1403 = vsub.f32 %v696, %v1402
        %v1404 = vand.u32 %v1403, 4294901760
        %1405 = vmatpush2.xpose.msra.mxu0 %v1404
        %1406 = vmatprep.subr.mxu0 0.0
        %v1407 = vand.u32 %v693, 4294901760
        %v1408 = vsub.f32 %v693, %v1407
        %v1409 = vand.u32 %v1408, 4294901760
        %1410 = vmatpush2.xpose.msra.mxu0 %v1409
        %1411 = vmatprep.subr.mxu0 0.0
        %v1412 = vand.u32 %v690, 4294901760
        %v1413 = vsub.f32 %v690, %v1412
        %v1414 = vand.u32 %v1413, 4294901760
        %1415 = vmatpush2.xpose.msra.mxu0 %v1414
        %1416 = vmatprep.subr.mxu0 0.0
        %v1417 = vand.u32 %v687, 4294901760
        %v1418 = vsub.f32 %v687, %v1417
        %v1419 = vand.u32 %v1418, 4294901760
        %1420 = vmatpush2.xpose.msra.mxu0 %v1419
        %1421 = vmatprep.subr.mxu0 0.0
        %v1422 = vand.u32 %v684, 4294901760
        %v1423 = vsub.f32 %v684, %v1422
        %v1424 = vand.u32 %v1423, 4294901760
        %1425 = vmatpush2.xpose.msra.mxu0 %v1424
        %1426 = vmatprep.subr.mxu0 0.0
        %v1427 = vand.u32 %v681, 4294901760
        %v1428 = vsub.f32 %v681, %v1427
        %v1429 = vand.u32 %v1428, 4294901760
        %1430 = vmatpush2.xpose.msra.mxu0 %v1429
        %1431 = vmatprep.subr.mxu0 0.0
        %v1432 = vand.u32 %v678, 4294901760
        %v1433 = vsub.f32 %v678, %v1432
        %v1434 = vand.u32 %v1433, 4294901760
        %1435 = vmatpush2.xpose.msra.mxu0 %v1434
        %1436 = vmatprep.subr.mxu0 0.0
        %v1437 = vand.u32 %v675, 4294901760
        %v1438 = vsub.f32 %v675, %v1437
        %v1439 = vand.u32 %v1438, 4294901760
        %1440 = vmatpush2.xpose.msra.mxu0 %v1439
        %1441 = vmatprep.subr.mxu0 0.0
        %v1442 = vand.u32 %v672, 4294901760
        %v1443 = vsub.f32 %v672, %v1442
        %v1444 = vand.u32 %v1443, 4294901760
        %1445 = vmatpush2.xpose.msra.mxu0 %v1444
        %1446 = vmatprep.subr.mxu0 0.0
        %v1447 = vand.u32 %v669, 4294901760
        %v1448 = vsub.f32 %v669, %v1447
        %v1449 = vand.u32 %v1448, 4294901760
        %1450 = vmatpush2.xpose.msra.mxu0 %v1449
        %1451 = vmatprep.subr.mxu0 0.0
        %v1452 = vand.u32 %v666, 4294901760
        %v1453 = vsub.f32 %v666, %v1452
        %v1454 = vand.u32 %v1453, 4294901760
        %1455 = vmatpush2.xpose.msra.mxu0 %v1454
        %1456 = vmatprep.mubr.f32.mxu0 0.0
        %v1457 = vand.u32 %v615, 4294901760
        %1458 = vmatmul.mubr.f32.gmra.mxu0 %v1457
        %v1459 = vpop.f32.mrf.mxu0
        %v1460 = vadd.f32 %v1292, %v1459
        %v1461 = vpop.f32.mrf.mxu0
        %v1462 = vadd.f32 %v1294, %v1461
        %1463 = vdwg.mxu0
        %1464 = vmatprep.subr.mxu0 0.0
        %v1465 = vand.u32 %v663, 4294901760
        %1466 = vmatpush1.xpose.msra.mxu0 %v1465
        %1467 = vmatprep.subr.mxu0 0.0
        %v1468 = vand.u32 %v660, 4294901760
        %1469 = vmatpush1.xpose.msra.mxu0 %v1468
        %1470 = vmatprep.subr.mxu0 0.0
        %v1471 = vand.u32 %v657, 4294901760
        %1472 = vmatpush1.xpose.msra.mxu0 %v1471
        %1473 = vmatprep.subr.mxu0 0.0
        %v1474 = vand.u32 %v654, 4294901760
        %1475 = vmatpush1.xpose.msra.mxu0 %v1474
        %1476 = vmatprep.subr.mxu0 0.0
        %v1477 = vand.u32 %v651, 4294901760
        %1478 = vmatpush1.xpose.msra.mxu0 %v1477
        %1479 = vmatprep.subr.mxu0 0.0
        %v1480 = vand.u32 %v648, 4294901760
        %1481 = vmatpush1.xpose.msra.mxu0 %v1480
        %1482 = vmatprep.subr.mxu0 0.0
        %v1483 = vand.u32 %v645, 4294901760
        %1484 = vmatpush1.xpose.msra.mxu0 %v1483
        %1485 = vmatprep.subr.mxu0 0.0
        %v1486 = vand.u32 %v642, 4294901760
        %1487 = vmatpush1.xpose.msra.mxu0 %v1486
        %1488 = vmatprep.subr.mxu0 0.0
        %v1489 = vand.u32 %v639, 4294901760
        %1490 = vmatpush1.xpose.msra.mxu0 %v1489
        %1491 = vmatprep.subr.mxu0 0.0
        %v1492 = vand.u32 %v636, 4294901760
        %1493 = vmatpush1.xpose.msra.mxu0 %v1492
        %1494 = vmatprep.subr.mxu0 0.0
        %v1495 = vand.u32 %v633, 4294901760
        %1496 = vmatpush1.xpose.msra.mxu0 %v1495
        %1497 = vmatprep.subr.mxu0 0.0
        %v1498 = vand.u32 %v630, 4294901760
        %1499 = vmatpush1.xpose.msra.mxu0 %v1498
        %1500 = vmatprep.subr.mxu0 0.0
        %v1501 = vand.u32 %v627, 4294901760
        %1502 = vmatpush1.xpose.msra.mxu0 %v1501
        %1503 = vmatprep.subr.mxu0 0.0
        %v1504 = vand.u32 %v624, 4294901760
        %1505 = vmatpush1.xpose.msra.mxu0 %v1504
        %1506 = vmatprep.subr.mxu0 0.0
        %v1507 = vand.u32 %v621, 4294901760
        %1508 = vmatpush1.xpose.msra.mxu0 %v1507
        %1509 = vmatprep.subr.mxu0 0.0
        %v1510 = vand.u32 %v618, 4294901760
        %1511 = vmatpush1.xpose.msra.mxu0 %v1510
        %1512 = vmatprep.subr.mxu0 0.0
        %v1513 = vand.u32 %v711, 4294901760
        %1514 = vmatpush2.xpose.msra.mxu0 %v1513
        %1515 = vmatprep.subr.mxu0 0.0
        %v1516 = vand.u32 %v708, 4294901760
        %1517 = vmatpush2.xpose.msra.mxu0 %v1516
        %1518 = vmatprep.subr.mxu0 0.0
        %v1519 = vand.u32 %v705, 4294901760
        %1520 = vmatpush2.xpose.msra.mxu0 %v1519
        %1521 = vmatprep.subr.mxu0 0.0
        %v1522 = vand.u32 %v702, 4294901760
        %1523 = vmatpush2.xpose.msra.mxu0 %v1522
        %1524 = vmatprep.subr.mxu0 0.0
        %v1525 = vand.u32 %v699, 4294901760
        %1526 = vmatpush2.xpose.msra.mxu0 %v1525
        %1527 = vmatprep.subr.mxu0 0.0
        %v1528 = vand.u32 %v696, 4294901760
        %1529 = vmatpush2.xpose.msra.mxu0 %v1528
        %1530 = vmatprep.subr.mxu0 0.0
        %v1531 = vand.u32 %v693, 4294901760
        %1532 = vmatpush2.xpose.msra.mxu0 %v1531
        %1533 = vmatprep.subr.mxu0 0.0
        %v1534 = vand.u32 %v690, 4294901760
        %1535 = vmatpush2.xpose.msra.mxu0 %v1534
        %1536 = vmatprep.subr.mxu0 0.0
        %v1537 = vand.u32 %v687, 4294901760
        %1538 = vmatpush2.xpose.msra.mxu0 %v1537
        %1539 = vmatprep.subr.mxu0 0.0
        %v1540 = vand.u32 %v684, 4294901760
        %1541 = vmatpush2.xpose.msra.mxu0 %v1540
        %1542 = vmatprep.subr.mxu0 0.0
        %v1543 = vand.u32 %v681, 4294901760
        %1544 = vmatpush2.xpose.msra.mxu0 %v1543
        %1545 = vmatprep.subr.mxu0 0.0
        %v1546 = vand.u32 %v678, 4294901760
        %1547 = vmatpush2.xpose.msra.mxu0 %v1546
        %1548 = vmatprep.subr.mxu0 0.0
        %v1549 = vand.u32 %v675, 4294901760
        %1550 = vmatpush2.xpose.msra.mxu0 %v1549
        %1551 = vmatprep.subr.mxu0 0.0
        %v1552 = vand.u32 %v672, 4294901760
        %1553 = vmatpush2.xpose.msra.mxu0 %v1552
        %1554 = vmatprep.subr.mxu0 0.0
        %v1555 = vand.u32 %v669, 4294901760
        %1556 = vmatpush2.xpose.msra.mxu0 %v1555
        %1557 = vmatprep.subr.mxu0 0.0
        %v1558 = vand.u32 %v666, 4294901760
        %1559 = vmatpush2.xpose.msra.mxu0 %v1558
        %1560 = vmatprep.mubr.f32.mxu0 0.0
        %v1561 = vand.u32 %v615, 4294901760
        %1562 = vmatmul.mubr.f32.gmra.mxu0 %v1561
        %v1563 = vpop.f32.mrf.mxu0
        %v1564 = vadd.f32 %v1460, %v1563
        %v1565 = vpop.f32.mrf.mxu0
        %v1566 = vadd.f32 %v1462, %v1565
        %1567 = vdwg.mxu0
        %v1568 = vrsqrt.pop %v1564
        %v1569 = vmul.f32 %v1564, %v1568
        %vm1570 = vcmp.eq.f32.partialorder %v1564, inf
        %v1571 = vsel %vm1570, %v1564, %v1569
        %vm1572 = vcmp.eq.f32.partialorder %v1564, 0.0
        %v1573 = vand.u32 %v1564, 2147483648
        %v1574 = vsel %vm1572, %v1573, %v1571
        %v1575 = vrsqrt.pop %v1566
        %v1576 = vmul.f32 %v1566, %v1575
        %vm1577 = vcmp.eq.f32.partialorder %v1566, inf
        %v1578 = vsel %vm1577, %v1566, %v1576
        %vm1579 = vcmp.eq.f32.partialorder %v1566, 0.0
        %v1580 = vand.u32 %v1566, 2147483648
        %v1581 = vsel %vm1579, %v1580, %v1578
        %v1582 = vmul.f32 %v541, %v541
        %v1583 = vmul.f32 %v543, %v543
        %v1584 = vmul.f32 %v1582, %v1582
        %v1585 = vmul.f32 %v1583, %v1583
        %v1586 = vmul.f32 %v1582, %v1584
        %v1587 = vmul.f32 %v1583, %v1585
        %v1588 = vmul.f32 %v1574, %v1586
        %v1589 = vmul.f32 %v1581, %v1587
        %v1590 = vmul.f32 %v1588, %v599
        %v1591 = vmul.f32 %v1589, %v600
        %v1592 = vadd.s32 %v602, 128
        %v1593 = vmax.f32 %v1590, %v1591
        %1594 = vmax.xlane.f32.xlu0 %v1593
        %v1595 = vpop.xlane.xlu0 %1594
        %vm1596 = vcmp.eq.f32.partialorder %v1590, %v1595
        %vm1597 = vcmp.eq.f32.partialorder %v1591, %v1595
        %v1598 = vsel %vm1596, %v602, 256
        %v1599 = vsel %vm1597, %v1592, 256
        %vm1600 = vcmp.lt.s32.totalorder %v1598, %v1599
        %v1601 = vsel %vm1600, %v1598, %v1599
        %v1602 = vand.u32 %v1601, 65535
        %v1603 = vshra.s32 %v1601, 16
        %v1604 = vcvt.s32.f32 %v1602
        %v1605 = vcvt.s32.f32 %v1603
        %1606 = vmin.xlane.f32.xlu0 %v1605
        %v1607 = vpop.xlane.xlu0 %1606
        %vm1608 = vcmp.eq.f32.partialorder %v1605, %v1607
        %v1609 = vsel %vm1608, %v1604, inf
        %1610 = vmin.xlane.f32.xlu0 %v1609
        %v1611 = vpop.xlane.xlu0 %1610
        %v1612 = vcvt.f32.s32 %v1611
        %v1613 = vcvt.f32.s32 %v1607
        %v1614 = vshll.u32 %v1613, 16
        %v1615 = vadd.s32 %v1614, %v1612
        %vm1616 = vcmp.eq.s32.totalorder %v602, %v1615
        %vm1617 = vcmp.eq.s32.totalorder %v1592, %v1615
        %v1618 = vsel %vm1616, -inf, %v1590
        %v1619 = vsel %vm1617, -inf, %v1591
        %v1620 = vmax.f32 %v1618, %v1619
        %1621 = vmax.xlane.f32.xlu0 %v1620
        %v1622 = vpop.xlane.xlu0 %1621
        %vm1623 = vcmp.eq.f32.partialorder %v1618, %v1622
        %vm1624 = vcmp.eq.f32.partialorder %v1619, %v1622
        %v1625 = vsel %vm1623, %v602, 256
        %v1626 = vsel %vm1624, %v1592, 256
        %vm1627 = vcmp.lt.s32.totalorder %v1625, %v1626
        %v1628 = vsel %vm1627, %v1625, %v1626
        %v1629 = vand.u32 %v1628, 65535
        %v1630 = vshra.s32 %v1628, 16
        %v1631 = vcvt.s32.f32 %v1629
        %v1632 = vcvt.s32.f32 %v1630
        %1633 = vmin.xlane.f32.xlu0 %v1632
        %v1634 = vpop.xlane.xlu0 %1633
        %vm1635 = vcmp.eq.f32.partialorder %v1632, %v1634
        %v1636 = vsel %vm1635, %v1631, inf
        %1637 = vmin.xlane.f32.xlu0 %v1636
        %v1638 = vpop.xlane.xlu0 %1637
        %v1639 = vcvt.f32.s32 %v1638
        %v1640 = vcvt.f32.s32 %v1634
        %v1641 = vshll.u32 %v1640, 16
        %v1642 = vadd.s32 %v1641, %v1639
        %vm1643 = vcmp.eq.s32.totalorder %v602, %v1642
        %vm1644 = vcmp.eq.s32.totalorder %v1592, %v1642
        %v1645 = vsel %vm1643, -inf, %v1618
        %v1646 = vsel %vm1644, -inf, %v1619
        %v1647 = vmax.f32 %v1645, %v1646
        %1648 = vmax.xlane.f32.xlu0 %v1647
        %v1649 = vpop.xlane.xlu0 %1648
        %vm1650 = vcmp.eq.f32.partialorder %v1645, %v1649
        %vm1651 = vcmp.eq.f32.partialorder %v1646, %v1649
        %v1652 = vsel %vm1650, %v602, 256
        %v1653 = vsel %vm1651, %v1592, 256
        %vm1654 = vcmp.lt.s32.totalorder %v1652, %v1653
        %v1655 = vsel %vm1654, %v1652, %v1653
        %v1656 = vand.u32 %v1655, 65535
        %v1657 = vshra.s32 %v1655, 16
        %v1658 = vcvt.s32.f32 %v1656
        %v1659 = vcvt.s32.f32 %v1657
        %1660 = vmin.xlane.f32.xlu0 %v1659
        %v1661 = vpop.xlane.xlu0 %1660
        %vm1662 = vcmp.eq.f32.partialorder %v1659, %v1661
        %v1663 = vsel %vm1662, %v1658, inf
        %1664 = vmin.xlane.f32.xlu0 %v1663
        %v1665 = vpop.xlane.xlu0 %1664
        %v1666 = vcvt.f32.s32 %v1665
        %v1667 = vcvt.f32.s32 %v1661
        %v1668 = vshll.u32 %v1667, 16
        %v1669 = vadd.s32 %v1668, %v1666
        %vm1670 = vcmp.eq.s32.totalorder %v602, %v1669
        %vm1671 = vcmp.eq.s32.totalorder %v1592, %v1669
        %v1672 = vsel %vm1670, -inf, %v1645
        %v1673 = vsel %vm1671, -inf, %v1646
        %v1674 = vmax.f32 %v1672, %v1673
        %1675 = vmax.xlane.f32.xlu0 %v1674
        %v1676 = vpop.xlane.xlu0 %1675
        %vm1677 = vcmp.eq.f32.partialorder %v1672, %v1676
        %vm1678 = vcmp.eq.f32.partialorder %v1673, %v1676
        %v1679 = vsel %vm1677, %v602, 256
        %v1680 = vsel %vm1678, %v1592, 256
        %vm1681 = vcmp.lt.s32.totalorder %v1679, %v1680
        %v1682 = vsel %vm1681, %v1679, %v1680
        %v1683 = vand.u32 %v1682, 65535
        %v1684 = vshra.s32 %v1682, 16
        %v1685 = vcvt.s32.f32 %v1683
        %v1686 = vcvt.s32.f32 %v1684
        %1687 = vmin.xlane.f32.xlu0 %v1686
        %v1688 = vpop.xlane.xlu0 %1687
        %vm1689 = vcmp.eq.f32.partialorder %v1686, %v1688
        %v1690 = vsel %vm1689, %v1685, inf
        %1691 = vmin.xlane.f32.xlu0 %v1690
        %v1692 = vpop.xlane.xlu0 %1691
        %v1693 = vcvt.f32.s32 %v1692
        %v1694 = vcvt.f32.s32 %v1688
        %v1695 = vshll.u32 %v1694, 16
        %v1696 = vadd.s32 %v1695, %v1693
        %vm1697 = vcmp.eq.s32.totalorder %v602, %v1696
        %vm1698 = vcmp.eq.s32.totalorder %v1592, %v1696
        %v1699 = vsel %vm1697, -inf, %v1672
        %v1700 = vsel %vm1698, -inf, %v1673
        %v1701 = vmax.f32 %v1699, %v1700
        %1702 = vmax.xlane.f32.xlu0 %v1701
        %v1703 = vpop.xlane.xlu0 %1702
        %vm1704 = vcmp.eq.f32.partialorder %v1699, %v1703
        %vm1705 = vcmp.eq.f32.partialorder %v1700, %v1703
        %v1706 = vsel %vm1704, %v602, 256
        %v1707 = vsel %vm1705, %v1592, 256
        %vm1708 = vcmp.lt.s32.totalorder %v1706, %v1707
        %v1709 = vsel %vm1708, %v1706, %v1707
        %v1710 = vand.u32 %v1709, 65535
        %v1711 = vshra.s32 %v1709, 16
        %v1712 = vcvt.s32.f32 %v1710
        %v1713 = vcvt.s32.f32 %v1711
        %1714 = vmin.xlane.f32.xlu0 %v1713
        %v1715 = vpop.xlane.xlu0 %1714
        %vm1716 = vcmp.eq.f32.partialorder %v1713, %v1715
        %v1717 = vsel %vm1716, %v1712, inf
        %1718 = vmin.xlane.f32.xlu0 %v1717
        %v1719 = vpop.xlane.xlu0 %1718
        %v1720 = vcvt.f32.s32 %v1719
        %v1721 = vcvt.f32.s32 %v1715
        %v1722 = vshll.u32 %v1721, 16
        %v1723 = vadd.s32 %v1722, %v1720
        %vm1724 = vcmp.eq.s32.totalorder %v602, %v1723
        %vm1725 = vcmp.eq.s32.totalorder %v1592, %v1723
        %v1726 = vsel %vm1724, -inf, %v1699
        %v1727 = vsel %vm1725, -inf, %v1700
        %v1728 = vmax.f32 %v1726, %v1727
        %1729 = vmax.xlane.f32.xlu0 %v1728
        %v1730 = vpop.xlane.xlu0 %1729
        %vm1731 = vcmp.eq.f32.partialorder %v1726, %v1730
        %vm1732 = vcmp.eq.f32.partialorder %v1727, %v1730
        %v1733 = vsel %vm1731, %v602, 256
        %v1734 = vsel %vm1732, %v1592, 256
        %vm1735 = vcmp.lt.s32.totalorder %v1733, %v1734
        %v1736 = vsel %vm1735, %v1733, %v1734
        %v1737 = vand.u32 %v1736, 65535
        %v1738 = vshra.s32 %v1736, 16
        %v1739 = vcvt.s32.f32 %v1737
        %v1740 = vcvt.s32.f32 %v1738
        %1741 = vmin.xlane.f32.xlu0 %v1740
        %v1742 = vpop.xlane.xlu0 %1741
        %vm1743 = vcmp.eq.f32.partialorder %v1740, %v1742
        %v1744 = vsel %vm1743, %v1739, inf
        %1745 = vmin.xlane.f32.xlu0 %v1744
        %v1746 = vpop.xlane.xlu0 %1745
        %v1747 = vcvt.f32.s32 %v1746
        %v1748 = vcvt.f32.s32 %v1742
        %v1749 = vshll.u32 %v1748, 16
        %v1750 = vadd.s32 %v1749, %v1747
        %vm1751 = vcmp.eq.s32.totalorder %v602, %v1750
        %vm1752 = vcmp.eq.s32.totalorder %v1592, %v1750
        %v1753 = vsel %vm1751, -inf, %v1726
        %v1754 = vsel %vm1752, -inf, %v1727
        %v1755 = vmax.f32 %v1753, %v1754
        %1756 = vmax.xlane.f32.xlu0 %v1755
        %v1757 = vpop.xlane.xlu0 %1756
        %vm1758 = vcmp.eq.f32.partialorder %v1753, %v1757
        %vm1759 = vcmp.eq.f32.partialorder %v1754, %v1757
        %v1760 = vsel %vm1758, %v602, 256
        %v1761 = vsel %vm1759, %v1592, 256
        %vm1762 = vcmp.lt.s32.totalorder %v1760, %v1761
        %v1763 = vsel %vm1762, %v1760, %v1761
        %v1764 = vand.u32 %v1763, 65535
        %v1765 = vshra.s32 %v1763, 16
        %v1766 = vcvt.s32.f32 %v1764
        %v1767 = vcvt.s32.f32 %v1765
        %1768 = vmin.xlane.f32.xlu0 %v1767
        %v1769 = vpop.xlane.xlu0 %1768
        %vm1770 = vcmp.eq.f32.partialorder %v1767, %v1769
        %v1771 = vsel %vm1770, %v1766, inf
        %1772 = vmin.xlane.f32.xlu0 %v1771
        %v1773 = vpop.xlane.xlu0 %1772
        %v1774 = vcvt.f32.s32 %v1773
        %v1775 = vcvt.f32.s32 %v1769
        %v1776 = vshll.u32 %v1775, 16
        %v1777 = vadd.s32 %v1776, %v1774
        %vm1778 = vcmp.eq.s32.totalorder %v602, %v1777
        %vm1779 = vcmp.eq.s32.totalorder %v1592, %v1777
        %v1780 = vsel %vm1778, -inf, %v1753
        %v1781 = vsel %vm1779, -inf, %v1754
        %v1782 = vmax.f32 %v1780, %v1781
        %1783 = vmax.xlane.f32.xlu0 %v1782
        %v1784 = vpop.xlane.xlu0 %1783
        %vm1785 = vcmp.eq.f32.partialorder %v1780, %v1784
        %vm1786 = vcmp.eq.f32.partialorder %v1781, %v1784
        %v1787 = vsel %vm1785, %v602, 256
        %v1788 = vsel %vm1786, %v1592, 256
        %vm1789 = vcmp.lt.s32.totalorder %v1787, %v1788
        %v1790 = vsel %vm1789, %v1787, %v1788
        %v1791 = vand.u32 %v1790, 65535
        %v1792 = vshra.s32 %v1790, 16
        %v1793 = vcvt.s32.f32 %v1791
        %v1794 = vcvt.s32.f32 %v1792
        %1795 = vmin.xlane.f32.xlu0 %v1794
        %v1796 = vpop.xlane.xlu0 %1795
        %vm1797 = vcmp.eq.f32.partialorder %v1794, %v1796
        %v1798 = vsel %vm1797, %v1793, inf
        %1799 = vmin.xlane.f32.xlu0 %v1798
        %v1800 = vpop.xlane.xlu0 %1799
        %v1801 = vcvt.f32.s32 %v1800
        %v1802 = vcvt.f32.s32 %v1796
        %v1803 = vshll.u32 %v1802, 16
        %v1804 = vadd.s32 %v1803, %v1801
        %vm1805 = vcmp.eq.s32.totalorder %v602, %v1804
        %vm1806 = vcmp.eq.s32.totalorder %v1592, %v1804
        %v1807 = vsel %vm1805, -inf, %v1780
        %v1808 = vsel %vm1806, -inf, %v1781
        %v1809 = vmax.f32 %v1807, %v1808
        %1810 = vmax.xlane.f32.xlu0 %v1809
        %v1811 = vpop.xlane.xlu0 %1810
        %vm1812 = vcmp.eq.f32.partialorder %v1807, %v1811
        %vm1813 = vcmp.eq.f32.partialorder %v1808, %v1811
        %v1814 = vsel %vm1812, %v602, 256
        %v1815 = vsel %vm1813, %v1592, 256
        %vm1816 = vcmp.lt.s32.totalorder %v1814, %v1815
        %v1817 = vsel %vm1816, %v1814, %v1815
        %v1818 = vand.u32 %v1817, 65535
        %v1819 = vshra.s32 %v1817, 16
        %v1820 = vcvt.s32.f32 %v1818
        %v1821 = vcvt.s32.f32 %v1819
        %1822 = vmin.xlane.f32.xlu0 %v1821
        %v1823 = vpop.xlane.xlu0 %1822
        %vm1824 = vcmp.eq.f32.partialorder %v1821, %v1823
        %v1825 = vsel %vm1824, %v1820, inf
        %1826 = vmin.xlane.f32.xlu0 %v1825
        %v1827 = vpop.xlane.xlu0 %1826
        %v1828 = vcvt.f32.s32 %v1827
        %v1829 = vcvt.f32.s32 %v1823
        %v1830 = vshll.u32 %v1829, 16
        %v1831 = vadd.s32 %v1830, %v1828
        %vm1832 = vcmp.eq.s32.totalorder %v602, %v1831
        %vm1833 = vcmp.eq.s32.totalorder %v1592, %v1831
        %v1834 = vsel %vm1832, -inf, %v1807
        %v1835 = vsel %vm1833, -inf, %v1808
        %v1836 = vmax.f32 %v1834, %v1835
        %1837 = vmax.xlane.f32.xlu0 %v1836
        %v1838 = vpop.xlane.xlu0 %1837
        %vm1839 = vcmp.eq.f32.partialorder %v1834, %v1838
        %vm1840 = vcmp.eq.f32.partialorder %v1835, %v1838
        %v1841 = vsel %vm1839, %v602, 256
        %v1842 = vsel %vm1840, %v1592, 256
        %vm1843 = vcmp.lt.s32.totalorder %v1841, %v1842
        %v1844 = vsel %vm1843, %v1841, %v1842
        %v1845 = vand.u32 %v1844, 65535
        %v1846 = vshra.s32 %v1844, 16
        %v1847 = vcvt.s32.f32 %v1845
        %v1848 = vcvt.s32.f32 %v1846
        %1849 = vmin.xlane.f32.xlu0 %v1848
        %v1850 = vpop.xlane.xlu0 %1849
        %vm1851 = vcmp.eq.f32.partialorder %v1848, %v1850
        %v1852 = vsel %vm1851, %v1847, inf
        %1853 = vmin.xlane.f32.xlu0 %v1852
        %v1854 = vpop.xlane.xlu0 %1853
        %v1855 = vcvt.f32.s32 %v1854
        %v1856 = vcvt.f32.s32 %v1850
        %v1857 = vshll.u32 %v1856, 16
        %v1858 = vadd.s32 %v1857, %v1855
        %vm1859 = vcmp.eq.s32.totalorder %v602, %v1858
        %vm1860 = vcmp.eq.s32.totalorder %v1592, %v1858
        %v1861 = vsel %vm1859, -inf, %v1834
        %v1862 = vsel %vm1860, -inf, %v1835
        %vm1863 = vcmp.lt.f32.partialorder %v1861, %v1590
        %vm1864 = vcmp.lt.f32.partialorder %v1862, %v1591
        %v1865 = vsel %vm1863, 1, 0
        %v1866 = vsel %vm1864, 1, 0
        %v1867 = vcvt.s32.f32 %v1865
        %v1868 = vcvt.s32.f32 %v1866
        %v1869 = vmul.f32 %v1867, %v599
        %v1870 = vmul.f32 %v1868, %v600
        %1871 = vset.pattern.permute.xlu0 5
        %1872 = vperm.xlu0 %1871, %v383
        %v1873 = vpop.permute.xlu0 %1872
        %v1875 = vmul.f32 %v1869, %v1873
        %v1876 = vmul.f32 %v1870, %v1873
        %v1877 = vrot.slane %v1875, 4
        %v1878 = vadd.f32 %v1875, %v1877
        %v1879 = vrot.slane %v1878, 2
        %v1880 = vadd.f32 %v1878, %v1879
        %v1881 = vrot.slane %v1880, 1
        %v1882 = vadd.f32 %v1880, %v1881
        %v1883 = vrot.slane %v1876, 4
        %v1884 = vadd.f32 %v1876, %v1883
        %v1885 = vrot.slane %v1884, 2
        %v1886 = vadd.f32 %v1884, %v1885
        %v1887 = vrot.slane %v1886, 1
        %v1888 = vadd.f32 %v1886, %v1887
        %vm1889 = vcmp.gt.f32.partialorder %v1882, 1.0
        %vm1890 = vcmp.gt.f32.partialorder %v1888, 1.0
        %v1891 = vlaneseq
        %v1892 = vshrl.u32 %v1891, 7
        %v1893 = vrot.slane %v541, 4
        %v1894 = vmax.f32 %v541, %v1893
        %v1895 = vrot.slane %v1894, 2
        %v1896 = vmax.f32 %v1894, %v1895
        %v1897 = vrot.slane %v1896, 1
        %v1898 = vmax.f32 %v1896, %v1897
        %v1899 = vrot.slane %v543, 4
        %v1900 = vmax.f32 %v543, %v1899
        %v1901 = vrot.slane %v1900, 2
        %v1902 = vmax.f32 %v1900, %v1901
        %v1903 = vrot.slane %v1902, 1
        %v1904 = vmax.f32 %v1902, %v1903
        %vm1905 = vcmp.eq.f32.partialorder %v541, %v1898
        %vm1906 = vcmp.eq.f32.partialorder %v543, %v1904
        %v1907 = vsel %vm1905, %v1892, 8
        %v1908 = vsel %vm1906, %v1892, 8
        %v1909 = vrot.slane %v1907, 4
        %vm1910 = vcmp.lt.s32.totalorder %v1907, %v1909
        %v1911 = vsel %vm1910, %v1907, %v1909
        %v1912 = vrot.slane %v1911, 2
        %vm1913 = vcmp.lt.s32.totalorder %v1911, %v1912
        %v1914 = vsel %vm1913, %v1911, %v1912
        %v1915 = vrot.slane %v1914, 1
        %vm1916 = vcmp.lt.s32.totalorder %v1914, %v1915
        %v1917 = vsel %vm1916, %v1914, %v1915
        %v1918 = vrot.slane %v1908, 4
        %vm1919 = vcmp.lt.s32.totalorder %v1908, %v1918
        %v1920 = vsel %vm1919, %v1908, %v1918
        %v1921 = vrot.slane %v1920, 2
        %vm1922 = vcmp.lt.s32.totalorder %v1920, %v1921
        %v1923 = vsel %vm1922, %v1920, %v1921
        %v1924 = vrot.slane %v1923, 1
        %vm1925 = vcmp.lt.s32.totalorder %v1923, %v1924
        %v1926 = vsel %vm1925, %v1923, %v1924
        %vm1927 = vcmp.gt.f32.partialorder %v1875, 0.5
        %vm1928 = vcmp.gt.f32.partialorder %v1876, 0.5
        %v1929 = vsel %vm1927, %v1892, 8
        %v1930 = vsel %vm1928, %v1892, 8
        %v1931 = vrot.slane %v1929, 4
        %vm1932 = vcmp.lt.s32.totalorder %v1929, %v1931
        %v1933 = vsel %vm1932, %v1929, %v1931
        %v1934 = vrot.slane %v1933, 2
        %vm1935 = vcmp.lt.s32.totalorder %v1933, %v1934
        %v1936 = vsel %vm1935, %v1933, %v1934
        %v1937 = vrot.slane %v1936, 1
        %vm1938 = vcmp.lt.s32.totalorder %v1936, %v1937
        %v1939 = vsel %vm1938, %v1936, %v1937
        %v1940 = vrot.slane %v1930, 4
        %vm1941 = vcmp.lt.s32.totalorder %v1930, %v1940
        %v1942 = vsel %vm1941, %v1930, %v1940
        %v1943 = vrot.slane %v1942, 2
        %vm1944 = vcmp.lt.s32.totalorder %v1942, %v1943
        %v1945 = vsel %vm1944, %v1942, %v1943
        %v1946 = vrot.slane %v1945, 1
        %vm1947 = vcmp.lt.s32.totalorder %v1945, %v1946
        %v1948 = vsel %vm1947, %v1945, %v1946
        %vm1949 = vcmp.eq.s32.totalorder %v1939, 8
        %vm1950 = vcmp.eq.s32.totalorder %v1948, 8
        %v1951 = vsel %vm1949, 0, %v1939
        %v1952 = vsel %vm1950, 0, %v1948
        %v1953 = vsel %vm1889, %v1917, %v1951
        %v1954 = vsel %vm1890, %v1926, %v1952
        %vm1955 = vcmp.lt.f32.partialorder %v1882, 0.5
        %vm1956 = vcmp.lt.f32.partialorder %v1888, 0.5
        %vm1957 = vmxor %vm1955, 1
        %vm1958 = vmxor %vm1956, 1
        %v1959 = vsel %vm1957, 1, 0
        %v1960 = vsel %vm1958, 1, 0
        %vm1961 = vcmp.eq.s32.totalorder %v1892, %v1953
        %vm1962 = vcmp.eq.s32.totalorder %v1892, %v1954
        %v1963 = vsel %vm1961, 1, 0
        %v1964 = vsel %vm1962, 1, 0
        %v1965 = vcvt.s32.f32 %v1963
        %v1966 = vcvt.s32.f32 %v1964
        %v1967 = vmul.f32 %v1588, %v1875
        %v1968 = vmul.f32 %v1589, %v1876
        %v1969 = vsel %vm1961, %v1967, 0.0
        %v1970 = vsel %vm1962, %v1968, 0.0
        %v1971 = vrot.slane %v1969, 4
        %v1972 = vadd.f32 %v1969, %v1971
        %v1973 = vrot.slane %v1972, 2
        %v1974 = vadd.f32 %v1972, %v1973
        %v1975 = vrot.slane %v1974, 1
        %v1976 = vadd.f32 %v1974, %v1975
        %v1977 = vrot.slane %v1970, 4
        %v1978 = vadd.f32 %v1970, %v1977
        %v1979 = vrot.slane %v1978, 2
        %v1980 = vadd.f32 %v1978, %v1979
        %v1981 = vrot.slane %v1980, 1
        %v1982 = vadd.f32 %v1980, %v1981
        %vm1983 = vcmask 64512
        %v1985 = vsel %vm1983, %v384, 0
        %1987 = vmatprep.subr.mxu0 0.0
        %1988 = vmatpush1.msra.mxu0 0.0
        %1989 = vmatprep.subr.mxu0 0.0
        %1990 = vmatpush1.msra.mxu0 0.0
        %1991 = vmatprep.subr.mxu0 0.0
        %1992 = vmatpush1.msra.mxu0 0.0
        %1993 = vmatprep.subr.mxu0 0.0
        %1994 = vmatpush1.msra.mxu0 0.0
        %1995 = vmatprep.subr.mxu0 0.0
        %1996 = vmatpush1.msra.mxu0 0.0
        %1997 = vmatprep.subr.mxu0 0.0
        %1998 = vmatpush1.msra.mxu0 0.0
        %1999 = vmatprep.subr.mxu0 0.0
        %2000 = vmatpush1.msra.mxu0 0.0
        %2001 = vmatprep.subr.mxu0 0.0
        %2002 = vmatpush1.msra.mxu0 0.0
        %2003 = vmatprep.subr.mxu0 0.0
        %2004 = vmatpush1.msra.mxu0 0.0
        %2005 = vmatprep.subr.mxu0 0.0
        %2006 = vmatpush1.msra.mxu0 0.0
        %2007 = vmatprep.subr.mxu0 0.0
        %2008 = vmatpush1.msra.mxu0 0.0
        %2009 = vmatprep.subr.mxu0 0.0
        %2010 = vmatpush1.msra.mxu0 0.0
        %2011 = vmatprep.subr.mxu0 0.0
        %2012 = vmatpush1.msra.mxu0 0.0
        %2013 = vmatprep.subr.mxu0 0.0
        %2014 = vmatpush1.msra.mxu0 0.0
        %2015 = vmatprep.subr.mxu0 0.0
        %2016 = vmatpush1.msra.mxu0 0.0
        %v2017 = vand.u32 %v1966, 4294901760
        %2018 = vmatprep.subr.mxu0 %v2017
        %v2019 = vand.u32 %v1965, 4294901760
        %2020 = vmatpush1.msra.mxu0 %v2019
        %2021 = vmatprep.subr.mxu0 0.0
        %2022 = vmatpush2.msra.mxu0 0.0
        %2023 = vmatprep.subr.mxu0 0.0
        %2024 = vmatpush2.msra.mxu0 0.0
        %2025 = vmatprep.subr.mxu0 0.0
        %2026 = vmatpush2.msra.mxu0 0.0
        %2027 = vmatprep.subr.mxu0 0.0
        %2028 = vmatpush2.msra.mxu0 0.0
        %2029 = vmatprep.subr.mxu0 0.0
        %2030 = vmatpush2.msra.mxu0 0.0
        %2031 = vmatprep.subr.mxu0 0.0
        %2032 = vmatpush2.msra.mxu0 0.0
        %2033 = vmatprep.subr.mxu0 0.0
        %2034 = vmatpush2.msra.mxu0 0.0
        %2035 = vmatprep.subr.mxu0 0.0
        %2036 = vmatpush2.msra.mxu0 0.0
        %2037 = vmatprep.subr.mxu0 0.0
        %2038 = vmatpush2.msra.mxu0 0.0
        %2039 = vmatprep.subr.mxu0 0.0
        %2040 = vmatpush2.msra.mxu0 0.0
        %2041 = vmatprep.subr.mxu0 0.0
        %2042 = vmatpush2.msra.mxu0 0.0
        %2043 = vmatprep.subr.mxu0 0.0
        %2044 = vmatpush2.msra.mxu0 0.0
        %2045 = vmatprep.subr.mxu0 0.0
        %2046 = vmatpush2.msra.mxu0 0.0
        %2047 = vmatprep.subr.mxu0 0.0
        %2048 = vmatpush2.msra.mxu0 0.0
        %2049 = vmatprep.subr.mxu0 0.0
        %2050 = vmatpush2.msra.mxu0 0.0
        %2051 = vmatprep.subr.mxu0 0.0
        %2052 = vmatpush2.msra.mxu0 0.0
        %2053 = vmatprep.mubr.f32.mxu0 0.0
        %v2054 = vand.u32 %v1985, 4294901760
        %v2055 = vsub.f32 %v1985, %v2054
        %v2056 = vand.u32 %v2055, 4294901760
        %v2057 = vsub.f32 %v2055, %v2056
        %v2058 = vand.u32 %v2057, 4294901760
        %2059 = vmatmul.mubr.f32.gmra.mxu0 %v2058
        %v2060 = vpop.f32.mrf.mxu0
        %v2061 = vadd.f32 0.0, %v2060
        %v2062 = vpop.f32.mrf.mxu0
        %v2063 = vadd.f32 0.0, %v2062
        %2064 = vdwg.mxu0
        %2065 = vmatprep.subr.mxu0 0.0
        %2066 = vmatpush1.msra.mxu0 0.0
        %2067 = vmatprep.subr.mxu0 0.0
        %2068 = vmatpush1.msra.mxu0 0.0
        %2069 = vmatprep.subr.mxu0 0.0
        %2070 = vmatpush1.msra.mxu0 0.0
        %2071 = vmatprep.subr.mxu0 0.0
        %2072 = vmatpush1.msra.mxu0 0.0
        %2073 = vmatprep.subr.mxu0 0.0
        %2074 = vmatpush1.msra.mxu0 0.0
        %2075 = vmatprep.subr.mxu0 0.0
        %2076 = vmatpush1.msra.mxu0 0.0
        %2077 = vmatprep.subr.mxu0 0.0
        %2078 = vmatpush1.msra.mxu0 0.0
        %2079 = vmatprep.subr.mxu0 0.0
        %2080 = vmatpush1.msra.mxu0 0.0
        %2081 = vmatprep.subr.mxu0 0.0
        %2082 = vmatpush1.msra.mxu0 0.0
        %2083 = vmatprep.subr.mxu0 0.0
        %2084 = vmatpush1.msra.mxu0 0.0
        %2085 = vmatprep.subr.mxu0 0.0
        %2086 = vmatpush1.msra.mxu0 0.0
        %2087 = vmatprep.subr.mxu0 0.0
        %2088 = vmatpush1.msra.mxu0 0.0
        %2089 = vmatprep.subr.mxu0 0.0
        %2090 = vmatpush1.msra.mxu0 0.0
        %2091 = vmatprep.subr.mxu0 0.0
        %2092 = vmatpush1.msra.mxu0 0.0
        %2093 = vmatprep.subr.mxu0 0.0
        %2094 = vmatpush1.msra.mxu0 0.0
        %v2095 = vand.u32 %v1966, 4294901760
        %v2096 = vsub.f32 %v1966, %v2095
        %v2097 = vand.u32 %v2096, 4294901760
        %v2098 = vsub.f32 %v2096, %v2097
        %v2099 = vand.u32 %v2098, 4294901760
        %2100 = vmatprep.subr.mxu0 %v2099
        %v2101 = vand.u32 %v1965, 4294901760
        %v2102 = vsub.f32 %v1965, %v2101
        %v2103 = vand.u32 %v2102, 4294901760
        %v2104 = vsub.f32 %v2102, %v2103
        %v2105 = vand.u32 %v2104, 4294901760
        %2106 = vmatpush1.msra.mxu0 %v2105
        %2107 = vmatprep.subr.mxu0 0.0
        %2108 = vmatpush2.msra.mxu0 0.0
        %2109 = vmatprep.subr.mxu0 0.0
        %2110 = vmatpush2.msra.mxu0 0.0
        %2111 = vmatprep.subr.mxu0 0.0
        %2112 = vmatpush2.msra.mxu0 0.0
        %2113 = vmatprep.subr.mxu0 0.0
        %2114 = vmatpush2.msra.mxu0 0.0
        %2115 = vmatprep.subr.mxu0 0.0
        %2116 = vmatpush2.msra.mxu0 0.0
        %2117 = vmatprep.subr.mxu0 0.0
        %2118 = vmatpush2.msra.mxu0 0.0
        %2119 = vmatprep.subr.mxu0 0.0
        %2120 = vmatpush2.msra.mxu0 0.0
        %2121 = vmatprep.subr.mxu0 0.0
        %2122 = vmatpush2.msra.mxu0 0.0
        %2123 = vmatprep.subr.mxu0 0.0
        %2124 = vmatpush2.msra.mxu0 0.0
        %2125 = vmatprep.subr.mxu0 0.0
        %2126 = vmatpush2.msra.mxu0 0.0
        %2127 = vmatprep.subr.mxu0 0.0
        %2128 = vmatpush2.msra.mxu0 0.0
        %2129 = vmatprep.subr.mxu0 0.0
        %2130 = vmatpush2.msra.mxu0 0.0
        %2131 = vmatprep.subr.mxu0 0.0
        %2132 = vmatpush2.msra.mxu0 0.0
        %2133 = vmatprep.subr.mxu0 0.0
        %2134 = vmatpush2.msra.mxu0 0.0
        %2135 = vmatprep.subr.mxu0 0.0
        %2136 = vmatpush2.msra.mxu0 0.0
        %2137 = vmatprep.subr.mxu0 0.0
        %2138 = vmatpush2.msra.mxu0 0.0
        %2139 = vmatprep.mubr.f32.mxu0 0.0
        %v2140 = vand.u32 %v1985, 4294901760
        %2141 = vmatmul.mubr.f32.gmra.mxu0 %v2140
        %v2142 = vpop.f32.mrf.mxu0
        %v2143 = vadd.f32 %v2061, %v2142
        %v2144 = vpop.f32.mrf.mxu0
        %v2145 = vadd.f32 %v2063, %v2144
        %2146 = vdwg.mxu0
        %2147 = vmatprep.subr.mxu0 0.0
        %2148 = vmatpush1.msra.mxu0 0.0
        %2149 = vmatprep.subr.mxu0 0.0
        %2150 = vmatpush1.msra.mxu0 0.0
        %2151 = vmatprep.subr.mxu0 0.0
        %2152 = vmatpush1.msra.mxu0 0.0
        %2153 = vmatprep.subr.mxu0 0.0
        %2154 = vmatpush1.msra.mxu0 0.0
        %2155 = vmatprep.subr.mxu0 0.0
        %2156 = vmatpush1.msra.mxu0 0.0
        %2157 = vmatprep.subr.mxu0 0.0
        %2158 = vmatpush1.msra.mxu0 0.0
        %2159 = vmatprep.subr.mxu0 0.0
        %2160 = vmatpush1.msra.mxu0 0.0
        %2161 = vmatprep.subr.mxu0 0.0
        %2162 = vmatpush1.msra.mxu0 0.0
        %2163 = vmatprep.subr.mxu0 0.0
        %2164 = vmatpush1.msra.mxu0 0.0
        %2165 = vmatprep.subr.mxu0 0.0
        %2166 = vmatpush1.msra.mxu0 0.0
        %2167 = vmatprep.subr.mxu0 0.0
        %2168 = vmatpush1.msra.mxu0 0.0
        %2169 = vmatprep.subr.mxu0 0.0
        %2170 = vmatpush1.msra.mxu0 0.0
        %2171 = vmatprep.subr.mxu0 0.0
        %2172 = vmatpush1.msra.mxu0 0.0
        %2173 = vmatprep.subr.mxu0 0.0
        %2174 = vmatpush1.msra.mxu0 0.0
        %2175 = vmatprep.subr.mxu0 0.0
        %2176 = vmatpush1.msra.mxu0 0.0
        %v2177 = vand.u32 %v1966, 4294901760
        %v2178 = vsub.f32 %v1966, %v2177
        %2179 = vmatprep.subr.mxu0 %v2178
        %v2180 = vand.u32 %v1965, 4294901760
        %v2181 = vsub.f32 %v1965, %v2180
        %2182 = vmatpush1.msra.mxu0 %v2181
        %2183 = vmatprep.subr.mxu0 0.0
        %2184 = vmatpush2.msra.mxu0 0.0
        %2185 = vmatprep.subr.mxu0 0.0
        %2186 = vmatpush2.msra.mxu0 0.0
        %2187 = vmatprep.subr.mxu0 0.0
        %2188 = vmatpush2.msra.mxu0 0.0
        %2189 = vmatprep.subr.mxu0 0.0
        %2190 = vmatpush2.msra.mxu0 0.0
        %2191 = vmatprep.subr.mxu0 0.0
        %2192 = vmatpush2.msra.mxu0 0.0
        %2193 = vmatprep.subr.mxu0 0.0
        %2194 = vmatpush2.msra.mxu0 0.0
        %2195 = vmatprep.subr.mxu0 0.0
        %2196 = vmatpush2.msra.mxu0 0.0
        %2197 = vmatprep.subr.mxu0 0.0
        %2198 = vmatpush2.msra.mxu0 0.0
        %2199 = vmatprep.subr.mxu0 0.0
        %2200 = vmatpush2.msra.mxu0 0.0
        %2201 = vmatprep.subr.mxu0 0.0
        %2202 = vmatpush2.msra.mxu0 0.0
        %2203 = vmatprep.subr.mxu0 0.0
        %2204 = vmatpush2.msra.mxu0 0.0
        %2205 = vmatprep.subr.mxu0 0.0
        %2206 = vmatpush2.msra.mxu0 0.0
        %2207 = vmatprep.subr.mxu0 0.0
        %2208 = vmatpush2.msra.mxu0 0.0
        %2209 = vmatprep.subr.mxu0 0.0
        %2210 = vmatpush2.msra.mxu0 0.0
        %2211 = vmatprep.subr.mxu0 0.0
        %2212 = vmatpush2.msra.mxu0 0.0
        %2213 = vmatprep.subr.mxu0 0.0
        %2214 = vmatpush2.msra.mxu0 0.0
        %2215 = vmatprep.mubr.f32.mxu0 0.0
        %v2216 = vand.u32 %v1985, 4294901760
        %v2217 = vsub.f32 %v1985, %v2216
        %2218 = vmatmul.mubr.f32.gmra.mxu0 %v2217
        %v2219 = vpop.f32.mrf.mxu0
        %v2220 = vadd.f32 %v2143, %v2219
        %v2221 = vpop.f32.mrf.mxu0
        %v2222 = vadd.f32 %v2145, %v2221
        %2223 = vdwg.mxu0
        %2224 = vmatprep.subr.mxu0 0.0
        %2225 = vmatpush1.msra.mxu0 0.0
        %2226 = vmatprep.subr.mxu0 0.0
        %2227 = vmatpush1.msra.mxu0 0.0
        %2228 = vmatprep.subr.mxu0 0.0
        %2229 = vmatpush1.msra.mxu0 0.0
        %2230 = vmatprep.subr.mxu0 0.0
        %2231 = vmatpush1.msra.mxu0 0.0
        %2232 = vmatprep.subr.mxu0 0.0
        %2233 = vmatpush1.msra.mxu0 0.0
        %2234 = vmatprep.subr.mxu0 0.0
        %2235 = vmatpush1.msra.mxu0 0.0
        %2236 = vmatprep.subr.mxu0 0.0
        %2237 = vmatpush1.msra.mxu0 0.0
        %2238 = vmatprep.subr.mxu0 0.0
        %2239 = vmatpush1.msra.mxu0 0.0
        %2240 = vmatprep.subr.mxu0 0.0
        %2241 = vmatpush1.msra.mxu0 0.0
        %2242 = vmatprep.subr.mxu0 0.0
        %2243 = vmatpush1.msra.mxu0 0.0
        %2244 = vmatprep.subr.mxu0 0.0
        %2245 = vmatpush1.msra.mxu0 0.0
        %2246 = vmatprep.subr.mxu0 0.0
        %2247 = vmatpush1.msra.mxu0 0.0
        %2248 = vmatprep.subr.mxu0 0.0
        %2249 = vmatpush1.msra.mxu0 0.0
        %2250 = vmatprep.subr.mxu0 0.0
        %2251 = vmatpush1.msra.mxu0 0.0
        %2252 = vmatprep.subr.mxu0 0.0
        %2253 = vmatpush1.msra.mxu0 0.0
        %v2254 = vand.u32 %v1966, 4294901760
        %2255 = vmatprep.subr.mxu0 %v2254
        %v2256 = vand.u32 %v1965, 4294901760
        %2257 = vmatpush1.msra.mxu0 %v2256
        %2258 = vmatprep.subr.mxu0 0.0
        %2259 = vmatpush2.msra.mxu0 0.0
        %2260 = vmatprep.subr.mxu0 0.0
        %2261 = vmatpush2.msra.mxu0 0.0
        %2262 = vmatprep.subr.mxu0 0.0
        %2263 = vmatpush2.msra.mxu0 0.0
        %2264 = vmatprep.subr.mxu0 0.0
        %2265 = vmatpush2.msra.mxu0 0.0
        %2266 = vmatprep.subr.mxu0 0.0
        %2267 = vmatpush2.msra.mxu0 0.0
        %2268 = vmatprep.subr.mxu0 0.0
        %2269 = vmatpush2.msra.mxu0 0.0
        %2270 = vmatprep.subr.mxu0 0.0
        %2271 = vmatpush2.msra.mxu0 0.0
        %2272 = vmatprep.subr.mxu0 0.0
        %2273 = vmatpush2.msra.mxu0 0.0
        %2274 = vmatprep.subr.mxu0 0.0
        %2275 = vmatpush2.msra.mxu0 0.0
        %2276 = vmatprep.subr.mxu0 0.0
        %2277 = vmatpush2.msra.mxu0 0.0
        %2278 = vmatprep.subr.mxu0 0.0
        %2279 = vmatpush2.msra.mxu0 0.0
        %2280 = vmatprep.subr.mxu0 0.0
        %2281 = vmatpush2.msra.mxu0 0.0
        %2282 = vmatprep.subr.mxu0 0.0
        %2283 = vmatpush2.msra.mxu0 0.0
        %2284 = vmatprep.subr.mxu0 0.0
        %2285 = vmatpush2.msra.mxu0 0.0
        %2286 = vmatprep.subr.mxu0 0.0
        %2287 = vmatpush2.msra.mxu0 0.0
        %2288 = vmatprep.subr.mxu0 0.0
        %2289 = vmatpush2.msra.mxu0 0.0
        %2290 = vmatprep.mubr.f32.mxu0 0.0
        %v2291 = vand.u32 %v1985, 4294901760
        %v2292 = vsub.f32 %v1985, %v2291
        %v2293 = vand.u32 %v2292, 4294901760
        %2294 = vmatmul.mubr.f32.gmra.mxu0 %v2293
        %v2295 = vpop.f32.mrf.mxu0
        %v2296 = vadd.f32 %v2220, %v2295
        %v2297 = vpop.f32.mrf.mxu0
        %v2298 = vadd.f32 %v2222, %v2297
        %2299 = vdwg.mxu0
        %2300 = vmatprep.subr.mxu0 0.0
        %2301 = vmatpush1.msra.mxu0 0.0
        %2302 = vmatprep.subr.mxu0 0.0
        %2303 = vmatpush1.msra.mxu0 0.0
        %2304 = vmatprep.subr.mxu0 0.0
        %2305 = vmatpush1.msra.mxu0 0.0
        %2306 = vmatprep.subr.mxu0 0.0
        %2307 = vmatpush1.msra.mxu0 0.0
        %2308 = vmatprep.subr.mxu0 0.0
        %2309 = vmatpush1.msra.mxu0 0.0
        %2310 = vmatprep.subr.mxu0 0.0
        %2311 = vmatpush1.msra.mxu0 0.0
        %2312 = vmatprep.subr.mxu0 0.0
        %2313 = vmatpush1.msra.mxu0 0.0
        %2314 = vmatprep.subr.mxu0 0.0
        %2315 = vmatpush1.msra.mxu0 0.0
        %2316 = vmatprep.subr.mxu0 0.0
        %2317 = vmatpush1.msra.mxu0 0.0
        %2318 = vmatprep.subr.mxu0 0.0
        %2319 = vmatpush1.msra.mxu0 0.0
        %2320 = vmatprep.subr.mxu0 0.0
        %2321 = vmatpush1.msra.mxu0 0.0
        %2322 = vmatprep.subr.mxu0 0.0
        %2323 = vmatpush1.msra.mxu0 0.0
        %2324 = vmatprep.subr.mxu0 0.0
        %2325 = vmatpush1.msra.mxu0 0.0
        %2326 = vmatprep.subr.mxu0 0.0
        %2327 = vmatpush1.msra.mxu0 0.0
        %2328 = vmatprep.subr.mxu0 0.0
        %2329 = vmatpush1.msra.mxu0 0.0
        %v2330 = vand.u32 %v1966, 4294901760
        %v2331 = vsub.f32 %v1966, %v2330
        %v2332 = vand.u32 %v2331, 4294901760
        %2333 = vmatprep.subr.mxu0 %v2332
        %v2334 = vand.u32 %v1965, 4294901760
        %v2335 = vsub.f32 %v1965, %v2334
        %v2336 = vand.u32 %v2335, 4294901760
        %2337 = vmatpush1.msra.mxu0 %v2336
        %2338 = vmatprep.subr.mxu0 0.0
        %2339 = vmatpush2.msra.mxu0 0.0
        %2340 = vmatprep.subr.mxu0 0.0
        %2341 = vmatpush2.msra.mxu0 0.0
        %2342 = vmatprep.subr.mxu0 0.0
        %2343 = vmatpush2.msra.mxu0 0.0
        %2344 = vmatprep.subr.mxu0 0.0
        %2345 = vmatpush2.msra.mxu0 0.0
        %2346 = vmatprep.subr.mxu0 0.0
        %2347 = vmatpush2.msra.mxu0 0.0
        %2348 = vmatprep.subr.mxu0 0.0
        %2349 = vmatpush2.msra.mxu0 0.0
        %2350 = vmatprep.subr.mxu0 0.0
        %2351 = vmatpush2.msra.mxu0 0.0
        %2352 = vmatprep.subr.mxu0 0.0
        %2353 = vmatpush2.msra.mxu0 0.0
        %2354 = vmatprep.subr.mxu0 0.0
        %2355 = vmatpush2.msra.mxu0 0.0
        %2356 = vmatprep.subr.mxu0 0.0
        %2357 = vmatpush2.msra.mxu0 0.0
        %2358 = vmatprep.subr.mxu0 0.0
        %2359 = vmatpush2.msra.mxu0 0.0
        %2360 = vmatprep.subr.mxu0 0.0
        %2361 = vmatpush2.msra.mxu0 0.0
        %2362 = vmatprep.subr.mxu0 0.0
        %2363 = vmatpush2.msra.mxu0 0.0
        %2364 = vmatprep.subr.mxu0 0.0
        %2365 = vmatpush2.msra.mxu0 0.0
        %2366 = vmatprep.subr.mxu0 0.0
        %2367 = vmatpush2.msra.mxu0 0.0
        %2368 = vmatprep.subr.mxu0 0.0
        %2369 = vmatpush2.msra.mxu0 0.0
        %2370 = vmatprep.mubr.f32.mxu0 0.0
        %v2371 = vand.u32 %v1985, 4294901760
        %2372 = vmatmul.mubr.f32.gmra.mxu0 %v2371
        %v2373 = vpop.f32.mrf.mxu0
        %v2374 = vadd.f32 %v2296, %v2373
        %v2375 = vpop.f32.mrf.mxu0
        %v2376 = vadd.f32 %v2298, %v2375
        %2377 = vdwg.mxu0
        %2378 = vmatprep.subr.mxu0 0.0
        %2379 = vmatpush1.msra.mxu0 0.0
        %2380 = vmatprep.subr.mxu0 0.0
        %2381 = vmatpush1.msra.mxu0 0.0
        %2382 = vmatprep.subr.mxu0 0.0
        %2383 = vmatpush1.msra.mxu0 0.0
        %2384 = vmatprep.subr.mxu0 0.0
        %2385 = vmatpush1.msra.mxu0 0.0
        %2386 = vmatprep.subr.mxu0 0.0
        %2387 = vmatpush1.msra.mxu0 0.0
        %2388 = vmatprep.subr.mxu0 0.0
        %2389 = vmatpush1.msra.mxu0 0.0
        %2390 = vmatprep.subr.mxu0 0.0
        %2391 = vmatpush1.msra.mxu0 0.0
        %2392 = vmatprep.subr.mxu0 0.0
        %2393 = vmatpush1.msra.mxu0 0.0
        %2394 = vmatprep.subr.mxu0 0.0
        %2395 = vmatpush1.msra.mxu0 0.0
        %2396 = vmatprep.subr.mxu0 0.0
        %2397 = vmatpush1.msra.mxu0 0.0
        %2398 = vmatprep.subr.mxu0 0.0
        %2399 = vmatpush1.msra.mxu0 0.0
        %2400 = vmatprep.subr.mxu0 0.0
        %2401 = vmatpush1.msra.mxu0 0.0
        %2402 = vmatprep.subr.mxu0 0.0
        %2403 = vmatpush1.msra.mxu0 0.0
        %2404 = vmatprep.subr.mxu0 0.0
        %2405 = vmatpush1.msra.mxu0 0.0
        %2406 = vmatprep.subr.mxu0 0.0
        %2407 = vmatpush1.msra.mxu0 0.0
        %v2408 = vand.u32 %v1966, 4294901760
        %2409 = vmatprep.subr.mxu0 %v2408
        %v2410 = vand.u32 %v1965, 4294901760
        %2411 = vmatpush1.msra.mxu0 %v2410
        %2412 = vmatprep.subr.mxu0 0.0
        %2413 = vmatpush2.msra.mxu0 0.0
        %2414 = vmatprep.subr.mxu0 0.0
        %2415 = vmatpush2.msra.mxu0 0.0
        %2416 = vmatprep.subr.mxu0 0.0
        %2417 = vmatpush2.msra.mxu0 0.0
        %2418 = vmatprep.subr.mxu0 0.0
        %2419 = vmatpush2.msra.mxu0 0.0
        %2420 = vmatprep.subr.mxu0 0.0
        %2421 = vmatpush2.msra.mxu0 0.0
        %2422 = vmatprep.subr.mxu0 0.0
        %2423 = vmatpush2.msra.mxu0 0.0
        %2424 = vmatprep.subr.mxu0 0.0
        %2425 = vmatpush2.msra.mxu0 0.0
        %2426 = vmatprep.subr.mxu0 0.0
        %2427 = vmatpush2.msra.mxu0 0.0
        %2428 = vmatprep.subr.mxu0 0.0
        %2429 = vmatpush2.msra.mxu0 0.0
        %2430 = vmatprep.subr.mxu0 0.0
        %2431 = vmatpush2.msra.mxu0 0.0
        %2432 = vmatprep.subr.mxu0 0.0
        %2433 = vmatpush2.msra.mxu0 0.0
        %2434 = vmatprep.subr.mxu0 0.0
        %2435 = vmatpush2.msra.mxu0 0.0
        %2436 = vmatprep.subr.mxu0 0.0
        %2437 = vmatpush2.msra.mxu0 0.0
        %2438 = vmatprep.subr.mxu0 0.0
        %2439 = vmatpush2.msra.mxu0 0.0
        %2440 = vmatprep.subr.mxu0 0.0
        %2441 = vmatpush2.msra.mxu0 0.0
        %2442 = vmatprep.subr.mxu0 0.0
        %2443 = vmatpush2.msra.mxu0 0.0
        %2444 = vmatprep.mubr.f32.mxu0 0.0
        %v2445 = vand.u32 %v1985, 4294901760
        %2446 = vmatmul.mubr.f32.gmra.mxu0 %v2445
        %v2447 = vpop.f32.mrf.mxu0
        %v2448 = vadd.f32 %v2374, %v2447
        %v2449 = vpop.f32.mrf.mxu0
        %v2450 = vadd.f32 %v2376, %v2449
        %2451 = vdwg.mxu0
        %v2452 = vsel %vm1955, 16.0, %v2448
        %v2453 = vsel %vm1956, 16.0, %v2450
        %v2454 = vadd.f32 %v2452, 0.5
        %v2455 = vadd.f32 %v2453, 0.5
        %v2456 = vcvt.f32.s32.to.zero.pseudo %v2454
        %v2457 = vcvt.f32.s32.to.zero.pseudo %v2455
        %v2458 = vsel %vm1955, 1, 0
        %v2459 = vsel %vm1956, 1, 0
        %vm2460 = vcmp.eq.s32.totalorder %v2458, 1
        %vm2461 = vcmp.eq.s32.totalorder %v2459, 1
        %v2462 = vsel %vm2460, 0.0, %v2448
        %v2463 = vsel %vm2461, 0.0, %v2450
        %v2466 = vcombine.low %v2462, %v2463
        %2468 = vst [vmem:[%s323] sm:$0xff] %v2466
        %vm2469 = vcmp.gt.s32.totalorder %v2456, 0
        %v2470 = vsel %vm2469, %v2456, 0
        %vm2471 = vcmp.gt.s32.totalorder %v2457, 0
        %v2472 = vsel %vm2471, %v2457, 0
        %vm2473 = vcmp.lt.s32.totalorder %v2470, 15
        %v2474 = vsel %vm2473, %v2470, 15
        %vm2475 = vcmp.lt.s32.totalorder %v2472, 15
        %v2476 = vsel %vm2475, %v2472, 15
        %v2477 = vadd.s32 %v1892, 8
        %v2478 = vlaneseq
        %v2479 = vshrl.u32 %v2478, 7
        %v2480 = vsub.s32 4, %v2479
        %v2481 = vrot.slane %v2474, %v2480
        %v2482 = vlaneseq
        %v2483 = vshrl.u32 %v2482, 7
        %v2484 = vsub.s32 4, %v2483
        %v2485 = vrot.slane %v2476, %v2484
        %vm2486 = vcmp.eq.s32.totalorder %v1892, %v2481
        %vm2487 = vcmp.eq.s32.totalorder %v1892, %v2485
        %vm2488 = vcmp.eq.s32.totalorder %v2477, %v2481
        %vm2489 = vcmp.eq.s32.totalorder %v2477, %v2485
        %vm2490 = vcmp.eq.s32.totalorder %v1959, 1
        %vm2491 = vcmp.eq.s32.totalorder %v1960, 1
        %vm2492 = vmand %vm2486, %vm2490
        %vm2493 = vmand %vm2487, %vm2491
        %vm2494 = vmand %vm2488, %vm2490
        %vm2495 = vmand %vm2489, %vm2491
        %v2496 = vsel %vm2492, %v1976, 0.0
        %v2497 = vsel %vm2493, %v1982, 0.0
        %v2498 = vsel %vm2494, %v1976, 0.0
        %v2499 = vsel %vm2495, %v1982, 0.0
        %2500 = vst [vmem:[%s330] sm:$0xff] %v2496
        %2501 = vst [vmem:[%s330 + $0x8] sm:$0xff] %v2497
        %2502 = vst [vmem:[%s330 + $0x10] sm:$0xff] %v2498
        %2503 = vst [vmem:[%s330 + $0x18] sm:$0xff] %v2499
        %v2504 = vcombine.high %v2456, %v2457
        %v2506 = vunpack.c.l.s4 1966171168
        %v2507 = vunpack.c.0.s8 %v2506
        %v2508 = vlaneseq
        %v2509 = vshrl.u32 %v2508, 7
        %v2510 = vsub.s32 %v2507, %v2509
        %v2511 = vrot.slane %v2504, %v2510
        %v2513 = vunpack.c.l.s4 1966171168
        %v2514 = vunpack.c.0.s8 %v2513
        %v2515 = vlaneseq
        %v2516 = vshrl.u32 %v2515, 7
        %v2517 = vsub.s32 %v2514, %v2516
        %v2518 = vrot.slane %v2511, %v2517
        %v2519 = vlaneseq
        %vm2520 = vcmp.ge.s32.totalorder %v2519, 0
        %vm2521 = vcmp.lt.s32.totalorder %v2519, 256
        %vm2522 = vmand %vm2520, %vm2521
        %2523 = vst.msk [vmem:[%s316] ss:$8 sm:$0x3] %vm2522, %v2518
        %2524 = vst.msk [vmem:[%s316] ss:$8 sm:$0x0] %vm2522, %v2518
        %v2525 = vcombine.low %v1959, %v1960
        %v2527 = vunpack.c.l.s4 1966171168
        %v2528 = vunpack.c.0.s8 %v2527
        %v2529 = vlaneseq
        %v2530 = vshrl.u32 %v2529, 7
        %v2531 = vsub.s32 %v2528, %v2530
        %v2532 = vrot.slane %v2525, %v2531
        %v2534 = vunpack.c.l.s4 1966171168
        %v2535 = vunpack.c.0.s8 %v2534
        %v2536 = vlaneseq
        %v2537 = vshrl.u32 %v2536, 7
        %v2538 = vsub.s32 %v2535, %v2537
        %v2539 = vrot.slane %v2532, %v2538
        %s2540 = scalar_lea.vmem %s316, 1 [#allocation2]
        %2541 = vst.msk [vmem:[%s2540] ss:$8 sm:$0x3] %vm2522, %v2539
        %2542 = vst.msk [vmem:[%s2540] ss:$8 sm:$0x0] %vm2522, %v2539
        %v2543 = vcombine.low %v1953, %v1954
        %v2545 = vunpack.c.l.s4 1966171168
        %v2546 = vunpack.c.0.s8 %v2545
        %v2547 = vlaneseq
        %v2548 = vshrl.u32 %v2547, 7
        %v2549 = vsub.s32 %v2546, %v2548
        %v2550 = vrot.slane %v2543, %v2549
        %v2552 = vunpack.c.l.s4 1966171168
        %v2553 = vunpack.c.0.s8 %v2552
        %v2554 = vlaneseq
        %v2555 = vshrl.u32 %v2554, 7
        %v2556 = vsub.s32 %v2553, %v2555
        %v2557 = vrot.slane %v2550, %v2556
        %s2558 = scalar_lea.vmem %s316, 2 [#allocation2]
        %2559 = vst.msk [vmem:[%s2558] ss:$8 sm:$0x3] %vm2522, %v2557
        %2560 = vst.msk [vmem:[%s2558] ss:$8 sm:$0x0] %vm2522, %v2557
        %2561 = vst [vmem:[%s316] sm:$0xf8] 0
        %2562 = vst [vmem:[%s316 + $0x8] sm:$0xf8] 0
        %s2563 = sand.u32 %s158, 1
        %s2564 = scalar_lea.sflag [#allocation3], %s2563
        %s2565 = sand.u32 %s158, 1
        %s2566 = smul.addr %s2565, 16
        %s2567 = scalar_lea.vmem [#allocation2], %s2566
        %s2568 = sand.u32 %s25, 1
        %s2569 = scalar_lea.sflag [#allocation5], %s2568
        %s2570 = sand.u32 %s184, 1
        %s2571 = smul.addr %s2570, 8
        %s2572 = scalar_lea.vmem [#allocation4], %s2571
        %s2573 = sand.u32 %s25, 1
        %s2574 = scalar_lea.sflag [#allocation5], %s2573
        %s2575 = sand.u32 %s210, 1
        %s2576 = smul.addr %s2575, 32
        %s2577 = scalar_lea.vmem [#allocation6], %s2576
        // Predicated region
        $region41: #{tpu_custom_call.1} parent=39 // pred_check
          %p2578 = pneg %p168
        $region42: #{tpu_custom_call.1} parent=39 // pred_check_branch
          %2580 = sbr.rel (%p2578) target = $region44
        $region43: #{tpu_custom_call.1} parent=39 // pred_region
          %s2582 = ssub.s32 256, 256
          %2583 = vsyncadd %s2564, %s2582
          %s2584 = smul.addr %s25, 2
          %s2585 = smul.addr %s2584, 128
          %s2586 = scalar_lea.hbm %s5, %s2585
          %s2588 = sshll.u32 %s2567, 4
          %s2589 = int_to_ptr.vmem [resolvable:$true] %s2588
          %2591 = dma.vmem_to_hbm [thread:$0]  %s2589, 256, %s2586, %s2564
        $region44: #{tpu_custom_call.1} parent=39 // pred_fallthru
          _
        // Predicated region
        $region45: #{tpu_custom_call.1} parent=39 // pred_check
          %p2592 = pneg %p194
        $region46: #{tpu_custom_call.1} parent=39 // pred_check_branch
          %2594 = sbr.rel (%p2592) target = $region48
        $region47: #{tpu_custom_call.1} parent=39 // pred_region
          %s2596 = ssub.s32 128, 128
          %2597 = vsyncadd %s2569, %s2596
          %s2598 = smul.addr %s25, 2
          %s2599 = smul.addr %s2598, 64
          %s2600 = scalar_lea.hbm %s6, %s2599
          %s2602 = sshll.u32 %s2572, 4
          %s2603 = int_to_ptr.vmem [resolvable:$true] %s2602
          %2605 = dma.vmem_to_hbm [thread:$0]  %s2603, 128, %s2600, %s2569
        $region48: #{tpu_custom_call.1} parent=39 // pred_fallthru
          _
        // Predicated region
        $region49: #{tpu_custom_call.1} parent=39 // pred_check
          %p2606 = pneg %p220
        $region50: #{tpu_custom_call.1} parent=39 // pred_check_branch
          %2608 = sbr.rel (%p2606) target = $region52
        $region51: #{tpu_custom_call.1} parent=39 // pred_region
          %s2610 = ssub.s32 512, 512
          %2611 = vsyncadd %s2574, %s2610
          %s2612 = smul.addr %s25, 4
          %s2613 = smul.addr %s2612, 128
          %s2614 = scalar_lea.hbm %s7, %s2613
          %s2615 = sshll.u32 %s2577, 4
          %s2616 = int_to_ptr.vmem [resolvable:$true] %s2615
          %2621 = dma.vmem_to_hbm [thread:$0]  %s2616, 512, %s2614, %s2574, 256, 256, 16
        $region52: #{tpu_custom_call.1} parent=39 // pred_fallthru
          _
      $region40: #{tpu_custom_call.1} parent=5 // pred_fallthru
        _
      %p2622 = scmp.le.s32.totalorder 2, %s20
      // Predicated region
      $region53: #{tpu_custom_call.1} parent=5 // pred_check
        %p2623 = pneg %p2622
      $region54: #{tpu_custom_call.1} parent=5 // pred_check_branch
        %2625 = sbr.rel (%p2623) target = $region56
      $region55: #{tpu_custom_call.1} parent=5 // pred_region
        %s2626 = ssub.s32 %s20, 2
        // Predicated region
        $region57: #{tpu_custom_call.1} parent=55 // pred_check
          %p2627 = pneg %p174
        $region58: #{tpu_custom_call.1} parent=55 // pred_check_branch
          %2629 = sbr.rel (%p2627) target = $region60
        $region59: #{tpu_custom_call.1} parent=55 // pred_region
          %s2630 = sand.u32 %s159, 1
          %s2631 = scalar_lea.sflag [#allocation3], %s2630
          %s2632 = sand.u32 %s159, 1
          %s2633 = smul.addr %s2632, 16
          %s2634 = scalar_lea.vmem [#allocation2], %s2633
          %2635 = dma.done %s2631, 256
        $region60: #{tpu_custom_call.1} parent=55 // pred_fallthru
          _
        // Predicated region
        $region61: #{tpu_custom_call.1} parent=55 // pred_check
          %p2636 = pneg %p200
        $region62: #{tpu_custom_call.1} parent=55 // pred_check_branch
          %2638 = sbr.rel (%p2636) target = $region64
        $region63: #{tpu_custom_call.1} parent=55 // pred_region
          %s2639 = sand.u32 %s26, 1
          %s2640 = scalar_lea.sflag [#allocation5], %s2639
          %s2641 = sand.u32 %s185, 1
          %s2642 = smul.addr %s2641, 8
          %s2643 = scalar_lea.vmem [#allocation4], %s2642
          %2644 = dma.done %s2640, 128
        $region64: #{tpu_custom_call.1} parent=55 // pred_fallthru
          _
        // Predicated region
        $region65: #{tpu_custom_call.1} parent=55 // pred_check
          %p2645 = pneg %p226
        $region66: #{tpu_custom_call.1} parent=55 // pred_check_branch
          %2647 = sbr.rel (%p2645) target = $region68
        $region67: #{tpu_custom_call.1} parent=55 // pred_region
          %s2648 = sand.u32 %s26, 1
          %s2649 = scalar_lea.sflag [#allocation5], %s2648
          %s2650 = sand.u32 %s211, 1
          %s2651 = smul.addr %s2650, 32
          %s2652 = scalar_lea.vmem [#allocation6], %s2651
          %2653 = dma.done %s2649, 512
        $region68: #{tpu_custom_call.1} parent=55 // pred_fallthru
          _
      $region56: #{tpu_custom_call.1} parent=5 // pred_fallthru
        _
    $region6: #{tpu_custom_call.1} parent=1 // loop_footer
      %s24 = sadd.s32 1, %s20
    $region7: #{tpu_custom_call.1} parent=1 // loop_footer_branch
      %19 = sbr.rel target = $region3
    $region8: #{tpu_custom_call.1} parent=1 // loop_exit
      _
    %2654 = vsyncpa [#allocation3], 1
    %s2655 = scalar_lea.sflag [#allocation3], 1
    %2656 = vsyncpa %s2655, 1
    %2657 = vsyncpa [#allocation5], 1
    %s2658 = scalar_lea.sflag [#allocation5], 1
    %2659 = vsyncpa %s2658, 1

</llo_original>
